<compile_context>
chip_gen: v5e
topology: v5e:2x2
jax: 0.10.0
libtpu: 0.0.40
codegen_flags: <defaults>
</compile_context>

<pallas_src>
import functools

import jax
import jax.numpy as jnp
from jax import lax
from jax.experimental import pallas as pl
from jax.experimental.pallas import tpu as pltpu

EPS = 1e-5
EXPANSION = 4

_VMEM_LIMIT_CACHE = None


def _vmem_limit():
    """Per-chip VMEM budget: ~3/4 of physical, capped at 100 MiB."""
    global _VMEM_LIMIT_CACHE
    if _VMEM_LIMIT_CACHE is None:
        cap = 64 * 1024 * 1024
        try:
            cap = int(getattr(pltpu.get_tpu_info(), "vmem_capacity_bytes", cap))
        except Exception:
            pass
        _VMEM_LIMIT_CACHE = min(cap * 3 // 4, 100 * 1024 * 1024)
    return _VMEM_LIMIT_CACHE


def _pick_tile(dim, target, multiple):
    """Largest tile <= target that is a multiple of `multiple` and divides dim.

    Relaxes the multiple (multiple -> 8 -> 1) before falling back to the full
    dim (a full-dim block is always legal but may be large)."""
    if dim <= target:
        return dim
    for m in (multiple, 8, 1):
        t = (target // m) * m
        while t >= m:
            if dim % t == 0:
                return t
            t -= m
    return dim


def _pick_row_band(Ho, Wo, target_m=512):
    """Output-row band THO so THO divides Ho and THO*Wo is ~target and 8-aligned."""
    t = max(1, min(Ho, target_m // max(Wo, 1)))
    for d in range(t, 0, -1):
        if Ho % d == 0 and (d * Wo) % 8 == 0:
            return d
    for d in range(t, 0, -1):
        if Ho % d == 0:
            return d
    return Ho


# ----------------------------------------------------------------------------
# Pallas kernels
# ----------------------------------------------------------------------------
def _conv1_pad_kernel(x_ref, w_ref, shift_ref, o_ref, *, H, W, Cin, Cout):
    """1x1 conv + folded-BN shift + ReLU, written into a zero-haloed buffer.

    x_ref: (1, H, W, Cin)       o_ref: (1, H+2, W+2, Cout)
    The 1-px halo needed by the following 3x3 conv (padding=1) is produced
    here, so no separate HBM pad pass is required.
    """
    # TODO(synk): K-tile this matmul for very large Cin (not needed for ResNet).
    x = x_ref[0].reshape(H * W, Cin)
    y = jnp.dot(x, w_ref[...], preferred_element_type=jnp.float32)
    y = jnp.maximum(y + shift_ref[...], 0.0).astype(o_ref.dtype)
    y = y.reshape(H, W, Cout)
    zc = jnp.zeros((H, 1, Cout), o_ref.dtype)
    y = jnp.concatenate([zc, y, zc], axis=1)          # (H, W+2, Cout)
    o_ref[0, pl.ds(1, H), :, :] = y                   # interior rows (aligned)
    zr = jnp.zeros((1, W + 2, Cout), o_ref.dtype)
    o_ref[0, pl.ds(0, 1), :, :] = zr                  # top halo row
    o_ref[0, pl.ds(H + 1, 1), :, :] = zr              # bottom halo row


def _conv3x3_kernel(*args, THO, Wo, Cin, Cout, stride):
    """3x3 conv (padding baked into the input, stride s) + BN shift + ReLU.

    args = (phase_refs[stride*stride]..., w_ref, shift_ref, o_ref)
      phase_refs[pr*s+pc]: (1, Hp, Wp, Cin) unit-stride column/row phase views
      w_ref:  (3, 3, Cin, Cout)
      o_ref:  (THO*Wo, Cout) one lane/sublane-dense band of output rows
    Nine per-tap MXU dots accumulated in a register value (no VMEM scratch,
    no im2col copies).
    """
    # TODO(synk): fold the kw taps into a K=3*Cin matmul for small Cin (~64)
    # where MXU K-fill matters on the 256-deep v6e/v7x MXU.
    s = stride
    phase_refs = args[:s * s]
    w_ref, shift_ref, o_ref = args[s * s], args[s * s + 1], args[s * s + 2]
    r0 = pl.program_id(1) * THO                       # first output row of band
    acc = None
    for kh in range(3):
        for kw in range(3):
            ref = phase_refs[(kh % s) * s + (kw % s)]
            xs = ref[0, pl.ds(r0 + kh // s, THO), pl.ds(kw // s, Wo), :]
            d = jnp.dot(xs.reshape(THO * Wo, Cin), w_ref[kh, kw],
                        preferred_element_type=jnp.float32)
            acc = d if acc is None else acc + d
    o_ref[...] = jnp.maximum(acc + shift_ref[...], 0.0).astype(o_ref.dtype)


def _final_proj_kernel(y_ref, w3_ref, xs_ref, ws_ref, shift_ref, o_ref):
    """Final 1x1 conv fused with the projection-shortcut 1x1 conv + add + ReLU.

    out = relu(y @ w3 + xs @ ws + shift), shift = shift3 + shift_short.
    """
    # TODO(synk): add a K grid axis (f32 VMEM accumulator) for very large
    # dim_in shortcuts to shrink the per-step VMEM footprint on v7x.
    acc = jnp.dot(y_ref[...], w3_ref[...], preferred_element_type=jnp.float32)
    acc = acc + jnp.dot(xs_ref[...], ws_ref[...],
                        preferred_element_type=jnp.float32)
    acc = acc + shift_ref[...]
    o_ref[...] = jnp.maximum(acc, 0.0).astype(o_ref.dtype)


def _final_identity_kernel(y_ref, w3_ref, res_ref, shift_ref, o_ref):
    """Final 1x1 conv + identity residual add (bf16 residual) + ReLU."""
    acc = jnp.dot(y_ref[...], w3_ref[...], preferred_element_type=jnp.float32)
    acc = acc + res_ref[...].astype(jnp.float32) + shift_ref[...]
    o_ref[...] = jnp.maximum(acc, 0.0).astype(o_ref.dtype)


def _final_plain_kernel(y_ref, w3_ref, shift_ref, o_ref):
    """Final 1x1 conv + BN shift + ReLU (Residual=False path)."""
    acc = jnp.dot(y_ref[...], w3_ref[...], preferred_element_type=jnp.float32)
    o_ref[...] = jnp.maximum(acc + shift_ref[...], 0.0).astype(o_ref.dtype)


# ----------------------------------------------------------------------------
# pallas_call wrappers
# ----------------------------------------------------------------------------
def conv1x1_bn_relu_pad(x_nhwc, w_io, shift, *, out_dtype):
    """1x1 conv + BN + ReLU, output with a zero 1-px spatial halo."""
    N, H, W, Cin = x_nhwc.shape
    Cout = w_io.shape[1]
    kernel = functools.partial(_conv1_pad_kernel, H=H, W=W, Cin=Cin, Cout=Cout)
    return pl.pallas_call(
        kernel,
        out_shape=jax.ShapeDtypeStruct((N, H + 2, W + 2, Cout), out_dtype),
        grid=(N,),
        in_specs=[
            pl.BlockSpec((1, H, W, Cin), lambda n: (n, 0, 0, 0)),
            pl.BlockSpec((Cin, Cout), lambda n: (0, 0)),
            pl.BlockSpec((1, Cout), lambda n: (0, 0)),
        ],
        out_specs=pl.BlockSpec((1, H + 2, W + 2, Cout), lambda n: (n, 0, 0, 0)),
        compiler_params=pltpu.CompilerParams(
            dimension_semantics=("parallel",),
            vmem_limit_bytes=_vmem_limit()),
    )(x_nhwc, w_io, shift.reshape(1, Cout))


def conv3x3_bn_relu(xp, w_k, shift, *, stride, out_dtype):
    """3x3 conv (pre-padded input, stride s) + BN + ReLU.

    xp: (N, H+2, W+2, Cin) zero-haloed activation (bf16) from conv1x1_bn_relu_pad.
    Returns (N, Ho, Wo, Cout).
    """
    N, Hp, Wp, Cin = xp.shape
    H, W = Hp - 2, Wp - 2
    Cout = w_k.shape[-1]
    assert H % stride == 0 and W % stride == 0
    Ho, Wo = H // stride, W // stride
    s = stride
    if s == 1:
        phases = [xp]
    else:
        # One-time HBM reshuffle so every in-kernel read is unit-stride
        # (no strided sublane loads inside the kernel).
        phases = [xp[:, pr::s, pc::s, :] for pr in range(s) for pc in range(s)]
    THO = _pick_row_band(Ho, Wo)
    nblocks = Ho // THO
    M = N * Ho * Wo
    kernel = functools.partial(_conv3x3_kernel, THO=THO, Wo=Wo,
                               Cin=Cin, Cout=Cout, stride=s)
    # TODO(synk): on v7x, single-buffer (pl.Buffered(1)) the resident image /
    # weight blocks (their block index is constant per batch element).
    in_specs = [pl.BlockSpec((1,) + p.shape[1:], lambda n, h: (n, 0, 0, 0))
                for p in phases]
    in_specs += [
        pl.BlockSpec((3, 3, Cin, Cout), lambda n, h: (0, 0, 0, 0)),
        pl.BlockSpec((1, Cout), lambda n, h: (0, 0)),
    ]
    y = pl.pallas_call(
        kernel,
        out_shape=jax.ShapeDtypeStruct((M, Cout), out_dtype),
        grid=(N, nblocks),
        in_specs=in_specs,
        out_specs=pl.BlockSpec((THO * Wo, Cout),
                               lambda n, h: (n * nblocks + h, 0)),
        compiler_params=pltpu.CompilerParams(
            dimension_semantics=("parallel", "parallel"),
            vmem_limit_bytes=_vmem_limit()),
    )(*phases, w_k, shift.reshape(1, Cout))
    return y.reshape(N, Ho, Wo, Cout)


def _mm_tiles(M, Cout):
    TM = _pick_tile(M, 1024, 8)
    TN = _pick_tile(Cout, 1024, 256 if Cout % 256 == 0 else 128)
    return TM, TN


def conv1x1_final_proj(y_nhwc, w3_io, xs_nhwc, ws_io, shift, out_dtype):
    N, Ho, Wo, K3 = y_nhwc.shape
    Ks = xs_nhwc.shape[-1]
    Cout = w3_io.shape[1]
    M = N * Ho * Wo
    ym = y_nhwc.reshape(M, K3)          # already bf16
    xm = xs_nhwc.reshape(M, Ks)         # already bf16
    TM, TN = _mm_tiles(M, Cout)
    out = pl.pallas_call(
        _final_proj_kernel,
        out_shape=jax.ShapeDtypeStruct((M, Cout), out_dtype),
        grid=(M // TM, Cout // TN),
        in_specs=[
            pl.BlockSpec((TM, K3), lambda i, j: (i, 0)),
            pl.BlockSpec((K3, TN), lambda i, j: (0, j)),
            pl.BlockSpec((TM, Ks), lambda i, j: (i, 0)),
            pl.BlockSpec((Ks, TN), lambda i, j: (0, j)),
            pl.BlockSpec((1, TN), lambda i, j: (0, j)),
        ],
        out_specs=pl.BlockSpec((TM, TN), lambda i, j: (i, j)),
        compiler_params=pltpu.CompilerParams(
            dimension_semantics=("parallel", "parallel"),
            vmem_limit_bytes=_vmem_limit()),
    )(ym, w3_io, xm, ws_io, shift.reshape(1, Cout))
    return out.reshape(N, Ho, Wo, Cout)


def conv1x1_final_identity(y_nhwc, w3_io, res_nhwc, shift, out_dtype):
    N, Ho, Wo, K3 = y_nhwc.shape
    Cout = w3_io.shape[1]
    M = N * Ho * Wo
    ym = y_nhwc.reshape(M, K3)
    rm = res_nhwc.reshape(M, Cout)      # bf16 residual: half the DMA volume
    TM, TN = _mm_tiles(M, Cout)
    out = pl.pallas_call(
        _final_identity_kernel,
        out_shape=jax.ShapeDtypeStruct((M, Cout), out_dtype),
        grid=(M // TM, Cout // TN),
        in_specs=[
            pl.BlockSpec((TM, K3), lambda i, j: (i, 0)),
            pl.BlockSpec((K3, TN), lambda i, j: (0, j)),
            pl.BlockSpec((TM, TN), lambda i, j: (i, j)),
            pl.BlockSpec((1, TN), lambda i, j: (0, j)),
        ],
        out_specs=pl.BlockSpec((TM, TN), lambda i, j: (i, j)),
        compiler_params=pltpu.CompilerParams(
            dimension_semantics=("parallel", "parallel"),
            vmem_limit_bytes=_vmem_limit()),
    )(ym, w3_io, rm, shift.reshape(1, Cout))
    return out.reshape(N, Ho, Wo, Cout)


def conv1x1_final_plain(y_nhwc, w3_io, shift, out_dtype):
    N, Ho, Wo, K3 = y_nhwc.shape
    Cout = w3_io.shape[1]
    M = N * Ho * Wo
    ym = y_nhwc.reshape(M, K3)
    TM, TN = _mm_tiles(M, Cout)
    out = pl.pallas_call(
        _final_plain_kernel,
        out_shape=jax.ShapeDtypeStruct((M, Cout), out_dtype),
        grid=(M // TM, Cout // TN),
        in_specs=[
            pl.BlockSpec((TM, K3), lambda i, j: (i, 0)),
            pl.BlockSpec((K3, TN), lambda i, j: (0, j)),
            pl.BlockSpec((1, TN), lambda i, j: (0, j)),
        ],
        out_specs=pl.BlockSpec((TM, TN), lambda i, j: (i, j)),
        compiler_params=pltpu.CompilerParams(
            dimension_semantics=("parallel", "parallel"),
            vmem_limit_bytes=_vmem_limit()),
    )(ym, w3_io, shift.reshape(1, Cout))
    return out.reshape(N, Ho, Wo, Cout)


# ----------------------------------------------------------------------------
# Parameters (PyTorch OIHW layout) and one-time kernel-ready preparation
# ----------------------------------------------------------------------------
def init_bottleneck_params(key, dim_in, dim_out):
    ks = jax.random.split(key, 16)
    dim_exp = dim_out * EXPANSION

    def bn(i, c):
        return dict(
            gamma=1.0 + 0.1 * jax.random.normal(ks[i], (c,), jnp.float32),
            beta=0.1 * jax.random.normal(ks[i + 1], (c,), jnp.float32),
            mean=0.1 * jax.random.normal(ks[i + 2], (c,), jnp.float32),
            var=jax.random.uniform(ks[i + 3], (c,), jnp.float32, 0.5, 1.5),
        )

    return dict(
        w1=0.2 * jax.random.normal(ks[0], (dim_out, dim_in, 1, 1), jnp.float32),
        bn1=bn(1, dim_out),
        w2=0.2 * jax.random.normal(ks[5], (dim_out, dim_out, 3, 3), jnp.float32),
        bn2=bn(6, dim_out),
        w3=0.2 * jax.random.normal(ks[10], (dim_exp, dim_out, 1, 1), jnp.float32),
        bn3=bn(11, dim_exp),
        ws=0.2 * jax.random.normal(ks[15], (dim_exp, dim_in, 1, 1), jnp.float32),
        bns=bn(1, dim_exp),
    )


def _fold_bn(bn):
    scale = bn["gamma"] / jnp.sqrt(bn["var"] + EPS)
    shift = bn["beta"] - bn["mean"] * scale
    return scale, shift


def prepare_params(params):
    """Fold BN scales into bf16 conv weights; keep per-channel f32 shifts.

    Done once outside the per-step forward (hoisted weight prep)."""
    s1, b1 = _fold_bn(params["bn1"])
    s2, b2 = _fold_bn(params["bn2"])
    s3, b3 = _fold_bn(params["bn3"])
    ss, bs = _fold_bn(params["bns"])

    w1 = params["w1"][:, :, 0, 0].T * s1[None, :]                 # (Cin, C)
    w2 = jnp.transpose(params["w2"], (2, 3, 1, 0))                # (3,3,Cin,C)
    w2 = w2 * s2[None, None, None, :]
    w3 = params["w3"][:, :, 0, 0].T * s3[None, :]
    ws = params["ws"][:, :, 0, 0].T * ss[None, :]

    bf = jnp.bfloat16
    return dict(w1=w1.astype(bf), b1=b1, w2=w2.astype(bf), b2=b2,
                w3=w3.astype(bf), b3=b3, ws=ws.astype(bf), bs=bs)


# ----------------------------------------------------------------------------
# Forward
# ----------------------------------------------------------------------------
def bottleneck_forward(x_nchw, prep, *, dim_in, dim_out, residual=True, stride=1):
    # TODO(synk): training-mode BatchNorm (batch statistics) is not implemented;
    # this is the inference-mode (running-stats) forward pass.
    # TODO(synk): in a full network keep activations NHWC/bf16 across blocks so
    # the entry/exit transposes below happen once per network, not per block.
    dim_exp = dim_out * EXPANSION
    x = jnp.transpose(x_nchw, (0, 2, 3, 1)).astype(jnp.bfloat16)  # NCHW -> NHWC

    xp = conv1x1_bn_relu_pad(x, prep["w1"], prep["b1"], out_dtype=jnp.bfloat16)
    out = conv3x3_bn_relu(xp, prep["w2"], prep["b2"], stride=stride,
                          out_dtype=jnp.bfloat16)

    if residual:
        if stride != 1 or dim_in != dim_exp:
            # TODO(synk): for stride>1, subsample the shortcut via BlockSpec
            # index math / strided DMA instead of this XLA slice.
            xs = x[:, ::stride, ::stride, :] if stride > 1 else x
            shift = prep["b3"] + prep["bs"]                       # fused shifts
            out = conv1x1_final_proj(out, prep["w3"], xs, prep["ws"], shift,
                                     out_dtype=x_nchw.dtype)
        else:
            out = conv1x1_final_identity(out, prep["w3"], x, prep["b3"],
                                         out_dtype=x_nchw.dtype)
    else:
        out = conv1x1_final_plain(out, prep["w3"], prep["b3"],
                                  out_dtype=x_nchw.dtype)

    return jnp.transpose(out, (0, 3, 1, 2))                       # NHWC -> NCHW


# ----------------------------------------------------------------------------
# Pure-JAX f32 reference (verification only)
# ----------------------------------------------------------------------------
def _ref_conv(x_nhwc, w_oihw, stride, padding):
    w = jnp.transpose(w_oihw, (2, 3, 1, 0))
    return lax.conv_general_dilated(
        x_nhwc, w, window_strides=(stride, stride),
        padding=[(padding, padding)] * 2,
        dimension_numbers=("NHWC", "HWIO", "NHWC"),
        precision=lax.Precision.HIGHEST)


def _ref_bn(y, bn):
    return (y - bn["mean"]) / jnp.sqrt(bn["var"] + EPS) * bn["gamma"] + bn["beta"]


def bottleneck_reference(x_nchw, p, *, dim_in, dim_out, residual=True, stride=1):
    dim_exp = dim_out * EXPANSION
    x = jnp.transpose(x_nchw, (0, 2, 3, 1))
    y = jax.nn.relu(_ref_bn(_ref_conv(x, p["w1"], 1, 0), p["bn1"]))
    y = jax.nn.relu(_ref_bn(_ref_conv(y, p["w2"], stride, 1), p["bn2"]))
    y = _ref_bn(_ref_conv(y, p["w3"], 1, 0), p["bn3"])
    if residual:
        if stride != 1 or dim_in != dim_exp:
            s = _ref_bn(_ref_conv(x, p["ws"], stride, 0), p["bns"])
        else:
            s = x
        y = y + s
    y = jax.nn.relu(y)
    return jnp.transpose(y, (0, 3, 1, 2))


# ----------------------------------------------------------------------------
if __name__ == "__main__":
    def run_case(dim_in, dim_out, stride, residual, key):
        N, H, W = 2, 16, 16
        kx, kp = jax.random.split(key)
        x = jax.random.normal(kx, (N, dim_in, H, W), jnp.float32)   # NCHW
        params = init_bottleneck_params(kp, dim_in, dim_out)
        prep = prepare_params(params)
        fwd = jax.jit(functools.partial(bottleneck_forward, dim_in=dim_in,
                                        dim_out=dim_out, residual=residual,
                                        stride=stride))
        out = jax.block_until_ready(fwd(x, prep))
        ref = bottleneck_reference(x, params, dim_in=dim_in, dim_out=dim_out,
                                   residual=residual, stride=stride)
        assert out.shape == (N, dim_out * EXPANSION, H // stride, W // stride), out.shape
        # bf16 MXU operands vs f32 reference -> relaxed tolerance.
        assert jnp.allclose(out, ref, atol=5e-2, rtol=5e-2), (
            dim_in, dim_out, stride, residual,
            float(jnp.max(jnp.abs(out - ref))))

    key = jax.random.PRNGKey(0)
    ks = jax.random.split(key, 4)
    run_case(4, 4, 1, True, ks[0])     # projection shortcut (main config)
    run_case(16, 4, 1, True, ks[1])    # identity shortcut
    run_case(4, 4, 2, True, ks[2])     # stride-2 projection (phase-split path)
    run_case(4, 4, 1, False, ks[3])    # Residual=False

    print("KERNEL_OK")
</pallas_src>

<mosaic_0001>
module attributes {stable_mosaic.version = 11 : i64} {
  func.func @_conv1_pad_kernel(%arg0: i32, %arg1: memref<1x16x16x4xbf16, #tpu.memory_space<vmem>>, %arg2: memref<4x4xbf16, #tpu.memory_space<vmem>>, %arg3: memref<1x4xf32, #tpu.memory_space<vmem>>, %arg4: memref<1x18x18x4xbf16, #tpu.memory_space<vmem>>) attributes {dimension_semantics = [#tpu.dimension_semantics<parallel>], iteration_bounds = array<i64: 2>, scalar_prefetch = 0 : i64, scratch_operands = 0 : i64, tpu.core_type = #tpu.core_type<tc>, window_params = [{transform_indices = @transform_0, window_bounds = array<i64: 1, 16, 16, 4>}, {pipeline_mode = #tpu.pipeline_mode<synchronous>, transform_indices = @transform_1, window_bounds = array<i64: 4, 4>}, {pipeline_mode = #tpu.pipeline_mode<synchronous>, transform_indices = @transform_2, window_bounds = array<i64: 1, 4>}, {transform_indices = @transform_3, window_bounds = array<i64: 1, 18, 18, 4>}]} {
    %c0 = arith.constant 0 : index
    %c0_0 = arith.constant 0 : index
    %c0_1 = arith.constant 0 : index
    %c0_2 = arith.constant 0 : index
    %0 = vector.load %arg1[%c0, %c0_0, %c0_1, %c0_2] : memref<1x16x16x4xbf16, #tpu.memory_space<vmem>>, vector<1x16x16x4xbf16>
    %1 = vector.shape_cast %0 : vector<1x16x16x4xbf16> to vector<16x16x4xbf16>
    %2 = vector.shape_cast %1 : vector<16x16x4xbf16> to vector<256x4xbf16>
    %c0_3 = arith.constant 0 : index
    %c0_4 = arith.constant 0 : index
    %3 = vector.load %arg2[%c0_3, %c0_4] : memref<4x4xbf16, #tpu.memory_space<vmem>>, vector<4x4xbf16>
    %cst = arith.constant dense<0.000000e+00> : vector<256x4xf32>
    %4 = tpu.matmul %2, %3, %cst {dimension_numbers = #tpu.dot_dimension_numbers<[1], [0], [0], [1], [0, 0, 1, 1], [], []>} : vector<256x4xbf16>, vector<4x4xbf16>, vector<256x4xf32> -> vector<256x4xf32>
    %c0_5 = arith.constant 0 : index
    %c0_6 = arith.constant 0 : index
    %5 = vector.load %arg3[%c0_5, %c0_6] : memref<1x4xf32, #tpu.memory_space<vmem>>, vector<1x4xf32>
    %6 = vector.broadcast %5 : vector<1x4xf32> to vector<256x4xf32>
    %7 = arith.addf %4, %6 : vector<256x4xf32>
    %cst_7 = arith.constant 0.000000e+00 : f32
    %8 = vector.broadcast %cst_7 : f32 to vector<256x4xf32>
    %9 = arith.maximumf %7, %8 : vector<256x4xf32>
    %10 = arith.truncf %9 : vector<256x4xf32> to vector<256x4xbf16>
    %11 = vector.shape_cast %10 : vector<256x4xbf16> to vector<16x16x4xbf16>
    %cst_8 = arith.constant 0.000000e+00 : bf16
    %12 = vector.broadcast %cst_8 : bf16 to vector<16x1x4xbf16>
    %13 = tpu.concatenate %12, %11, %12 in 1 : vector<16x1x4xbf16>, vector<16x16x4xbf16>, vector<16x1x4xbf16> -> vector<16x18x4xbf16>
    %c0_9 = arith.constant 0 : index
    %c1 = arith.constant 1 : index
    %c0_10 = arith.constant 0 : index
    %c0_11 = arith.constant 0 : index
    %14 = vector.load %arg4[%c0_9, %c1, %c0_10, %c0_11] : memref<1x18x18x4xbf16, #tpu.memory_space<vmem>>, vector<1x16x18x4xbf16>
    %15 = vector.shape_cast %14 : vector<1x16x18x4xbf16> to vector<16x18x4xbf16>
    %16 = vector.shape_cast %13 : vector<16x18x4xbf16> to vector<1x16x18x4xbf16>
    tpu.vector_store %arg4[%c0_9, %c1, %c0_10, %c0_11], %16 {strides = array<i32>} : memref<1x18x18x4xbf16, #tpu.memory_space<vmem>>, vector<1x16x18x4xbf16>,
    %cst_12 = arith.constant 0.000000e+00 : bf16
    %17 = vector.broadcast %cst_12 : bf16 to vector<1x18x4xbf16>
    %c0_13 = arith.constant 0 : index
    %c0_14 = arith.constant 0 : index
    %c0_15 = arith.constant 0 : index
    %c0_16 = arith.constant 0 : index
    %18 = vector.load %arg4[%c0_13, %c0_14, %c0_15, %c0_16] : memref<1x18x18x4xbf16, #tpu.memory_space<vmem>>, vector<1x1x18x4xbf16>
    %19 = vector.shape_cast %18 : vector<1x1x18x4xbf16> to vector<1x18x4xbf16>
    %20 = vector.shape_cast %17 : vector<1x18x4xbf16> to vector<1x1x18x4xbf16>
    tpu.vector_store %arg4[%c0_13, %c0_14, %c0_15, %c0_16], %20 {strides = array<i32>} : memref<1x18x18x4xbf16, #tpu.memory_space<vmem>>, vector<1x1x18x4xbf16>,
    %c0_17 = arith.constant 0 : index
    %c17 = arith.constant 17 : index
    %c0_18 = arith.constant 0 : index
    %c0_19 = arith.constant 0 : index
    %21 = vector.load %arg4[%c0_17, %c17, %c0_18, %c0_19] : memref<1x18x18x4xbf16, #tpu.memory_space<vmem>>, vector<1x1x18x4xbf16>
    %22 = vector.shape_cast %21 : vector<1x1x18x4xbf16> to vector<1x18x4xbf16>
    %23 = vector.shape_cast %17 : vector<1x18x4xbf16> to vector<1x1x18x4xbf16>
    tpu.vector_store %arg4[%c0_17, %c17, %c0_18, %c0_19], %23 {strides = array<i32>} : memref<1x18x18x4xbf16, #tpu.memory_space<vmem>>, vector<1x1x18x4xbf16>,
    return
  }
  func.func @transform_0(%arg0: i32) -> (i32, i32, i32, i32) {
    %c0_i32 = arith.constant 0 : i32
    %c0_i32_0 = arith.constant 0 : i32
    %c0_i32_1 = arith.constant 0 : i32
    %c0_i32_2 = arith.constant 0 : i32
    return %arg0, %c0_i32, %c0_i32_0, %c0_i32_1 : i32, i32, i32, i32
  }
  func.func @transform_1(%arg0: i32) -> (i32, i32) {
    %c0_i32 = arith.constant 0 : i32
    %c0_i32_0 = arith.constant 0 : i32
    %c0_i32_1 = arith.constant 0 : i32
    return %c0_i32, %c0_i32_0 : i32, i32
  }
  func.func @transform_2(%arg0: i32) -> (i32, i32) {
    %c0_i32 = arith.constant 0 : i32
    %c0_i32_0 = arith.constant 0 : i32
    %c0_i32_1 = arith.constant 0 : i32
    return %c0_i32, %c0_i32_0 : i32, i32
  }
  func.func @transform_3(%arg0: i32) -> (i32, i32, i32, i32) {
    %c0_i32 = arith.constant 0 : i32
    %c0_i32_0 = arith.constant 0 : i32
    %c0_i32_1 = arith.constant 0 : i32
    %c0_i32_2 = arith.constant 0 : i32
    return %arg0, %c0_i32, %c0_i32_0, %c0_i32_1 : i32, i32, i32, i32
  }
}

module attributes {stable_mosaic.version = 11 : i64} {
  func.func @_conv3x3_kernel(%arg0: i32, %arg1: i32, %arg2: memref<1x18x18x4xbf16, #tpu.memory_space<vmem>>, %arg3: memref<3x3x4x4xbf16, #tpu.memory_space<vmem>>, %arg4: memref<1x4xf32, #tpu.memory_space<vmem>>, %arg5: memref<256x4xbf16, #tpu.memory_space<vmem>>) attributes {dimension_semantics = [#tpu.dimension_semantics<parallel>, #tpu.dimension_semantics<parallel>], iteration_bounds = array<i64: 2, 1>, scalar_prefetch = 0 : i64, scratch_operands = 0 : i64, tpu.core_type = #tpu.core_type<tc>, window_params = [{transform_indices = @transform_0, window_bounds = array<i64: 1, 18, 18, 4>}, {pipeline_mode = #tpu.pipeline_mode<synchronous>, transform_indices = @transform_1, window_bounds = array<i64: 3, 3, 4, 4>}, {pipeline_mode = #tpu.pipeline_mode<synchronous>, transform_indices = @transform_2, window_bounds = array<i64: 1, 4>}, {transform_indices = @transform_3, window_bounds = array<i64: 256, 4>}]} {
    %c16_i32 = arith.constant 16 : i32
    %0 = arith.muli %arg1, %c16_i32 : i32
    %c0_i32 = arith.constant 0 : i32
    %1 = arith.addi %0, %c0_i32 : i32
    %c0 = arith.constant 0 : index
    %2 = arith.index_cast %1 : i32 to index
    %c0_0 = arith.constant 0 : index
    %c0_1 = arith.constant 0 : index
    %3 = vector.load %arg2[%c0, %2, %c0_0, %c0_1] : memref<1x18x18x4xbf16, #tpu.memory_space<vmem>>, vector<1x16x16x4xbf16>
    %4 = vector.shape_cast %3 : vector<1x16x16x4xbf16> to vector<16x16x4xbf16>
    %5 = vector.shape_cast %4 : vector<16x16x4xbf16> to vector<256x4xbf16>
    %c0_2 = arith.constant 0 : index
    %c0_3 = arith.constant 0 : index
    %c0_4 = arith.constant 0 : index
    %c0_5 = arith.constant 0 : index
    %6 = vector.load %arg3[%c0_2, %c0_3, %c0_4, %c0_5] : memref<3x3x4x4xbf16, #tpu.memory_space<vmem>>, vector<1x1x4x4xbf16>
    %7 = vector.shape_cast %6 : vector<1x1x4x4xbf16> to vector<4x4xbf16>
    %cst = arith.constant dense<0.000000e+00> : vector<256x4xf32>
    %8 = tpu.matmul %5, %7, %cst {dimension_numbers = #tpu.dot_dimension_numbers<[1], [0], [0], [1], [0, 0, 1, 1], [], []>} : vector<256x4xbf16>, vector<4x4xbf16>, vector<256x4xf32> -> vector<256x4xf32>
    %c0_i32_6 = arith.constant 0 : i32
    %9 = arith.addi %0, %c0_i32_6 : i32
    %c0_7 = arith.constant 0 : index
    %10 = arith.index_cast %9 : i32 to index
    %c1 = arith.constant 1 : index
    %c0_8 = arith.constant 0 : index
    %11 = vector.load %arg2[%c0_7, %10, %c1, %c0_8] : memref<1x18x18x4xbf16, #tpu.memory_space<vmem>>, vector<1x16x16x4xbf16>
    %12 = vector.shape_cast %11 : vector<1x16x16x4xbf16> to vector<16x16x4xbf16>
    %13 = vector.shape_cast %12 : vector<16x16x4xbf16> to vector<256x4xbf16>
    %c0_9 = arith.constant 0 : index
    %c1_10 = arith.constant 1 : index
    %c0_11 = arith.constant 0 : index
    %c0_12 = arith.constant 0 : index
    %14 = vector.load %arg3[%c0_9, %c1_10, %c0_11, %c0_12] : memref<3x3x4x4xbf16, #tpu.memory_space<vmem>>, vector<1x1x4x4xbf16>
    %15 = vector.shape_cast %14 : vector<1x1x4x4xbf16> to vector<4x4xbf16>
    %cst_13 = arith.constant dense<0.000000e+00> : vector<256x4xf32>
    %16 = tpu.matmul %13, %15, %cst_13 {dimension_numbers = #tpu.dot_dimension_numbers<[1], [0], [0], [1], [0, 0, 1, 1], [], []>} : vector<256x4xbf16>, vector<4x4xbf16>, vector<256x4xf32> -> vector<256x4xf32>
    %17 = arith.addf %8, %16 : vector<256x4xf32>
    %c0_i32_14 = arith.constant 0 : i32
    %18 = arith.addi %0, %c0_i32_14 : i32
    %c0_15 = arith.constant 0 : index
    %19 = arith.index_cast %18 : i32 to index
    %c2 = arith.constant 2 : index
    %c0_16 = arith.constant 0 : index
    %20 = vector.load %arg2[%c0_15, %19, %c2, %c0_16] : memref<1x18x18x4xbf16, #tpu.memory_space<vmem>>, vector<1x16x16x4xbf16>
    %21 = vector.shape_cast %20 : vector<1x16x16x4xbf16> to vector<16x16x4xbf16>
    %22 = vector.shape_cast %21 : vector<16x16x4xbf16> to vector<256x4xbf16>
    %c0_17 = arith.constant 0 : index
    %c2_18 = arith.constant 2 : index
    %c0_19 = arith.constant 0 : index
    %c0_20 = arith.constant 0 : index
    %23 = vector.load %arg3[%c0_17, %c2_18, %c0_19, %c0_20] : memref<3x3x4x4xbf16, #tpu.memory_space<vmem>>, vector<1x1x4x4xbf16>
    %24 = vector.shape_cast %23 : vector<1x1x4x4xbf16> to vector<4x4xbf16>
    %cst_21 = arith.constant dense<0.000000e+00> : vector<256x4xf32>
    %25 = tpu.matmul %22, %24, %cst_21 {dimension_numbers = #tpu.dot_dimension_numbers<[1], [0], [0], [1], [0, 0, 1, 1], [], []>} : vector<256x4xbf16>, vector<4x4xbf16>, vector<256x4xf32> -> vector<256x4xf32>
    %26 = arith.addf %17, %25 : vector<256x4xf32>
    %c1_i32 = arith.constant 1 : i32
    %27 = arith.addi %0, %c1_i32 : i32
    %c0_22 = arith.constant 0 : index
    %28 = arith.index_cast %27 : i32 to index
    %c0_23 = arith.constant 0 : index
    %c0_24 = arith.constant 0 : index
    %29 = vector.load %arg2[%c0_22, %28, %c0_23, %c0_24] : memref<1x18x18x4xbf16, #tpu.memory_space<vmem>>, vector<1x16x16x4xbf16>
    %30 = vector.shape_cast %29 : vector<1x16x16x4xbf16> to vector<16x16x4xbf16>
    %31 = vector.shape_cast %30 : vector<16x16x4xbf16> to vector<256x4xbf16>
    %c1_25 = arith.constant 1 : index
    %c0_26 = arith.constant 0 : index
    %c0_27 = arith.constant 0 : index
    %c0_28 = arith.constant 0 : index
    %32 = vector.load %arg3[%c1_25, %c0_26, %c0_27, %c0_28] : memref<3x3x4x4xbf16, #tpu.memory_space<vmem>>, vector<1x1x4x4xbf16>
    %33 = vector.shape_cast %32 : vector<1x1x4x4xbf16> to vector<4x4xbf16>
    %cst_29 = arith.constant dense<0.000000e+00> : vector<256x4xf32>
    %34 = tpu.matmul %31, %33, %cst_29 {dimension_numbers = #tpu.dot_dimension_numbers<[1], [0], [0], [1], [0, 0, 1, 1], [], []>} : vector<256x4xbf16>, vector<4x4xbf16>, vector<256x4xf32> -> vector<256x4xf32>
    %35 = arith.addf %26, %34 : vector<256x4xf32>
    %c1_i32_30 = arith.constant 1 : i32
    %36 = arith.addi %0, %c1_i32_30 : i32
    %c0_31 = arith.constant 0 : index
    %37 = arith.index_cast %36 : i32 to index
    %c1_32 = arith.constant 1 : index
    %c0_33 = arith.constant 0 : index
    %38 = vector.load %arg2[%c0_31, %37, %c1_32, %c0_33] : memref<1x18x18x4xbf16, #tpu.memory_space<vmem>>, vector<1x16x16x4xbf16>
    %39 = vector.shape_cast %38 : vector<1x16x16x4xbf16> to vector<16x16x4xbf16>
    %40 = vector.shape_cast %39 : vector<16x16x4xbf16> to vector<256x4xbf16>
    %c1_34 = arith.constant 1 : index
    %c1_35 = arith.constant 1 : index
    %c0_36 = arith.constant 0 : index
    %c0_37 = arith.constant 0 : index
    %41 = vector.load %arg3[%c1_34, %c1_35, %c0_36, %c0_37] : memref<3x3x4x4xbf16, #tpu.memory_space<vmem>>, vector<1x1x4x4xbf16>
    %42 = vector.shape_cast %41 : vector<1x1x4x4xbf16> to vector<4x4xbf16>
    %cst_38 = arith.constant dense<0.000000e+00> : vector<256x4xf32>
    %43 = tpu.matmul %40, %42, %cst_38 {dimension_numbers = #tpu.dot_dimension_numbers<[1], [0], [0], [1], [0, 0, 1, 1], [], []>} : vector<256x4xbf16>, vector<4x4xbf16>, vector<256x4xf32> -> vector<256x4xf32>
    %44 = arith.addf %35, %43 : vector<256x4xf32>
    %c1_i32_39 = arith.constant 1 : i32
    %45 = arith.addi %0, %c1_i32_39 : i32
    %c0_40 = arith.constant 0 : index
    %46 = arith.index_cast %45 : i32 to index
    %c2_41 = arith.constant 2 : index
    %c0_42 = arith.constant 0 : index
    %47 = vector.load %arg2[%c0_40, %46, %c2_41, %c0_42] : memref<1x18x18x4xbf16, #tpu.memory_space<vmem>>, vector<1x16x16x4xbf16>
    %48 = vector.shape_cast %47 : vector<1x16x16x4xbf16> to vector<16x16x4xbf16>
    %49 = vector.shape_cast %48 : vector<16x16x4xbf16> to vector<256x4xbf16>
    %c1_43 = arith.constant 1 : index
    %c2_44 = arith.constant 2 : index
    %c0_45 = arith.constant 0 : index
    %c0_46 = arith.constant 0 : index
    %50 = vector.load %arg3[%c1_43, %c2_44, %c0_45, %c0_46] : memref<3x3x4x4xbf16, #tpu.memory_space<vmem>>, vector<1x1x4x4xbf16>
    %51 = vector.shape_cast %50 : vector<1x1x4x4xbf16> to vector<4x4xbf16>
    %cst_47 = arith.constant dense<0.000000e+00> : vector<256x4xf32>
    %52 = tpu.matmul %49, %51, %cst_47 {dimension_numbers = #tpu.dot_dimension_numbers<[1], [0], [0], [1], [0, 0, 1, 1], [], []>} : vector<256x4xbf16>, vector<4x4xbf16>, vector<256x4xf32> -> vector<256x4xf32>
    %53 = arith.addf %44, %52 : vector<256x4xf32>
    %c2_i32 = arith.constant 2 : i32
    %54 = arith.addi %0, %c2_i32 : i32
    %c0_48 = arith.constant 0 : index
    %55 = arith.index_cast %54 : i32 to index
    %c0_49 = arith.constant 0 : index
    %c0_50 = arith.constant 0 : index
    %56 = vector.load %arg2[%c0_48, %55, %c0_49, %c0_50] : memref<1x18x18x4xbf16, #tpu.memory_space<vmem>>, vector<1x16x16x4xbf16>
    %57 = vector.shape_cast %56 : vector<1x16x16x4xbf16> to vector<16x16x4xbf16>
    %58 = vector.shape_cast %57 : vector<16x16x4xbf16> to vector<256x4xbf16>
    %c2_51 = arith.constant 2 : index
    %c0_52 = arith.constant 0 : index
    %c0_53 = arith.constant 0 : index
    %c0_54 = arith.constant 0 : index
    %59 = vector.load %arg3[%c2_51, %c0_52, %c0_53, %c0_54] : memref<3x3x4x4xbf16, #tpu.memory_space<vmem>>, vector<1x1x4x4xbf16>
    %60 = vector.shape_cast %59 : vector<1x1x4x4xbf16> to vector<4x4xbf16>
    %cst_55 = arith.constant dense<0.000000e+00> : vector<256x4xf32>
    %61 = tpu.matmul %58, %60, %cst_55 {dimension_numbers = #tpu.dot_dimension_numbers<[1], [0], [0], [1], [0, 0, 1, 1], [], []>} : vector<256x4xbf16>, vector<4x4xbf16>, vector<256x4xf32> -> vector<256x4xf32>
    %62 = arith.addf %53, %61 : vector<256x4xf32>
    %c2_i32_56 = arith.constant 2 : i32
    %63 = arith.addi %0, %c2_i32_56 : i32
    %c0_57 = arith.constant 0 : index
    %64 = arith.index_cast %63 : i32 to index
    %c1_58 = arith.constant 1 : index
    %c0_59 = arith.constant 0 : index
    %65 = vector.load %arg2[%c0_57, %64, %c1_58, %c0_59] : memref<1x18x18x4xbf16, #tpu.memory_space<vmem>>, vector<1x16x16x4xbf16>
    %66 = vector.shape_cast %65 : vector<1x16x16x4xbf16> to vector<16x16x4xbf16>
    %67 = vector.shape_cast %66 : vector<16x16x4xbf16> to vector<256x4xbf16>
    %c2_60 = arith.constant 2 : index
    %c1_61 = arith.constant 1 : index
    %c0_62 = arith.constant 0 : index
    %c0_63 = arith.constant 0 : index
    %68 = vector.load %arg3[%c2_60, %c1_61, %c0_62, %c0_63] : memref<3x3x4x4xbf16, #tpu.memory_space<vmem>>, vector<1x1x4x4xbf16>
    %69 = vector.shape_cast %68 : vector<1x1x4x4xbf16> to vector<4x4xbf16>
    %cst_64 = arith.constant dense<0.000000e+00> : vector<256x4xf32>
    %70 = tpu.matmul %67, %69, %cst_64 {dimension_numbers = #tpu.dot_dimension_numbers<[1], [0], [0], [1], [0, 0, 1, 1], [], []>} : vector<256x4xbf16>, vector<4x4xbf16>, vector<256x4xf32> -> vector<256x4xf32>
    %71 = arith.addf %62, %70 : vector<256x4xf32>
    %c2_i32_65 = arith.constant 2 : i32
    %72 = arith.addi %0, %c2_i32_65 : i32
    %c0_66 = arith.constant 0 : index
    %73 = arith.index_cast %72 : i32 to index
    %c2_67 = arith.constant 2 : index
    %c0_68 = arith.constant 0 : index
    %74 = vector.load %arg2[%c0_66, %73, %c2_67, %c0_68] : memref<1x18x18x4xbf16, #tpu.memory_space<vmem>>, vector<1x16x16x4xbf16>
    %75 = vector.shape_cast %74 : vector<1x16x16x4xbf16> to vector<16x16x4xbf16>
    %76 = vector.shape_cast %75 : vector<16x16x4xbf16> to vector<256x4xbf16>
    %c2_69 = arith.constant 2 : index
    %c2_70 = arith.constant 2 : index
    %c0_71 = arith.constant 0 : index
    %c0_72 = arith.constant 0 : index
    %77 = vector.load %arg3[%c2_69, %c2_70, %c0_71, %c0_72] : memref<3x3x4x4xbf16, #tpu.memory_space<vmem>>, vector<1x1x4x4xbf16>
    %78 = vector.shape_cast %77 : vector<1x1x4x4xbf16> to vector<4x4xbf16>
    %cst_73 = arith.constant dense<0.000000e+00> : vector<256x4xf32>
    %79 = tpu.matmul %76, %78, %cst_73 {dimension_numbers = #tpu.dot_dimension_numbers<[1], [0], [0], [1], [0, 0, 1, 1], [], []>} : vector<256x4xbf16>, vector<4x4xbf16>, vector<256x4xf32> -> vector<256x4xf32>
    %80 = arith.addf %71, %79 : vector<256x4xf32>
    %c0_74 = arith.constant 0 : index
    %c0_75 = arith.constant 0 : index
    %81 = vector.load %arg4[%c0_74, %c0_75] : memref<1x4xf32, #tpu.memory_space<vmem>>, vector<1x4xf32>
    %82 = vector.broadcast %81 : vector<1x4xf32> to vector<256x4xf32>
    %83 = arith.addf %80, %82 : vector<256x4xf32>
    %cst_76 = arith.constant 0.000000e+00 : f32
    %84 = vector.broadcast %cst_76 : f32 to vector<256x4xf32>
    %85 = arith.maximumf %83, %84 : vector<256x4xf32>
    %86 = arith.truncf %85 : vector<256x4xf32> to vector<256x4xbf16>
    %c0_77 = arith.constant 0 : index
    %c0_78 = arith.constant 0 : index
    %87 = vector.load %arg5[%c0_77, %c0_78] : memref<256x4xbf16, #tpu.memory_space<vmem>>, vector<256x4xbf16>
    tpu.vector_store %arg5[%c0_77, %c0_78], %86 {strides = array<i32>} : memref<256x4xbf16, #tpu.memory_space<vmem>>, vector<256x4xbf16>,
    return
  }
  func.func @transform_0(%arg0: i32, %arg1: i32) -> (i32, i32, i32, i32) {
    %c0_i32 = arith.constant 0 : i32
    %c0_i32_0 = arith.constant 0 : i32
    %c0_i32_1 = arith.constant 0 : i32
    %c0_i32_2 = arith.constant 0 : i32
    return %arg0, %c0_i32, %c0_i32_0, %c0_i32_1 : i32, i32, i32, i32
  }
  func.func @transform_1(%arg0: i32, %arg1: i32) -> (i32, i32, i32, i32) {
    %c0_i32 = arith.constant 0 : i32
    %c0_i32_0 = arith.constant 0 : i32
    %c0_i32_1 = arith.constant 0 : i32
    %c0_i32_2 = arith.constant 0 : i32
    %c0_i32_3 = arith.constant 0 : i32
    return %c0_i32, %c0_i32_0, %c0_i32_1, %c0_i32_2 : i32, i32, i32, i32
  }
  func.func @transform_2(%arg0: i32, %arg1: i32) -> (i32, i32) {
    %c0_i32 = arith.constant 0 : i32
    %c0_i32_0 = arith.constant 0 : i32
    %c0_i32_1 = arith.constant 0 : i32
    return %c0_i32, %c0_i32_0 : i32, i32
  }
  func.func @transform_3(%arg0: i32, %arg1: i32) -> (i32, i32) {
    %c1_i32 = arith.constant 1 : i32
    %0 = arith.muli %arg0, %c1_i32 : i32
    %1 = arith.addi %0, %arg1 : i32
    %c0_i32 = arith.constant 0 : i32
    %c0_i32_0 = arith.constant 0 : i32
    return %1, %c0_i32 : i32, i32
  }
}

module attributes {stable_mosaic.version = 11 : i64} {
  func.func @_final_proj_kernel(%arg0: i32, %arg1: i32, %arg2: memref<512x4xbf16, #tpu.memory_space<vmem>>, %arg3: memref<4x16xbf16, #tpu.memory_space<vmem>>, %arg4: memref<512x4xbf16, #tpu.memory_space<vmem>>, %arg5: memref<4x16xbf16, #tpu.memory_space<vmem>>, %arg6: memref<1x16xf32, #tpu.memory_space<vmem>>, %arg7: memref<512x16xf32, #tpu.memory_space<vmem>>) attributes {dimension_semantics = [#tpu.dimension_semantics<parallel>, #tpu.dimension_semantics<parallel>], iteration_bounds = array<i64: 1, 1>, scalar_prefetch = 0 : i64, scratch_operands = 0 : i64, tpu.core_type = #tpu.core_type<tc>, window_params = [{transform_indices = @transform_0, window_bounds = array<i64: 512, 4>}, {transform_indices = @transform_1, window_bounds = array<i64: 4, 16>}, {transform_indices = @transform_2, window_bounds = array<i64: 512, 4>}, {transform_indices = @transform_3, window_bounds = array<i64: 4, 16>}, {transform_indices = @transform_4, window_bounds = array<i64: 1, 16>}, {transform_indices = @transform_5, window_bounds = array<i64: 512, 16>}]} {
    %c0 = arith.constant 0 : index
    %c0_0 = arith.constant 0 : index
    %0 = vector.load %arg2[%c0, %c0_0] : memref<512x4xbf16, #tpu.memory_space<vmem>>, vector<512x4xbf16>
    %c0_1 = arith.constant 0 : index
    %c0_2 = arith.constant 0 : index
    %1 = vector.load %arg3[%c0_1, %c0_2] : memref<4x16xbf16, #tpu.memory_space<vmem>>, vector<4x16xbf16>
    %cst = arith.constant dense<0.000000e+00> : vector<512x16xf32>
    %2 = tpu.matmul %0, %1, %cst {dimension_numbers = #tpu.dot_dimension_numbers<[1], [0], [0], [1], [0, 0, 1, 1], [], []>} : vector<512x4xbf16>, vector<4x16xbf16>, vector<512x16xf32> -> vector<512x16xf32>
    %c0_3 = arith.constant 0 : index
    %c0_4 = arith.constant 0 : index
    %3 = vector.load %arg4[%c0_3, %c0_4] : memref<512x4xbf16, #tpu.memory_space<vmem>>, vector<512x4xbf16>
    %c0_5 = arith.constant 0 : index
    %c0_6 = arith.constant 0 : index
    %4 = vector.load %arg5[%c0_5, %c0_6] : memref<4x16xbf16, #tpu.memory_space<vmem>>, vector<4x16xbf16>
    %cst_7 = arith.constant dense<0.000000e+00> : vector<512x16xf32>
    %5 = tpu.matmul %3, %4, %cst_7 {dimension_numbers = #tpu.dot_dimension_numbers<[1], [0], [0], [1], [0, 0, 1, 1], [], []>} : vector<512x4xbf16>, vector<4x16xbf16>, vector<512x16xf32> -> vector<512x16xf32>
    %6 = arith.addf %2, %5 : vector<512x16xf32>
    %c0_8 = arith.constant 0 : index
    %c0_9 = arith.constant 0 : index
    %7 = vector.load %arg6[%c0_8, %c0_9] : memref<1x16xf32, #tpu.memory_space<vmem>>, vector<1x16xf32>
    %8 = vector.broadcast %7 : vector<1x16xf32> to vector<512x16xf32>
    %9 = arith.addf %6, %8 : vector<512x16xf32>
    %cst_10 = arith.constant 0.000000e+00 : f32
    %10 = vector.broadcast %cst_10 : f32 to vector<512x16xf32>
    %11 = arith.maximumf %9, %10 : vector<512x16xf32>
    %c0_11 = arith.constant 0 : index
    %c0_12 = arith.constant 0 : index
    %12 = vector.load %arg7[%c0_11, %c0_12] : memref<512x16xf32, #tpu.memory_space<vmem>>, vector<512x16xf32>
    tpu.vector_store %arg7[%c0_11, %c0_12], %11 {strides = array<i32>} : memref<512x16xf32, #tpu.memory_space<vmem>>, vector<512x16xf32>,
    return
  }
  func.func @transform_0(%arg0: i32, %arg1: i32) -> (i32, i32) {
    %c0_i32 = arith.constant 0 : i32
    %c0_i32_0 = arith.constant 0 : i32
    return %arg0, %c0_i32 : i32, i32
  }
  func.func @transform_1(%arg0: i32, %arg1: i32) -> (i32, i32) {
    %c0_i32 = arith.constant 0 : i32
    %c0_i32_0 = arith.constant 0 : i32
    return %c0_i32, %arg1 : i32, i32
  }
  func.func @transform_2(%arg0: i32, %arg1: i32) -> (i32, i32) {
    %c0_i32 = arith.constant 0 : i32
    %c0_i32_0 = arith.constant 0 : i32
    return %arg0, %c0_i32 : i32, i32
  }
  func.func @transform_3(%arg0: i32, %arg1: i32) -> (i32, i32) {
    %c0_i32 = arith.constant 0 : i32
    %c0_i32_0 = arith.constant 0 : i32
    return %c0_i32, %arg1 : i32, i32
  }
  func.func @transform_4(%arg0: i32, %arg1: i32) -> (i32, i32) {
    %c0_i32 = arith.constant 0 : i32
    %c0_i32_0 = arith.constant 0 : i32
    return %c0_i32, %arg1 : i32, i32
  }
  func.func @transform_5(%arg0: i32, %arg1: i32) -> (i32, i32) {
    %c0_i32 = arith.constant 0 : i32
    return %arg0, %arg1 : i32, i32
  }
}

</mosaic_0001>

<llo_original>
// kernel: bottleneck_forward.3
$region0: #{bottleneck_forward.3}
  #allocation0 [shape = 'u32[]', space=smem, size = 0x4, offset = 0x4, fixed_abs, tag = 'smem constant byte address 0x4 - core index']
  #allocation1 [shape = 'u32[72,128]{1,0:T(1,128)}', space=vmem, size = 0x9000, scoped, tag = 'internal scratch']
  %s0 = inlined_call_operand.vmem [shape: bf16[2,16,16,4], index: 0, kind: input, shape index: {}]
  %s1 = inlined_call_operand.vmem [shape: bf16[4,4], index: 1, kind: input, shape index: {}]
  %s2 = inlined_call_operand.vmem [shape: f32[1,4], index: 2, kind: input, shape index: {}]
  %s3 = inlined_call_operand.vmem [shape: bf16[2,18,18,4], index: 3, kind: output, shape index: {}]
  %s4 = sld [smem:[#allocation0]]
  $region45: #{bottleneck_forward.3} parent=0
    _
  %s6 = ssub.s32 1, %s4
  %s7 = scalar_select 0, %s6, %s4
  loop: start=0, step=1, limit=4
  $region2: #{bottleneck_forward.3} parent=0 // loop_pre_header
    _
  $region3: #{bottleneck_forward.3} parent=0 // loop_header
    %s9 = sphi 0, %s13
    %p10 = scmp.ge.s32.totalorder %s9, 4
    %s19 = sphi 0, %s21
    %s22 = sphi 0, %s19
    %s23 = sphi 0, %s22
    %s39 = sphi 0, %s23
    %s43 = sphi 0, %s43
    %s45 = sphi 0, %s43
    %s46 = sphi 0, %s45
    %s60 = sphi 0, %s46
    %s64 = sphi 0, %s64
    %s66 = sphi 0, %s64
    %s67 = sphi 0, %s66
    %s81 = sphi 0, %s67
    %s87 = sphi 0, %s89
    %s90 = sphi 0, %s87
    %s91 = sphi 0, %s90
    %s107 = sphi 0, %s91
  $region4: #{bottleneck_forward.3} parent=0 // loop_header_branch
    %12 = sbr.rel (%p10) target = $region8
  $region5: #{bottleneck_forward.3} parent=0 // loop_body
    %s14 = ssub.s32 %s9, 1
    %s15 = ssub.s32 %s9, 2
    %s16 = sadd.s32 %s9, 1
    %s17 = ssub.s32 %s9, %s16
    %p18 = scmp.eq.s32.totalorder %s17, 0
    %s20 = sadd.s32 %s19, 1
    %s21 = scalar_select %p18, %s19, %s20
    %p24 = pneg %p18
    %p25 = scmp.eq.s32.totalorder %s9, 1
    %p26 = por %p24, %p25
    %p27 = scmp.ne.s32.totalorder %s19, %s22
    %p28 = scmp.eq.s32.totalorder %s9, 0
    %p29 = por %p27, %p28
    %p30 = scmp.ne.s32.totalorder %s19, %s22
    %p31 = scmp.eq.s32.totalorder %s14, 1
    %p32 = por %p30, %p31
    %p33 = scmp.ne.s32.totalorder %s22, %s23
    %p34 = scmp.eq.s32.totalorder %s14, 0
    %p35 = por %p33, %p34
    %p36 = scmp.ne.s32.totalorder %s22, %s23
    %p37 = scmp.eq.s32.totalorder %s15, 1
    %p38 = por %p36, %p37
    %p40 = scmp.ne.s32.totalorder %s23, %s39
    %p41 = scmp.eq.s32.totalorder %s15, 0
    %p42 = por %p40, %p41
    %s44 = sadd.s32 %s43, 1
    %p47 = scmp.eq.s32.totalorder %s9, 1
    %p48 = scmp.ne.s32.totalorder %s43, %s45
    %p49 = scmp.eq.s32.totalorder %s9, 0
    %p50 = por %p48, %p49
    %p51 = scmp.ne.s32.totalorder %s43, %s45
    %p52 = scmp.eq.s32.totalorder %s14, 1
    %p53 = por %p51, %p52
    %p54 = scmp.ne.s32.totalorder %s45, %s46
    %p55 = scmp.eq.s32.totalorder %s14, 0
    %p56 = por %p54, %p55
    %p57 = scmp.ne.s32.totalorder %s45, %s46
    %p58 = scmp.eq.s32.totalorder %s15, 1
    %p59 = por %p57, %p58
    %p61 = scmp.ne.s32.totalorder %s46, %s60
    %p62 = scmp.eq.s32.totalorder %s15, 0
    %p63 = por %p61, %p62
    %s65 = sadd.s32 %s64, 1
    %p68 = scmp.eq.s32.totalorder %s9, 1
    %p69 = scmp.ne.s32.totalorder %s64, %s66
    %p70 = scmp.eq.s32.totalorder %s9, 0
    %p71 = por %p69, %p70
    %p72 = scmp.ne.s32.totalorder %s64, %s66
    %p73 = scmp.eq.s32.totalorder %s14, 1
    %p74 = por %p72, %p73
    %p75 = scmp.ne.s32.totalorder %s66, %s67
    %p76 = scmp.eq.s32.totalorder %s14, 0
    %p77 = por %p75, %p76
    %p78 = scmp.ne.s32.totalorder %s66, %s67
    %p79 = scmp.eq.s32.totalorder %s15, 1
    %p80 = por %p78, %p79
    %p82 = scmp.ne.s32.totalorder %s67, %s81
    %p83 = scmp.eq.s32.totalorder %s15, 0
    %p84 = por %p82, %p83
    %s85 = ssub.s32 %s9, %s16
    %p86 = scmp.eq.s32.totalorder %s85, 0
    %s88 = sadd.s32 %s87, 1
    %s89 = scalar_select %p86, %s87, %s88
    %p92 = pneg %p86
    %p93 = scmp.eq.s32.totalorder %s9, 1
    %p94 = por %p92, %p93
    %p95 = scmp.ne.s32.totalorder %s87, %s90
    %p96 = scmp.eq.s32.totalorder %s9, 0
    %p97 = por %p95, %p96
    %p98 = scmp.ne.s32.totalorder %s87, %s90
    %p99 = scmp.eq.s32.totalorder %s14, 1
    %p100 = por %p98, %p99
    %p101 = scmp.ne.s32.totalorder %s90, %s91
    %p102 = scmp.eq.s32.totalorder %s14, 0
    %p103 = por %p101, %p102
    %p104 = scmp.ne.s32.totalorder %s90, %s91
    %p105 = scmp.eq.s32.totalorder %s15, 1
    %p106 = por %p104, %p105
    %p108 = scmp.ne.s32.totalorder %s91, %s107
    %p109 = scmp.eq.s32.totalorder %s15, 0
    %p110 = por %p108, %p109
    %p111 = scmp.le.s32.totalorder 1, %s9
    %p112 = scmp.lt.s32.totalorder %s9, 3
    %p113 = pnand %p111, %p112
    %p114 = pneg %p113
    // Predicated region
    $region9: #{bottleneck_forward.3} parent=5 // pred_check
      _
    $region10: #{bottleneck_forward.3} parent=5 // pred_check_branch
      %116 = sbr.rel (%p113) target = $region12
    $region11: #{bottleneck_forward.3} parent=5 // pred_region
      %s117 = ssub.s32 %s9, 1
      // Predicated region
      $region13: #{bottleneck_forward.3} parent=11 // pred_check
        %p118 = pneg %p56
      $region14: #{bottleneck_forward.3} parent=11 // pred_check_branch
        %120 = sbr.rel (%p118) target = $region16
      $region15: #{bottleneck_forward.3} parent=11 // pred_region
        _
      $region16: #{bottleneck_forward.3} parent=11 // pred_fallthru
        _
      // Predicated region
      $region17: #{bottleneck_forward.3} parent=11 // pred_check
        %p121 = pneg %p77
      $region18: #{bottleneck_forward.3} parent=11 // pred_check_branch
        %123 = sbr.rel (%p121) target = $region20
      $region19: #{bottleneck_forward.3} parent=11 // pred_region
        _
      $region20: #{bottleneck_forward.3} parent=11 // pred_fallthru
        _
    $region12: #{bottleneck_forward.3} parent=5 // pred_fallthru
      _
    %p124 = scmp.lt.s32.totalorder %s9, 2
    // Predicated region
    $region21: #{bottleneck_forward.3} parent=5 // pred_check
      %p125 = pneg %p124
    $region22: #{bottleneck_forward.3} parent=5 // pred_check_branch
      %127 = sbr.rel (%p125) target = $region24
    $region23: #{bottleneck_forward.3} parent=5 // pred_region
      // Predicated region
      $region25: #{bottleneck_forward.3} parent=23 // pred_check
        %p128 = pneg %p29
      $region26: #{bottleneck_forward.3} parent=23 // pred_check_branch
        %130 = sbr.rel (%p128) target = $region28
      $region27: #{bottleneck_forward.3} parent=23 // pred_region
        %p131 = scmp.lt.s32.totalorder %s9, 1
        %s132 = scalar_select %p131, %s9, 1
        %s133 = smul.addr %s132, 32
        %s134 = smul.addr %s133, 4
        %s135 = scalar_lea.vmem %s0, %s134
      $region28: #{bottleneck_forward.3} parent=23 // pred_fallthru
        _
    $region24: #{bottleneck_forward.3} parent=5 // pred_fallthru
      _
    %p136 = scmp.le.s32.totalorder 1, %s9
    %p137 = scmp.lt.s32.totalorder %s9, 3
    %p138 = pnand %p136, %p137
    %p139 = pneg %p138
    // Predicated region
    $region29: #{bottleneck_forward.3} parent=5 // pred_check
      _
    $region30: #{bottleneck_forward.3} parent=5 // pred_check_branch
      %141 = sbr.rel (%p138) target = $region32
    $region31: #{bottleneck_forward.3} parent=5 // pred_region
      %s142 = ssub.s32 %s9, 1
      %p143 = scmp.lt.s32.totalorder %s14, 1
      %s144 = scalar_select %p143, %s14, 1
      %s145 = smul.addr %s144, 32
      %s146 = smul.addr %s145, 4
      %s147 = scalar_lea.vmem %s0, %s146
      %p148 = pneg %p35
      %p149 = pneg %p32
      %p150 = pneg %p56
      %p151 = pneg %p53
      %p152 = pneg %p77
      %p153 = pneg %p74
      %p154 = pneg %p103
      %p155 = pneg %p100
      %p156 = scmp.lt.s32.totalorder %s14, 1
      %s157 = scalar_select %p156, %s14, 1
      %s158 = smul.addr %s157, 54
      %s159 = smul.addr %s158, 4
      %s160 = scalar_lea.vmem %s3, %s159
      %p161 = scmp.lt.s32.totalorder %s14, 1
      %s162 = scalar_select %p161, %s14, 1
      %s163 = smul.addr %s162, 32
      %s164 = smul.addr %s163, 4
      %s165 = scalar_lea.vmem %s0, %s164
      %p166 = scmp.lt.s32.totalorder %s14, 1
      %s167 = scalar_select %p166, %s14, 1
      %s168 = smul.addr %s167, 54
      %s169 = smul.addr %s168, 4
      %s170 = scalar_lea.vmem %s3, %s169
      %v172 = vld [vmem:[%s165] sm:$0xf]
      %v173 = vld [vmem:[%s165 + $0x4] sm:$0xf]
      %v174 = vld [vmem:[%s165 + $0x8] sm:$0xf]
      %v175 = vld [vmem:[%s165 + $0xc] sm:$0xf]
      %v176 = vld [vmem:[%s165 + $0x10] sm:$0xf]
      %v177 = vld [vmem:[%s165 + $0x14] sm:$0xf]
      %v178 = vld [vmem:[%s165 + $0x18] sm:$0xf]
      %v179 = vld [vmem:[%s165 + $0x1c] sm:$0xf]
      %v180 = vld [vmem:[%s165 + $0x20] sm:$0xf]
      %v181 = vld [vmem:[%s165 + $0x24] sm:$0xf]
      %v182 = vld [vmem:[%s165 + $0x28] sm:$0xf]
      %v183 = vld [vmem:[%s165 + $0x2c] sm:$0xf]
      %v184 = vld [vmem:[%s165 + $0x30] sm:$0xf]
      %v185 = vld [vmem:[%s165 + $0x34] sm:$0xf]
      %v186 = vld [vmem:[%s165 + $0x38] sm:$0xf]
      %v187 = vld [vmem:[%s165 + $0x3c] sm:$0xf]
      %v188 = vld [vmem:[%s165 + $0x40] sm:$0xf]
      %v189 = vld [vmem:[%s165 + $0x44] sm:$0xf]
      %v190 = vld [vmem:[%s165 + $0x48] sm:$0xf]
      %v191 = vld [vmem:[%s165 + $0x4c] sm:$0xf]
      %v192 = vld [vmem:[%s165 + $0x50] sm:$0xf]
      %v193 = vld [vmem:[%s165 + $0x54] sm:$0xf]
      %v194 = vld [vmem:[%s165 + $0x58] sm:$0xf]
      %v195 = vld [vmem:[%s165 + $0x5c] sm:$0xf]
      %v196 = vld [vmem:[%s165 + $0x60] sm:$0xf]
      %v197 = vld [vmem:[%s165 + $0x64] sm:$0xf]
      %v198 = vld [vmem:[%s165 + $0x68] sm:$0xf]
      %v199 = vld [vmem:[%s165 + $0x6c] sm:$0xf]
      %v200 = vld [vmem:[%s165 + $0x70] sm:$0xf]
      %v201 = vld [vmem:[%s165 + $0x74] sm:$0xf]
      %v202 = vld [vmem:[%s165 + $0x78] sm:$0xf]
      %v203 = vld [vmem:[%s165 + $0x7c] sm:$0xf]
      %v204 = vld [vmem:[%s1] sm:$0x3]
      %v205 = vld [vmem:[%s2] sm:$0x1]
      %v207 = vperm.slane %v205, 0
      %v241 = vunpack.c.l.b16 %v172
      %v242 = vunpack.c.l.b16 %v173
      %v243 = vunpack.c.l.b16 %v174
      %v244 = vunpack.c.l.b16 %v175
      %v245 = vunpack.c.l.b16 %v176
      %v246 = vunpack.c.l.b16 %v177
      %v247 = vunpack.c.l.b16 %v178
      %v248 = vunpack.c.l.b16 %v179
      %v249 = vunpack.c.l.b16 %v180
      %v250 = vunpack.c.l.b16 %v181
      %v251 = vunpack.c.l.b16 %v182
      %v252 = vunpack.c.l.b16 %v183
      %v253 = vunpack.c.l.b16 %v184
      %v254 = vunpack.c.l.b16 %v185
      %v255 = vunpack.c.l.b16 %v186
      %v256 = vunpack.c.l.b16 %v187
      %v257 = vunpack.c.l.b16 %v188
      %v258 = vunpack.c.l.b16 %v189
      %v259 = vunpack.c.l.b16 %v190
      %v260 = vunpack.c.l.b16 %v191
      %v261 = vunpack.c.l.b16 %v192
      %v262 = vunpack.c.l.b16 %v193
      %v263 = vunpack.c.l.b16 %v194
      %v264 = vunpack.c.l.b16 %v195
      %v265 = vunpack.c.l.b16 %v196
      %v266 = vunpack.c.l.b16 %v197
      %v267 = vunpack.c.l.b16 %v198
      %v268 = vunpack.c.l.b16 %v199
      %v269 = vunpack.c.l.b16 %v200
      %v270 = vunpack.c.l.b16 %v201
      %v271 = vunpack.c.l.b16 %v202
      %v272 = vunpack.c.l.b16 %v203
      %v273 = vpack.c.b16 %v242, %v241
      %v274 = vpack.c.b16 %v244, %v243
      %v275 = vpack.c.b16 %v246, %v245
      %v276 = vpack.c.b16 %v248, %v247
      %v277 = vpack.c.b16 %v250, %v249
      %v278 = vpack.c.b16 %v252, %v251
      %v279 = vpack.c.b16 %v254, %v253
      %v280 = vpack.c.b16 %v256, %v255
      %v281 = vpack.c.b16 %v258, %v257
      %v282 = vpack.c.b16 %v260, %v259
      %v283 = vpack.c.b16 %v262, %v261
      %v284 = vpack.c.b16 %v264, %v263
      %v285 = vpack.c.b16 %v266, %v265
      %v286 = vpack.c.b16 %v268, %v267
      %v287 = vpack.c.b16 %v270, %v269
      %v288 = vpack.c.b16 %v272, %v271
      %vm289 = vcmask 31744
      %v291 = vsel %vm289, %v273, 0
      %v294 = vsel %vm289, %v274, 0
      %v297 = vsel %vm289, %v275, 0
      %v300 = vsel %vm289, %v276, 0
      %v303 = vsel %vm289, %v277, 0
      %v306 = vsel %vm289, %v278, 0
      %v309 = vsel %vm289, %v279, 0
      %v312 = vsel %vm289, %v280, 0
      %v315 = vsel %vm289, %v281, 0
      %v318 = vsel %vm289, %v282, 0
      %v321 = vsel %vm289, %v283, 0
      %v324 = vsel %vm289, %v284, 0
      %v327 = vsel %vm289, %v285, 0
      %v330 = vsel %vm289, %v286, 0
      %v333 = vsel %vm289, %v287, 0
      %v336 = vsel %vm289, %v288, 0
      %vm338 = vcmask 1041408
      %v340 = vsel %vm338, %v204, 0
      %342 = vmatpush.bf16.msra.mxu0 0
      %343 = vmatpush.bf16.msra.mxu0 0
      %344 = vmatpush.bf16.msra.mxu0 0
      %345 = vmatpush.bf16.msra.mxu0 0
      %346 = vmatpush.bf16.msra.mxu0 0
      %347 = vmatpush.bf16.msra.mxu0 0
      %348 = vmatpush.bf16.msra.mxu0 0
      %349 = vmatpush.bf16.msra.mxu0 %v340
      %350 = vmatmul.bf16.gmra.mxu0 %v291
      %v351 = vpop.f32.mrf.mxu0
      %v352 = vadd.f32 %v207, %v351
      %v353 = vpop.f32.mrf.mxu0
      %v354 = vadd.f32 %v207, %v353
      %355 = vmatmul.bf16.gmra.mxu0 %v294
      %v356 = vpop.f32.mrf.mxu0
      %v357 = vadd.f32 %v207, %v356
      %v358 = vpop.f32.mrf.mxu0
      %v359 = vadd.f32 %v207, %v358
      %360 = vmatmul.bf16.gmra.mxu0 %v297
      %v361 = vpop.f32.mrf.mxu0
      %v362 = vadd.f32 %v207, %v361
      %v363 = vpop.f32.mrf.mxu0
      %v364 = vadd.f32 %v207, %v363
      %365 = vmatmul.bf16.gmra.mxu0 %v300
      %v366 = vpop.f32.mrf.mxu0
      %v367 = vadd.f32 %v207, %v366
      %v368 = vpop.f32.mrf.mxu0
      %v369 = vadd.f32 %v207, %v368
      %370 = vmatmul.bf16.gmra.mxu0 %v303
      %v371 = vpop.f32.mrf.mxu0
      %v372 = vadd.f32 %v207, %v371
      %v373 = vpop.f32.mrf.mxu0
      %v374 = vadd.f32 %v207, %v373
      %375 = vmatmul.bf16.gmra.mxu0 %v306
      %v376 = vpop.f32.mrf.mxu0
      %v377 = vadd.f32 %v207, %v376
      %v378 = vpop.f32.mrf.mxu0
      %v379 = vadd.f32 %v207, %v378
      %380 = vmatmul.bf16.gmra.mxu0 %v309
      %v381 = vpop.f32.mrf.mxu0
      %v382 = vadd.f32 %v207, %v381
      %v383 = vpop.f32.mrf.mxu0
      %v384 = vadd.f32 %v207, %v383
      %385 = vmatmul.bf16.gmra.mxu0 %v312
      %v386 = vpop.f32.mrf.mxu0
      %v387 = vadd.f32 %v207, %v386
      %v388 = vpop.f32.mrf.mxu0
      %v389 = vadd.f32 %v207, %v388
      %390 = vmatmul.bf16.gmra.mxu0 %v315
      %v391 = vpop.f32.mrf.mxu0
      %v392 = vadd.f32 %v207, %v391
      %v393 = vpop.f32.mrf.mxu0
      %v394 = vadd.f32 %v207, %v393
      %395 = vmatmul.bf16.gmra.mxu0 %v318
      %v396 = vpop.f32.mrf.mxu0
      %v397 = vadd.f32 %v207, %v396
      %v398 = vpop.f32.mrf.mxu0
      %v399 = vadd.f32 %v207, %v398
      %400 = vmatmul.bf16.gmra.mxu0 %v321
      %v401 = vpop.f32.mrf.mxu0
      %v402 = vadd.f32 %v207, %v401
      %v403 = vpop.f32.mrf.mxu0
      %v404 = vadd.f32 %v207, %v403
      %405 = vmatmul.bf16.gmra.mxu0 %v324
      %v406 = vpop.f32.mrf.mxu0
      %v407 = vadd.f32 %v207, %v406
      %v408 = vpop.f32.mrf.mxu0
      %v409 = vadd.f32 %v207, %v408
      %410 = vmatmul.bf16.gmra.mxu0 %v327
      %v411 = vpop.f32.mrf.mxu0
      %v412 = vadd.f32 %v207, %v411
      %v413 = vpop.f32.mrf.mxu0
      %v414 = vadd.f32 %v207, %v413
      %415 = vmatmul.bf16.gmra.mxu0 %v330
      %v416 = vpop.f32.mrf.mxu0
      %v417 = vadd.f32 %v207, %v416
      %v418 = vpop.f32.mrf.mxu0
      %v419 = vadd.f32 %v207, %v418
      %420 = vmatmul.bf16.gmra.mxu0 %v333
      %v421 = vpop.f32.mrf.mxu0
      %v422 = vadd.f32 %v207, %v421
      %v423 = vpop.f32.mrf.mxu0
      %v424 = vadd.f32 %v207, %v423
      %425 = vmatmul.bf16.gmra.mxu0 %v336
      %v426 = vpop.f32.mrf.mxu0
      %v427 = vadd.f32 %v207, %v426
      %v428 = vpop.f32.mrf.mxu0
      %v429 = vadd.f32 %v207, %v428
      %430 = vdwg.mxu0
      %v431 = vmax.f32 %v352, 0.0
      %v432 = vmax.f32 %v354, 0.0
      %v433 = vmax.f32 %v357, 0.0
      %v434 = vmax.f32 %v359, 0.0
      %v435 = vmax.f32 %v362, 0.0
      %v436 = vmax.f32 %v364, 0.0
      %v437 = vmax.f32 %v367, 0.0
      %v438 = vmax.f32 %v369, 0.0
      %v439 = vmax.f32 %v372, 0.0
      %v440 = vmax.f32 %v374, 0.0
      %v441 = vmax.f32 %v377, 0.0
      %v442 = vmax.f32 %v379, 0.0
      %v443 = vmax.f32 %v382, 0.0
      %v444 = vmax.f32 %v384, 0.0
      %v445 = vmax.f32 %v387, 0.0
      %v446 = vmax.f32 %v389, 0.0
      %v447 = vmax.f32 %v392, 0.0
      %v448 = vmax.f32 %v394, 0.0
      %v449 = vmax.f32 %v397, 0.0
      %v450 = vmax.f32 %v399, 0.0
      %v451 = vmax.f32 %v402, 0.0
      %v452 = vmax.f32 %v404, 0.0
      %v453 = vmax.f32 %v407, 0.0
      %v454 = vmax.f32 %v409, 0.0
      %v455 = vmax.f32 %v412, 0.0
      %v456 = vmax.f32 %v414, 0.0
      %v457 = vmax.f32 %v417, 0.0
      %v458 = vmax.f32 %v419, 0.0
      %v459 = vmax.f32 %v422, 0.0
      %v460 = vmax.f32 %v424, 0.0
      %v461 = vmax.f32 %v427, 0.0
      %v462 = vmax.f32 %v429, 0.0
      %v463 = vpack.c.bf16 %v431, %v431
      %v464 = vpack.c.bf16 %v432, %v432
      %v465 = vpack.c.bf16 %v433, %v433
      %v466 = vpack.c.bf16 %v434, %v434
      %v467 = vpack.c.bf16 %v435, %v435
      %v468 = vpack.c.bf16 %v436, %v436
      %v469 = vpack.c.bf16 %v437, %v437
      %v470 = vpack.c.bf16 %v438, %v438
      %v471 = vpack.c.bf16 %v439, %v439
      %v472 = vpack.c.bf16 %v440, %v440
      %v473 = vpack.c.bf16 %v441, %v441
      %v474 = vpack.c.bf16 %v442, %v442
      %v475 = vpack.c.bf16 %v443, %v443
      %v476 = vpack.c.bf16 %v444, %v444
      %v477 = vpack.c.bf16 %v445, %v445
      %v478 = vpack.c.bf16 %v446, %v446
      %v479 = vpack.c.bf16 %v447, %v447
      %v480 = vpack.c.bf16 %v448, %v448
      %v481 = vpack.c.bf16 %v449, %v449
      %v482 = vpack.c.bf16 %v450, %v450
      %v483 = vpack.c.bf16 %v451, %v451
      %v484 = vpack.c.bf16 %v452, %v452
      %v485 = vpack.c.bf16 %v453, %v453
      %v486 = vpack.c.bf16 %v454, %v454
      %v487 = vpack.c.bf16 %v455, %v455
      %v488 = vpack.c.bf16 %v456, %v456
      %v489 = vpack.c.bf16 %v457, %v457
      %v490 = vpack.c.bf16 %v458, %v458
      %v491 = vpack.c.bf16 %v459, %v459
      %v492 = vpack.c.bf16 %v460, %v460
      %v493 = vpack.c.bf16 %v461, %v461
      %v494 = vpack.c.bf16 %v462, %v462
      %v527 = vunpack.c.l.b16 %v463
      %v528 = vunpack.c.l.b16 %v464
      %v529 = vunpack.c.l.b16 %v465
      %v530 = vunpack.c.l.b16 %v466
      %v531 = vunpack.c.l.b16 %v467
      %v532 = vunpack.c.l.b16 %v468
      %v533 = vunpack.c.l.b16 %v469
      %v534 = vunpack.c.l.b16 %v470
      %v535 = vunpack.c.l.b16 %v471
      %v536 = vunpack.c.l.b16 %v472
      %v537 = vunpack.c.l.b16 %v473
      %v538 = vunpack.c.l.b16 %v474
      %v539 = vunpack.c.l.b16 %v475
      %v540 = vunpack.c.l.b16 %v476
      %v541 = vunpack.c.l.b16 %v477
      %v542 = vunpack.c.l.b16 %v478
      %v543 = vunpack.c.l.b16 %v479
      %v544 = vunpack.c.l.b16 %v480
      %v545 = vunpack.c.l.b16 %v481
      %v546 = vunpack.c.l.b16 %v482
      %v547 = vunpack.c.l.b16 %v483
      %v548 = vunpack.c.l.b16 %v484
      %v549 = vunpack.c.l.b16 %v485
      %v550 = vunpack.c.l.b16 %v486
      %v551 = vunpack.c.l.b16 %v487
      %v552 = vunpack.c.l.b16 %v488
      %v553 = vunpack.c.l.b16 %v489
      %v554 = vunpack.c.l.b16 %v490
      %v555 = vunpack.c.l.b16 %v491
      %v556 = vunpack.c.l.b16 %v492
      %v557 = vunpack.c.l.b16 %v493
      %v558 = vunpack.c.l.b16 %v494
      %v559 = vpack.c.b16 %v528, %v527
      %v560 = vpack.c.b16 %v530, %v529
      %v561 = vpack.c.b16 %v532, %v531
      %v562 = vpack.c.b16 %v534, %v533
      %v563 = vpack.c.b16 %v536, %v535
      %v564 = vpack.c.b16 %v538, %v537
      %v565 = vpack.c.b16 %v540, %v539
      %v566 = vpack.c.b16 %v542, %v541
      %v567 = vpack.c.b16 %v544, %v543
      %v568 = vpack.c.b16 %v546, %v545
      %v569 = vpack.c.b16 %v548, %v547
      %v570 = vpack.c.b16 %v550, %v549
      %v571 = vpack.c.b16 %v552, %v551
      %v572 = vpack.c.b16 %v554, %v553
      %v573 = vpack.c.b16 %v556, %v555
      %v574 = vpack.c.b16 %v558, %v557
      %v576 = vshrl.u32 %v559, 16
      %v578 = vrot.slane %v576, 7
      %v579 = vshll.u32 %v559, 16
      %v581 = vor.u32 %v578, %v579
      %v583 = vshrl.u32 %v560, 16
      %v585 = vrot.slane %v583, 7
      %v586 = vshll.u32 %v560, 16
      %v588 = vor.u32 %v585, %v586
      %v590 = vshrl.u32 %v561, 16
      %v592 = vrot.slane %v590, 7
      %v593 = vshll.u32 %v561, 16
      %v595 = vor.u32 %v592, %v593
      %v597 = vshrl.u32 %v562, 16
      %v599 = vrot.slane %v597, 7
      %v600 = vshll.u32 %v562, 16
      %v602 = vor.u32 %v599, %v600
      %v604 = vshrl.u32 %v563, 16
      %v606 = vrot.slane %v604, 7
      %v607 = vshll.u32 %v563, 16
      %v609 = vor.u32 %v606, %v607
      %v611 = vshrl.u32 %v564, 16
      %v613 = vrot.slane %v611, 7
      %v614 = vshll.u32 %v564, 16
      %v616 = vor.u32 %v613, %v614
      %v618 = vshrl.u32 %v565, 16
      %v620 = vrot.slane %v618, 7
      %v621 = vshll.u32 %v565, 16
      %v623 = vor.u32 %v620, %v621
      %v625 = vshrl.u32 %v566, 16
      %v627 = vrot.slane %v625, 7
      %v628 = vshll.u32 %v566, 16
      %v630 = vor.u32 %v627, %v628
      %v632 = vshrl.u32 %v567, 16
      %v634 = vrot.slane %v632, 7
      %v635 = vshll.u32 %v567, 16
      %v637 = vor.u32 %v634, %v635
      %v639 = vshrl.u32 %v568, 16
      %v641 = vrot.slane %v639, 7
      %v642 = vshll.u32 %v568, 16
      %v644 = vor.u32 %v641, %v642
      %v646 = vshrl.u32 %v569, 16
      %v648 = vrot.slane %v646, 7
      %v649 = vshll.u32 %v569, 16
      %v651 = vor.u32 %v648, %v649
      %v653 = vshrl.u32 %v570, 16
      %v655 = vrot.slane %v653, 7
      %v656 = vshll.u32 %v570, 16
      %v658 = vor.u32 %v655, %v656
      %v660 = vshrl.u32 %v571, 16
      %v662 = vrot.slane %v660, 7
      %v663 = vshll.u32 %v571, 16
      %v665 = vor.u32 %v662, %v663
      %v667 = vshrl.u32 %v572, 16
      %v669 = vrot.slane %v667, 7
      %v670 = vshll.u32 %v572, 16
      %v672 = vor.u32 %v669, %v670
      %v674 = vshrl.u32 %v573, 16
      %v676 = vrot.slane %v674, 7
      %v677 = vshll.u32 %v573, 16
      %v679 = vor.u32 %v676, %v677
      %v681 = vshrl.u32 %v574, 16
      %v683 = vrot.slane %v681, 7
      %v684 = vshll.u32 %v574, 16
      %v686 = vor.u32 %v683, %v684
      %vm719 = vcmask 1040384
      %vm720 = vsmask.f32 256
      %vm721 = vmand %vm719, %vm720
      %v722 = vsel %vm721, 0, %v581
      %v723 = vsel %vm721, 0, %v588
      %v724 = vsel %vm721, 0, %v595
      %v725 = vsel %vm721, 0, %v602
      %v726 = vsel %vm721, 0, %v609
      %v727 = vsel %vm721, 0, %v616
      %v728 = vsel %vm721, 0, %v623
      %v729 = vsel %vm721, 0, %v630
      %v730 = vsel %vm721, 0, %v637
      %v731 = vsel %vm721, 0, %v644
      %v732 = vsel %vm721, 0, %v651
      %v733 = vsel %vm721, 0, %v658
      %v734 = vsel %vm721, 0, %v665
      %v735 = vsel %vm721, 0, %v672
      %v736 = vsel %vm721, 0, %v679
      %v737 = vsel %vm721, 0, %v686
      %v738 = vsel %vm721, %v578, 0
      %v739 = vsel %vm721, %v585, 0
      %v740 = vsel %vm721, %v592, 0
      %v741 = vsel %vm721, %v599, 0
      %v742 = vsel %vm721, %v606, 0
      %v743 = vsel %vm721, %v613, 0
      %v744 = vsel %vm721, %v620, 0
      %v745 = vsel %vm721, %v627, 0
      %v746 = vsel %vm721, %v634, 0
      %v747 = vsel %vm721, %v641, 0
      %v748 = vsel %vm721, %v648, 0
      %v749 = vsel %vm721, %v655, 0
      %v750 = vsel %vm721, %v662, 0
      %v751 = vsel %vm721, %v669, 0
      %v752 = vsel %vm721, %v676, 0
      %v753 = vsel %vm721, %v683, 0
      %v786 = vunpack.c.l.b16 %v722
      %v787 = vunpack.c.h.b16 %v722
      %v788 = vunpack.c.l.b16 %v738
      %v789 = vunpack.c.l.b16 %v723
      %v790 = vunpack.c.h.b16 %v723
      %v791 = vunpack.c.l.b16 %v739
      %v792 = vunpack.c.l.b16 %v724
      %v793 = vunpack.c.h.b16 %v724
      %v794 = vunpack.c.l.b16 %v740
      %v795 = vunpack.c.l.b16 %v725
      %v796 = vunpack.c.h.b16 %v725
      %v797 = vunpack.c.l.b16 %v741
      %v798 = vunpack.c.l.b16 %v726
      %v799 = vunpack.c.h.b16 %v726
      %v800 = vunpack.c.l.b16 %v742
      %v801 = vunpack.c.l.b16 %v727
      %v802 = vunpack.c.h.b16 %v727
      %v803 = vunpack.c.l.b16 %v743
      %v804 = vunpack.c.l.b16 %v728
      %v805 = vunpack.c.h.b16 %v728
      %v806 = vunpack.c.l.b16 %v744
      %v807 = vunpack.c.l.b16 %v729
      %v808 = vunpack.c.h.b16 %v729
      %v809 = vunpack.c.l.b16 %v745
      %v810 = vunpack.c.l.b16 %v730
      %v811 = vunpack.c.h.b16 %v730
      %v812 = vunpack.c.l.b16 %v746
      %v813 = vunpack.c.l.b16 %v731
      %v814 = vunpack.c.h.b16 %v731
      %v815 = vunpack.c.l.b16 %v747
      %v816 = vunpack.c.l.b16 %v732
      %v817 = vunpack.c.h.b16 %v732
      %v818 = vunpack.c.l.b16 %v748
      %v819 = vunpack.c.l.b16 %v733
      %v820 = vunpack.c.h.b16 %v733
      %v821 = vunpack.c.l.b16 %v749
      %v822 = vunpack.c.l.b16 %v734
      %v823 = vunpack.c.h.b16 %v734
      %v824 = vunpack.c.l.b16 %v750
      %v825 = vunpack.c.l.b16 %v735
      %v826 = vunpack.c.h.b16 %v735
      %v827 = vunpack.c.l.b16 %v751
      %v828 = vunpack.c.l.b16 %v736
      %v829 = vunpack.c.h.b16 %v736
      %v830 = vunpack.c.l.b16 %v752
      %v831 = vunpack.c.l.b16 %v737
      %v832 = vunpack.c.h.b16 %v737
      %v833 = vunpack.c.l.b16 %v753
      %v834 = vpack.c.b16 %v786, %v786
      %v835 = vpack.c.b16 %v787, %v787
      %v836 = vpack.c.b16 %v788, %v788
      %v837 = vpack.c.b16 %v789, %v789
      %v838 = vpack.c.b16 %v790, %v790
      %v839 = vpack.c.b16 %v791, %v791
      %v840 = vpack.c.b16 %v792, %v792
      %v841 = vpack.c.b16 %v793, %v793
      %v842 = vpack.c.b16 %v794, %v794
      %v843 = vpack.c.b16 %v795, %v795
      %v844 = vpack.c.b16 %v796, %v796
      %v845 = vpack.c.b16 %v797, %v797
      %v846 = vpack.c.b16 %v798, %v798
      %v847 = vpack.c.b16 %v799, %v799
      %v848 = vpack.c.b16 %v800, %v800
      %v849 = vpack.c.b16 %v801, %v801
      %v850 = vpack.c.b16 %v802, %v802
      %v851 = vpack.c.b16 %v803, %v803
      %v852 = vpack.c.b16 %v804, %v804
      %v853 = vpack.c.b16 %v805, %v805
      %v854 = vpack.c.b16 %v806, %v806
      %v855 = vpack.c.b16 %v807, %v807
      %v856 = vpack.c.b16 %v808, %v808
      %v857 = vpack.c.b16 %v809, %v809
      %v858 = vpack.c.b16 %v810, %v810
      %v859 = vpack.c.b16 %v811, %v811
      %v860 = vpack.c.b16 %v812, %v812
      %v861 = vpack.c.b16 %v813, %v813
      %v862 = vpack.c.b16 %v814, %v814
      %v863 = vpack.c.b16 %v815, %v815
      %v864 = vpack.c.b16 %v816, %v816
      %v865 = vpack.c.b16 %v817, %v817
      %v866 = vpack.c.b16 %v818, %v818
      %v867 = vpack.c.b16 %v819, %v819
      %v868 = vpack.c.b16 %v820, %v820
      %v869 = vpack.c.b16 %v821, %v821
      %v870 = vpack.c.b16 %v822, %v822
      %v871 = vpack.c.b16 %v823, %v823
      %v872 = vpack.c.b16 %v824, %v824
      %v873 = vpack.c.b16 %v825, %v825
      %v874 = vpack.c.b16 %v826, %v826
      %v875 = vpack.c.b16 %v827, %v827
      %v876 = vpack.c.b16 %v828, %v828
      %v877 = vpack.c.b16 %v829, %v829
      %v878 = vpack.c.b16 %v830, %v830
      %v879 = vpack.c.b16 %v831, %v831
      %v880 = vpack.c.b16 %v832, %v832
      %v881 = vpack.c.b16 %v833, %v833
      %s930 = scalar_lea.vmem %s170, 12
      %vm931 = vcmask 27648
      %932 = vst.msk [vmem:[%s930] sm:$0xf] %vm931, %v834
      %933 = vst.msk [vmem:[%s930 + $0x4] sm:$0xf] %vm931, %v835
      %vm934 = vcmask 24576
      %935 = vst.msk [vmem:[%s930 + $0x8] sm:$0x1] %vm934, %v836
      %936 = vst.msk [vmem:[%s930 + $0xc] sm:$0xf] %vm931, %v837
      %937 = vst.msk [vmem:[%s930 + $0x10] sm:$0xf] %vm931, %v838
      %938 = vst.msk [vmem:[%s930 + $0x14] sm:$0x1] %vm934, %v839
      %939 = vst.msk [vmem:[%s930 + $0x18] sm:$0xf] %vm931, %v840
      %940 = vst.msk [vmem:[%s930 + $0x1c] sm:$0xf] %vm931, %v841
      %941 = vst.msk [vmem:[%s930 + $0x20] sm:$0x1] %vm934, %v842
      %942 = vst.msk [vmem:[%s930 + $0x24] sm:$0xf] %vm931, %v843
      %943 = vst.msk [vmem:[%s930 + $0x28] sm:$0xf] %vm931, %v844
      %944 = vst.msk [vmem:[%s930 + $0x2c] sm:$0x1] %vm934, %v845
      %945 = vst.msk [vmem:[%s930 + $0x30] sm:$0xf] %vm931, %v846
      %946 = vst.msk [vmem:[%s930 + $0x34] sm:$0xf] %vm931, %v847
      %947 = vst.msk [vmem:[%s930 + $0x38] sm:$0x1] %vm934, %v848
      %948 = vst.msk [vmem:[%s930 + $0x3c] sm:$0xf] %vm931, %v849
      %949 = vst.msk [vmem:[%s930 + $0x40] sm:$0xf] %vm931, %v850
      %950 = vst.msk [vmem:[%s930 + $0x44] sm:$0x1] %vm934, %v851
      %951 = vst.msk [vmem:[%s930 + $0x48] sm:$0xf] %vm931, %v852
      %952 = vst.msk [vmem:[%s930 + $0x4c] sm:$0xf] %vm931, %v853
      %953 = vst.msk [vmem:[%s930 + $0x50] sm:$0x1] %vm934, %v854
      %954 = vst.msk [vmem:[%s930 + $0x54] sm:$0xf] %vm931, %v855
      %955 = vst.msk [vmem:[%s930 + $0x58] sm:$0xf] %vm931, %v856
      %956 = vst.msk [vmem:[%s930 + $0x5c] sm:$0x1] %vm934, %v857
      %957 = vst.msk [vmem:[%s930 + $0x60] sm:$0xf] %vm931, %v858
      %958 = vst.msk [vmem:[%s930 + $0x64] sm:$0xf] %vm931, %v859
      %959 = vst.msk [vmem:[%s930 + $0x68] sm:$0x1] %vm934, %v860
      %960 = vst.msk [vmem:[%s930 + $0x6c] sm:$0xf] %vm931, %v861
      %961 = vst.msk [vmem:[%s930 + $0x70] sm:$0xf] %vm931, %v862
      %962 = vst.msk [vmem:[%s930 + $0x74] sm:$0x1] %vm934, %v863
      %963 = vst.msk [vmem:[%s930 + $0x78] sm:$0xf] %vm931, %v864
      %964 = vst.msk [vmem:[%s930 + $0x7c] sm:$0xf] %vm931, %v865
      %965 = vst.msk [vmem:[%s930 + $0x80] sm:$0x1] %vm934, %v866
      %966 = vst.msk [vmem:[%s930 + $0x84] sm:$0xf] %vm931, %v867
      %967 = vst.msk [vmem:[%s930 + $0x88] sm:$0xf] %vm931, %v868
      %968 = vst.msk [vmem:[%s930 + $0x8c] sm:$0x1] %vm934, %v869
      %969 = vst.msk [vmem:[%s930 + $0x90] sm:$0xf] %vm931, %v870
      %970 = vst.msk [vmem:[%s930 + $0x94] sm:$0xf] %vm931, %v871
      %971 = vst.msk [vmem:[%s930 + $0x98] sm:$0x1] %vm934, %v872
      %972 = vst.msk [vmem:[%s930 + $0x9c] sm:$0xf] %vm931, %v873
      %973 = vst.msk [vmem:[%s930 + $0xa0] sm:$0xf] %vm931, %v874
      %974 = vst.msk [vmem:[%s930 + $0xa4] sm:$0x1] %vm934, %v875
      %975 = vst.msk [vmem:[%s930 + $0xa8] sm:$0xf] %vm931, %v876
      %976 = vst.msk [vmem:[%s930 + $0xac] sm:$0xf] %vm931, %v877
      %977 = vst.msk [vmem:[%s930 + $0xb0] sm:$0x1] %vm934, %v878
      %978 = vst.msk [vmem:[%s930 + $0xb4] sm:$0xf] %vm931, %v879
      %979 = vst.msk [vmem:[%s930 + $0xb8] sm:$0xf] %vm931, %v880
      %980 = vst.msk [vmem:[%s930 + $0xbc] sm:$0x1] %vm934, %v881
      %981 = vst.msk [vmem:[%s170] sm:$0xf] %vm931, 0
      %982 = vst.msk [vmem:[%s170 + $0x4] sm:$0xf] %vm931, 0
      %983 = vst.msk [vmem:[%s170 + $0x8] sm:$0x1] %vm934, 0
      %s984 = scalar_lea.vmem %s170, 204
      %985 = vst.msk [vmem:[%s984] sm:$0xf] %vm931, 0
      %986 = vst.msk [vmem:[%s984 + $0x4] sm:$0xf] %vm931, 0
      %987 = vst.msk [vmem:[%s984 + $0x8] sm:$0x1] %vm934, 0
      %p988 = scmp.lt.s32.totalorder %s14, 1
      %s989 = scalar_select %p988, %s14, 1
      %s990 = smul.addr %s989, 54
      %s991 = smul.addr %s990, 4
      %s992 = scalar_lea.vmem %s3, %s991
      // Predicated region
      $region33: #{bottleneck_forward.3} parent=31 // pred_check
        %p993 = pneg %p100
      $region34: #{bottleneck_forward.3} parent=31 // pred_check_branch
        %995 = sbr.rel (%p993) target = $region36
      $region35: #{bottleneck_forward.3} parent=31 // pred_region
        _
      $region36: #{bottleneck_forward.3} parent=31 // pred_fallthru
        _
    $region32: #{bottleneck_forward.3} parent=5 // pred_fallthru
      _
    %p996 = scmp.le.s32.totalorder 2, %s9
    // Predicated region
    $region37: #{bottleneck_forward.3} parent=5 // pred_check
      %p997 = pneg %p996
    $region38: #{bottleneck_forward.3} parent=5 // pred_check_branch
      %999 = sbr.rel (%p997) target = $region40
    $region39: #{bottleneck_forward.3} parent=5 // pred_region
      %s1000 = ssub.s32 %s9, 2
      // Predicated region
      $region41: #{bottleneck_forward.3} parent=39 // pred_check
        %p1001 = pneg %p106
      $region42: #{bottleneck_forward.3} parent=39 // pred_check_branch
        %1003 = sbr.rel (%p1001) target = $region44
      $region43: #{bottleneck_forward.3} parent=39 // pred_region
        %p1004 = scmp.lt.s32.totalorder %s15, 1
        %s1005 = scalar_select %p1004, %s15, 1
        %s1006 = smul.addr %s1005, 54
        %s1007 = smul.addr %s1006, 4
        %s1008 = scalar_lea.vmem %s3, %s1007
      $region44: #{bottleneck_forward.3} parent=39 // pred_fallthru
        _
    $region40: #{bottleneck_forward.3} parent=5 // pred_fallthru
      _
  $region6: #{bottleneck_forward.3} parent=0 // loop_footer
    %s13 = sadd.s32 1, %s9
  $region7: #{bottleneck_forward.3} parent=0 // loop_footer_branch
    %8 = sbr.rel target = $region3
  $region8: #{bottleneck_forward.3} parent=0 // loop_exit
    _

// kernel: bottleneck_forward.5
$region0: #{bottleneck_forward.5}
  #allocation0 [shape = 'u32[]', space=smem, size = 0x4, offset = 0x4, fixed_abs, tag = 'smem constant byte address 0x4 - core index']
  #allocation1 [shape = 'u32[72,128]{1,0:T(1,128)}', space=vmem, size = 0x9000, scoped, tag = 'internal scratch']
  %s0 = inlined_call_operand.vmem [shape: bf16[512,4], index: 0, kind: input, shape index: {}]
  %s1 = inlined_call_operand.vmem [shape: bf16[4,16], index: 1, kind: input, shape index: {}]
  %s2 = inlined_call_operand.vmem [shape: bf16[512,4], index: 2, kind: input, shape index: {}]
  %s3 = inlined_call_operand.vmem [shape: bf16[4,16], index: 3, kind: input, shape index: {}]
  %s4 = inlined_call_operand.vmem [shape: f32[1,16], index: 4, kind: input, shape index: {}]
  %s5 = inlined_call_operand.vmem [shape: f32[512,16], index: 5, kind: output, shape index: {}]
  %s6 = sld [smem:[#allocation0]]
  $region30: #{bottleneck_forward.5} parent=0
    _
  %s8 = ssub.s32 1, %s6
  %s9 = scalar_select 0, %s8, %s6
  // Predicated region
  $region2: #{bottleneck_forward.5} parent=0 // pred_check
    _
  $region3: #{bottleneck_forward.5} parent=0 // pred_check_branch
    %11 = sbr.rel (0) target = $region5
  $region4: #{bottleneck_forward.5} parent=0 // pred_region
    _
  $region5: #{bottleneck_forward.5} parent=0 // pred_fallthru
    _
  // Predicated region
  $region6: #{bottleneck_forward.5} parent=0 // pred_check
    _
  $region7: #{bottleneck_forward.5} parent=0 // pred_check_branch
    %13 = sbr.rel (0) target = $region9
  $region8: #{bottleneck_forward.5} parent=0 // pred_region
    _
  $region9: #{bottleneck_forward.5} parent=0 // pred_fallthru
    _
  // Predicated region
  $region10: #{bottleneck_forward.5} parent=0 // pred_check
    _
  $region11: #{bottleneck_forward.5} parent=0 // pred_check_branch
    %15 = sbr.rel (0) target = $region13
  $region12: #{bottleneck_forward.5} parent=0 // pred_region
    _
  $region13: #{bottleneck_forward.5} parent=0 // pred_fallthru
    _
  // Predicated region
  $region14: #{bottleneck_forward.5} parent=0 // pred_check
    _
  $region15: #{bottleneck_forward.5} parent=0 // pred_check_branch
    %17 = sbr.rel (0) target = $region17
  $region16: #{bottleneck_forward.5} parent=0 // pred_region
    _
  $region17: #{bottleneck_forward.5} parent=0 // pred_fallthru
    _
  // Predicated region
  $region18: #{bottleneck_forward.5} parent=0 // pred_check
    _
  $region19: #{bottleneck_forward.5} parent=0 // pred_check_branch
    %19 = sbr.rel (0) target = $region21
  $region20: #{bottleneck_forward.5} parent=0 // pred_region
    _
  $region21: #{bottleneck_forward.5} parent=0 // pred_fallthru
    _
  %v21 = vld [vmem:[%s0] sm:$0xf]
  %v22 = vld [vmem:[%s0 + $0x4] sm:$0xf]
  %v23 = vld [vmem:[%s0 + $0x8] sm:$0xf]
  %v24 = vld [vmem:[%s0 + $0xc] sm:$0xf]
  %v25 = vld [vmem:[%s0 + $0x10] sm:$0xf]
  %v26 = vld [vmem:[%s0 + $0x14] sm:$0xf]
  %v27 = vld [vmem:[%s0 + $0x18] sm:$0xf]
  %v28 = vld [vmem:[%s0 + $0x1c] sm:$0xf]
  %v29 = vld [vmem:[%s0 + $0x20] sm:$0xf]
  %v30 = vld [vmem:[%s0 + $0x24] sm:$0xf]
  %v31 = vld [vmem:[%s0 + $0x28] sm:$0xf]
  %v32 = vld [vmem:[%s0 + $0x2c] sm:$0xf]
  %v33 = vld [vmem:[%s0 + $0x30] sm:$0xf]
  %v34 = vld [vmem:[%s0 + $0x34] sm:$0xf]
  %v35 = vld [vmem:[%s0 + $0x38] sm:$0xf]
  %v36 = vld [vmem:[%s0 + $0x3c] sm:$0xf]
  %v37 = vld [vmem:[%s0 + $0x40] sm:$0xf]
  %v38 = vld [vmem:[%s0 + $0x44] sm:$0xf]
  %v39 = vld [vmem:[%s0 + $0x48] sm:$0xf]
  %v40 = vld [vmem:[%s0 + $0x4c] sm:$0xf]
  %v41 = vld [vmem:[%s0 + $0x50] sm:$0xf]
  %v42 = vld [vmem:[%s0 + $0x54] sm:$0xf]
  %v43 = vld [vmem:[%s0 + $0x58] sm:$0xf]
  %v44 = vld [vmem:[%s0 + $0x5c] sm:$0xf]
  %v45 = vld [vmem:[%s0 + $0x60] sm:$0xf]
  %v46 = vld [vmem:[%s0 + $0x64] sm:$0xf]
  %v47 = vld [vmem:[%s0 + $0x68] sm:$0xf]
  %v48 = vld [vmem:[%s0 + $0x6c] sm:$0xf]
  %v49 = vld [vmem:[%s0 + $0x70] sm:$0xf]
  %v50 = vld [vmem:[%s0 + $0x74] sm:$0xf]
  %v51 = vld [vmem:[%s0 + $0x78] sm:$0xf]
  %v52 = vld [vmem:[%s0 + $0x7c] sm:$0xf]
  %v53 = vld [vmem:[%s0 + $0x80] sm:$0xf]
  %v54 = vld [vmem:[%s0 + $0x84] sm:$0xf]
  %v55 = vld [vmem:[%s0 + $0x88] sm:$0xf]
  %v56 = vld [vmem:[%s0 + $0x8c] sm:$0xf]
  %v57 = vld [vmem:[%s0 + $0x90] sm:$0xf]
  %v58 = vld [vmem:[%s0 + $0x94] sm:$0xf]
  %v59 = vld [vmem:[%s0 + $0x98] sm:$0xf]
  %v60 = vld [vmem:[%s0 + $0x9c] sm:$0xf]
  %v61 = vld [vmem:[%s0 + $0xa0] sm:$0xf]
  %v62 = vld [vmem:[%s0 + $0xa4] sm:$0xf]
  %v63 = vld [vmem:[%s0 + $0xa8] sm:$0xf]
  %v64 = vld [vmem:[%s0 + $0xac] sm:$0xf]
  %v65 = vld [vmem:[%s0 + $0xb0] sm:$0xf]
  %v66 = vld [vmem:[%s0 + $0xb4] sm:$0xf]
  %v67 = vld [vmem:[%s0 + $0xb8] sm:$0xf]
  %v68 = vld [vmem:[%s0 + $0xbc] sm:$0xf]
  %v69 = vld [vmem:[%s0 + $0xc0] sm:$0xf]
  %v70 = vld [vmem:[%s0 + $0xc4] sm:$0xf]
  %v71 = vld [vmem:[%s0 + $0xc8] sm:$0xf]
  %v72 = vld [vmem:[%s0 + $0xcc] sm:$0xf]
  %v73 = vld [vmem:[%s0 + $0xd0] sm:$0xf]
  %v74 = vld [vmem:[%s0 + $0xd4] sm:$0xf]
  %v75 = vld [vmem:[%s0 + $0xd8] sm:$0xf]
  %v76 = vld [vmem:[%s0 + $0xdc] sm:$0xf]
  %v77 = vld [vmem:[%s0 + $0xe0] sm:$0xf]
  %v78 = vld [vmem:[%s0 + $0xe4] sm:$0xf]
  %v79 = vld [vmem:[%s0 + $0xe8] sm:$0xf]
  %v80 = vld [vmem:[%s0 + $0xec] sm:$0xf]
  %v81 = vld [vmem:[%s0 + $0xf0] sm:$0xf]
  %v82 = vld [vmem:[%s0 + $0xf4] sm:$0xf]
  %v83 = vld [vmem:[%s0 + $0xf8] sm:$0xf]
  %v84 = vld [vmem:[%s0 + $0xfc] sm:$0xf]
  %v85 = vld [vmem:[%s1] sm:$0x3]
  %v86 = vld [vmem:[%s2] sm:$0xf]
  %v87 = vld [vmem:[%s2 + $0x4] sm:$0xf]
  %v88 = vld [vmem:[%s2 + $0x8] sm:$0xf]
  %v89 = vld [vmem:[%s2 + $0xc] sm:$0xf]
  %v90 = vld [vmem:[%s2 + $0x10] sm:$0xf]
  %v91 = vld [vmem:[%s2 + $0x14] sm:$0xf]
  %v92 = vld [vmem:[%s2 + $0x18] sm:$0xf]
  %v93 = vld [vmem:[%s2 + $0x1c] sm:$0xf]
  %v94 = vld [vmem:[%s2 + $0x20] sm:$0xf]
  %v95 = vld [vmem:[%s2 + $0x24] sm:$0xf]
  %v96 = vld [vmem:[%s2 + $0x28] sm:$0xf]
  %v97 = vld [vmem:[%s2 + $0x2c] sm:$0xf]
  %v98 = vld [vmem:[%s2 + $0x30] sm:$0xf]
  %v99 = vld [vmem:[%s2 + $0x34] sm:$0xf]
  %v100 = vld [vmem:[%s2 + $0x38] sm:$0xf]
  %v101 = vld [vmem:[%s2 + $0x3c] sm:$0xf]
  %v102 = vld [vmem:[%s2 + $0x40] sm:$0xf]
  %v103 = vld [vmem:[%s2 + $0x44] sm:$0xf]
  %v104 = vld [vmem:[%s2 + $0x48] sm:$0xf]
  %v105 = vld [vmem:[%s2 + $0x4c] sm:$0xf]
  %v106 = vld [vmem:[%s2 + $0x50] sm:$0xf]
  %v107 = vld [vmem:[%s2 + $0x54] sm:$0xf]
  %v108 = vld [vmem:[%s2 + $0x58] sm:$0xf]
  %v109 = vld [vmem:[%s2 + $0x5c] sm:$0xf]
  %v110 = vld [vmem:[%s2 + $0x60] sm:$0xf]
  %v111 = vld [vmem:[%s2 + $0x64] sm:$0xf]
  %v112 = vld [vmem:[%s2 + $0x68] sm:$0xf]
  %v113 = vld [vmem:[%s2 + $0x6c] sm:$0xf]
  %v114 = vld [vmem:[%s2 + $0x70] sm:$0xf]
  %v115 = vld [vmem:[%s2 + $0x74] sm:$0xf]
  %v116 = vld [vmem:[%s2 + $0x78] sm:$0xf]
  %v117 = vld [vmem:[%s2 + $0x7c] sm:$0xf]
  %v118 = vld [vmem:[%s2 + $0x80] sm:$0xf]
  %v119 = vld [vmem:[%s2 + $0x84] sm:$0xf]
  %v120 = vld [vmem:[%s2 + $0x88] sm:$0xf]
  %v121 = vld [vmem:[%s2 + $0x8c] sm:$0xf]
  %v122 = vld [vmem:[%s2 + $0x90] sm:$0xf]
  %v123 = vld [vmem:[%s2 + $0x94] sm:$0xf]
  %v124 = vld [vmem:[%s2 + $0x98] sm:$0xf]
  %v125 = vld [vmem:[%s2 + $0x9c] sm:$0xf]
  %v126 = vld [vmem:[%s2 + $0xa0] sm:$0xf]
  %v127 = vld [vmem:[%s2 + $0xa4] sm:$0xf]
  %v128 = vld [vmem:[%s2 + $0xa8] sm:$0xf]
  %v129 = vld [vmem:[%s2 + $0xac] sm:$0xf]
  %v130 = vld [vmem:[%s2 + $0xb0] sm:$0xf]
  %v131 = vld [vmem:[%s2 + $0xb4] sm:$0xf]
  %v132 = vld [vmem:[%s2 + $0xb8] sm:$0xf]
  %v133 = vld [vmem:[%s2 + $0xbc] sm:$0xf]
  %v134 = vld [vmem:[%s2 + $0xc0] sm:$0xf]
  %v135 = vld [vmem:[%s2 + $0xc4] sm:$0xf]
  %v136 = vld [vmem:[%s2 + $0xc8] sm:$0xf]
  %v137 = vld [vmem:[%s2 + $0xcc] sm:$0xf]
  %v138 = vld [vmem:[%s2 + $0xd0] sm:$0xf]
  %v139 = vld [vmem:[%s2 + $0xd4] sm:$0xf]
  %v140 = vld [vmem:[%s2 + $0xd8] sm:$0xf]
  %v141 = vld [vmem:[%s2 + $0xdc] sm:$0xf]
  %v142 = vld [vmem:[%s2 + $0xe0] sm:$0xf]
  %v143 = vld [vmem:[%s2 + $0xe4] sm:$0xf]
  %v144 = vld [vmem:[%s2 + $0xe8] sm:$0xf]
  %v145 = vld [vmem:[%s2 + $0xec] sm:$0xf]
  %v146 = vld [vmem:[%s2 + $0xf0] sm:$0xf]
  %v147 = vld [vmem:[%s2 + $0xf4] sm:$0xf]
  %v148 = vld [vmem:[%s2 + $0xf8] sm:$0xf]
  %v149 = vld [vmem:[%s2 + $0xfc] sm:$0xf]
  %v150 = vld [vmem:[%s3] sm:$0x3]
  %v215 = vunpack.c.l.b16 %v86
  %v216 = vunpack.c.l.b16 %v87
  %v217 = vunpack.c.l.b16 %v88
  %v218 = vunpack.c.l.b16 %v89
  %v219 = vunpack.c.l.b16 %v90
  %v220 = vunpack.c.l.b16 %v91
  %v221 = vunpack.c.l.b16 %v92
  %v222 = vunpack.c.l.b16 %v93
  %v223 = vunpack.c.l.b16 %v94
  %v224 = vunpack.c.l.b16 %v95
  %v225 = vunpack.c.l.b16 %v96
  %v226 = vunpack.c.l.b16 %v97
  %v227 = vunpack.c.l.b16 %v98
  %v228 = vunpack.c.l.b16 %v99
  %v229 = vunpack.c.l.b16 %v100
  %v230 = vunpack.c.l.b16 %v101
  %v231 = vunpack.c.l.b16 %v102
  %v232 = vunpack.c.l.b16 %v103
  %v233 = vunpack.c.l.b16 %v104
  %v234 = vunpack.c.l.b16 %v105
  %v235 = vunpack.c.l.b16 %v106
  %v236 = vunpack.c.l.b16 %v107
  %v237 = vunpack.c.l.b16 %v108
  %v238 = vunpack.c.l.b16 %v109
  %v239 = vunpack.c.l.b16 %v110
  %v240 = vunpack.c.l.b16 %v111
  %v241 = vunpack.c.l.b16 %v112
  %v242 = vunpack.c.l.b16 %v113
  %v243 = vunpack.c.l.b16 %v114
  %v244 = vunpack.c.l.b16 %v115
  %v245 = vunpack.c.l.b16 %v116
  %v246 = vunpack.c.l.b16 %v117
  %v247 = vunpack.c.l.b16 %v118
  %v248 = vunpack.c.l.b16 %v119
  %v249 = vunpack.c.l.b16 %v120
  %v250 = vunpack.c.l.b16 %v121
  %v251 = vunpack.c.l.b16 %v122
  %v252 = vunpack.c.l.b16 %v123
  %v253 = vunpack.c.l.b16 %v124
  %v254 = vunpack.c.l.b16 %v125
  %v255 = vunpack.c.l.b16 %v126
  %v256 = vunpack.c.l.b16 %v127
  %v257 = vunpack.c.l.b16 %v128
  %v258 = vunpack.c.l.b16 %v129
  %v259 = vunpack.c.l.b16 %v130
  %v260 = vunpack.c.l.b16 %v131
  %v261 = vunpack.c.l.b16 %v132
  %v262 = vunpack.c.l.b16 %v133
  %v263 = vunpack.c.l.b16 %v134
  %v264 = vunpack.c.l.b16 %v135
  %v265 = vunpack.c.l.b16 %v136
  %v266 = vunpack.c.l.b16 %v137
  %v267 = vunpack.c.l.b16 %v138
  %v268 = vunpack.c.l.b16 %v139
  %v269 = vunpack.c.l.b16 %v140
  %v270 = vunpack.c.l.b16 %v141
  %v271 = vunpack.c.l.b16 %v142
  %v272 = vunpack.c.l.b16 %v143
  %v273 = vunpack.c.l.b16 %v144
  %v274 = vunpack.c.l.b16 %v145
  %v275 = vunpack.c.l.b16 %v146
  %v276 = vunpack.c.l.b16 %v147
  %v277 = vunpack.c.l.b16 %v148
  %v278 = vunpack.c.l.b16 %v149
  %v279 = vpack.c.b16 %v216, %v215
  %v280 = vpack.c.b16 %v218, %v217
  %v281 = vpack.c.b16 %v220, %v219
  %v282 = vpack.c.b16 %v222, %v221
  %v283 = vpack.c.b16 %v224, %v223
  %v284 = vpack.c.b16 %v226, %v225
  %v285 = vpack.c.b16 %v228, %v227
  %v286 = vpack.c.b16 %v230, %v229
  %v287 = vpack.c.b16 %v232, %v231
  %v288 = vpack.c.b16 %v234, %v233
  %v289 = vpack.c.b16 %v236, %v235
  %v290 = vpack.c.b16 %v238, %v237
  %v291 = vpack.c.b16 %v240, %v239
  %v292 = vpack.c.b16 %v242, %v241
  %v293 = vpack.c.b16 %v244, %v243
  %v294 = vpack.c.b16 %v246, %v245
  %v295 = vpack.c.b16 %v248, %v247
  %v296 = vpack.c.b16 %v250, %v249
  %v297 = vpack.c.b16 %v252, %v251
  %v298 = vpack.c.b16 %v254, %v253
  %v299 = vpack.c.b16 %v256, %v255
  %v300 = vpack.c.b16 %v258, %v257
  %v301 = vpack.c.b16 %v260, %v259
  %v302 = vpack.c.b16 %v262, %v261
  %v303 = vpack.c.b16 %v264, %v263
  %v304 = vpack.c.b16 %v266, %v265
  %v305 = vpack.c.b16 %v268, %v267
  %v306 = vpack.c.b16 %v270, %v269
  %v307 = vpack.c.b16 %v272, %v271
  %v308 = vpack.c.b16 %v274, %v273
  %v309 = vpack.c.b16 %v276, %v275
  %v310 = vpack.c.b16 %v278, %v277
  %vm311 = vcmask 31744
  %v313 = vsel %vm311, %v279, 0
  %v316 = vsel %vm311, %v280, 0
  %v319 = vsel %vm311, %v281, 0
  %v322 = vsel %vm311, %v282, 0
  %v325 = vsel %vm311, %v283, 0
  %v328 = vsel %vm311, %v284, 0
  %v331 = vsel %vm311, %v285, 0
  %v334 = vsel %vm311, %v286, 0
  %v337 = vsel %vm311, %v287, 0
  %v340 = vsel %vm311, %v288, 0
  %v343 = vsel %vm311, %v289, 0
  %v346 = vsel %vm311, %v290, 0
  %v349 = vsel %vm311, %v291, 0
  %v352 = vsel %vm311, %v292, 0
  %v355 = vsel %vm311, %v293, 0
  %v358 = vsel %vm311, %v294, 0
  %v361 = vsel %vm311, %v295, 0
  %v364 = vsel %vm311, %v296, 0
  %v367 = vsel %vm311, %v297, 0
  %v370 = vsel %vm311, %v298, 0
  %v373 = vsel %vm311, %v299, 0
  %v376 = vsel %vm311, %v300, 0
  %v379 = vsel %vm311, %v301, 0
  %v382 = vsel %vm311, %v302, 0
  %v385 = vsel %vm311, %v303, 0
  %v388 = vsel %vm311, %v304, 0
  %v391 = vsel %vm311, %v305, 0
  %v394 = vsel %vm311, %v306, 0
  %v397 = vsel %vm311, %v307, 0
  %v400 = vsel %vm311, %v308, 0
  %v403 = vsel %vm311, %v309, 0
  %v406 = vsel %vm311, %v310, 0
  %vm408 = vcmask 1041408
  %v410 = vsel %vm408, %v150, 0
  %412 = vmatpush.bf16.msra.mxu0 0
  %413 = vmatpush.bf16.msra.mxu0 0
  %414 = vmatpush.bf16.msra.mxu0 0
  %415 = vmatpush.bf16.msra.mxu0 0
  %416 = vmatpush.bf16.msra.mxu0 0
  %417 = vmatpush.bf16.msra.mxu0 0
  %418 = vmatpush.bf16.msra.mxu0 0
  %419 = vmatpush.bf16.msra.mxu0 %v410
  %420 = vmatmul.bf16.gmra.mxu0 %v313
  %v421 = vpop.f32.mrf.mxu0
  %v422 = vadd.f32 0.0, %v421
  %v423 = vpop.f32.mrf.mxu0
  %v424 = vadd.f32 0.0, %v423
  %425 = vmatmul.bf16.gmra.mxu0 %v316
  %v426 = vpop.f32.mrf.mxu0
  %v427 = vadd.f32 0.0, %v426
  %v428 = vpop.f32.mrf.mxu0
  %v429 = vadd.f32 0.0, %v428
  %430 = vmatmul.bf16.gmra.mxu0 %v319
  %v431 = vpop.f32.mrf.mxu0
  %v432 = vadd.f32 0.0, %v431
  %v433 = vpop.f32.mrf.mxu0
  %v434 = vadd.f32 0.0, %v433
  %435 = vmatmul.bf16.gmra.mxu0 %v322
  %v436 = vpop.f32.mrf.mxu0
  %v437 = vadd.f32 0.0, %v436
  %v438 = vpop.f32.mrf.mxu0
  %v439 = vadd.f32 0.0, %v438
  %440 = vmatmul.bf16.gmra.mxu0 %v325
  %v441 = vpop.f32.mrf.mxu0
  %v442 = vadd.f32 0.0, %v441
  %v443 = vpop.f32.mrf.mxu0
  %v444 = vadd.f32 0.0, %v443
  %445 = vmatmul.bf16.gmra.mxu0 %v328
  %v446 = vpop.f32.mrf.mxu0
  %v447 = vadd.f32 0.0, %v446
  %v448 = vpop.f32.mrf.mxu0
  %v449 = vadd.f32 0.0, %v448
  %450 = vmatmul.bf16.gmra.mxu0 %v331
  %v451 = vpop.f32.mrf.mxu0
  %v452 = vadd.f32 0.0, %v451
  %v453 = vpop.f32.mrf.mxu0
  %v454 = vadd.f32 0.0, %v453
  %455 = vmatmul.bf16.gmra.mxu0 %v334
  %v456 = vpop.f32.mrf.mxu0
  %v457 = vadd.f32 0.0, %v456
  %v458 = vpop.f32.mrf.mxu0
  %v459 = vadd.f32 0.0, %v458
  %460 = vmatmul.bf16.gmra.mxu0 %v337
  %v461 = vpop.f32.mrf.mxu0
  %v462 = vadd.f32 0.0, %v461
  %v463 = vpop.f32.mrf.mxu0
  %v464 = vadd.f32 0.0, %v463
  %465 = vmatmul.bf16.gmra.mxu0 %v340
  %v466 = vpop.f32.mrf.mxu0
  %v467 = vadd.f32 0.0, %v466
  %v468 = vpop.f32.mrf.mxu0
  %v469 = vadd.f32 0.0, %v468
  %470 = vmatmul.bf16.gmra.mxu0 %v343
  %v471 = vpop.f32.mrf.mxu0
  %v472 = vadd.f32 0.0, %v471
  %v473 = vpop.f32.mrf.mxu0
  %v474 = vadd.f32 0.0, %v473
  %475 = vmatmul.bf16.gmra.mxu0 %v346
  %v476 = vpop.f32.mrf.mxu0
  %v477 = vadd.f32 0.0, %v476
  %v478 = vpop.f32.mrf.mxu0
  %v479 = vadd.f32 0.0, %v478
  %480 = vmatmul.bf16.gmra.mxu0 %v349
  %v481 = vpop.f32.mrf.mxu0
  %v482 = vadd.f32 0.0, %v481
  %v483 = vpop.f32.mrf.mxu0
  %v484 = vadd.f32 0.0, %v483
  %485 = vmatmul.bf16.gmra.mxu0 %v352
  %v486 = vpop.f32.mrf.mxu0
  %v487 = vadd.f32 0.0, %v486
  %v488 = vpop.f32.mrf.mxu0
  %v489 = vadd.f32 0.0, %v488
  %490 = vmatmul.bf16.gmra.mxu0 %v355
  %v491 = vpop.f32.mrf.mxu0
  %v492 = vadd.f32 0.0, %v491
  %v493 = vpop.f32.mrf.mxu0
  %v494 = vadd.f32 0.0, %v493
  %495 = vmatmul.bf16.gmra.mxu0 %v358
  %v496 = vpop.f32.mrf.mxu0
  %v497 = vadd.f32 0.0, %v496
  %v498 = vpop.f32.mrf.mxu0
  %v499 = vadd.f32 0.0, %v498
  %500 = vmatmul.bf16.gmra.mxu0 %v361
  %v501 = vpop.f32.mrf.mxu0
  %v502 = vadd.f32 0.0, %v501
  %v503 = vpop.f32.mrf.mxu0
  %v504 = vadd.f32 0.0, %v503
  %505 = vmatmul.bf16.gmra.mxu0 %v364
  %v506 = vpop.f32.mrf.mxu0
  %v507 = vadd.f32 0.0, %v506
  %v508 = vpop.f32.mrf.mxu0
  %v509 = vadd.f32 0.0, %v508
  %510 = vmatmul.bf16.gmra.mxu0 %v367
  %v511 = vpop.f32.mrf.mxu0
  %v512 = vadd.f32 0.0, %v511
  %v513 = vpop.f32.mrf.mxu0
  %v514 = vadd.f32 0.0, %v513
  %515 = vmatmul.bf16.gmra.mxu0 %v370
  %v516 = vpop.f32.mrf.mxu0
  %v517 = vadd.f32 0.0, %v516
  %v518 = vpop.f32.mrf.mxu0
  %v519 = vadd.f32 0.0, %v518
  %520 = vmatmul.bf16.gmra.mxu0 %v373
  %v521 = vpop.f32.mrf.mxu0
  %v522 = vadd.f32 0.0, %v521
  %v523 = vpop.f32.mrf.mxu0
  %v524 = vadd.f32 0.0, %v523
  %525 = vmatmul.bf16.gmra.mxu0 %v376
  %v526 = vpop.f32.mrf.mxu0
  %v527 = vadd.f32 0.0, %v526
  %v528 = vpop.f32.mrf.mxu0
  %v529 = vadd.f32 0.0, %v528
  %530 = vmatmul.bf16.gmra.mxu0 %v379
  %v531 = vpop.f32.mrf.mxu0
  %v532 = vadd.f32 0.0, %v531
  %v533 = vpop.f32.mrf.mxu0
  %v534 = vadd.f32 0.0, %v533
  %535 = vmatmul.bf16.gmra.mxu0 %v382
  %v536 = vpop.f32.mrf.mxu0
  %v537 = vadd.f32 0.0, %v536
  %v538 = vpop.f32.mrf.mxu0
  %v539 = vadd.f32 0.0, %v538
  %540 = vmatmul.bf16.gmra.mxu0 %v385
  %v541 = vpop.f32.mrf.mxu0
  %v542 = vadd.f32 0.0, %v541
  %v543 = vpop.f32.mrf.mxu0
  %v544 = vadd.f32 0.0, %v543
  %545 = vmatmul.bf16.gmra.mxu0 %v388
  %v546 = vpop.f32.mrf.mxu0
  %v547 = vadd.f32 0.0, %v546
  %v548 = vpop.f32.mrf.mxu0
  %v549 = vadd.f32 0.0, %v548
  %550 = vmatmul.bf16.gmra.mxu0 %v391
  %v551 = vpop.f32.mrf.mxu0
  %v552 = vadd.f32 0.0, %v551
  %v553 = vpop.f32.mrf.mxu0
  %v554 = vadd.f32 0.0, %v553
  %555 = vmatmul.bf16.gmra.mxu0 %v394
  %v556 = vpop.f32.mrf.mxu0
  %v557 = vadd.f32 0.0, %v556
  %v558 = vpop.f32.mrf.mxu0
  %v559 = vadd.f32 0.0, %v558
  %560 = vmatmul.bf16.gmra.mxu0 %v397
  %v561 = vpop.f32.mrf.mxu0
  %v562 = vadd.f32 0.0, %v561
  %v563 = vpop.f32.mrf.mxu0
  %v564 = vadd.f32 0.0, %v563
  %565 = vmatmul.bf16.gmra.mxu0 %v400
  %v566 = vpop.f32.mrf.mxu0
  %v567 = vadd.f32 0.0, %v566
  %v568 = vpop.f32.mrf.mxu0
  %v569 = vadd.f32 0.0, %v568
  %570 = vmatmul.bf16.gmra.mxu0 %v403
  %v571 = vpop.f32.mrf.mxu0
  %v572 = vadd.f32 0.0, %v571
  %v573 = vpop.f32.mrf.mxu0
  %v574 = vadd.f32 0.0, %v573
  %575 = vmatmul.bf16.gmra.mxu0 %v406
  %v576 = vpop.f32.mrf.mxu0
  %v577 = vadd.f32 0.0, %v576
  %v578 = vpop.f32.mrf.mxu0
  %v579 = vadd.f32 0.0, %v578
  %580 = vdwg.mxu0
  %v645 = vunpack.c.l.b16 %v21
  %v646 = vunpack.c.l.b16 %v22
  %v647 = vunpack.c.l.b16 %v23
  %v648 = vunpack.c.l.b16 %v24
  %v649 = vunpack.c.l.b16 %v25
  %v650 = vunpack.c.l.b16 %v26
  %v651 = vunpack.c.l.b16 %v27
  %v652 = vunpack.c.l.b16 %v28
  %v653 = vunpack.c.l.b16 %v29
  %v654 = vunpack.c.l.b16 %v30
  %v655 = vunpack.c.l.b16 %v31
  %v656 = vunpack.c.l.b16 %v32
  %v657 = vunpack.c.l.b16 %v33
  %v658 = vunpack.c.l.b16 %v34
  %v659 = vunpack.c.l.b16 %v35
  %v660 = vunpack.c.l.b16 %v36
  %v661 = vunpack.c.l.b16 %v37
  %v662 = vunpack.c.l.b16 %v38
  %v663 = vunpack.c.l.b16 %v39
  %v664 = vunpack.c.l.b16 %v40
  %v665 = vunpack.c.l.b16 %v41
  %v666 = vunpack.c.l.b16 %v42
  %v667 = vunpack.c.l.b16 %v43
  %v668 = vunpack.c.l.b16 %v44
  %v669 = vunpack.c.l.b16 %v45
  %v670 = vunpack.c.l.b16 %v46
  %v671 = vunpack.c.l.b16 %v47
  %v672 = vunpack.c.l.b16 %v48
  %v673 = vunpack.c.l.b16 %v49
  %v674 = vunpack.c.l.b16 %v50
  %v675 = vunpack.c.l.b16 %v51
  %v676 = vunpack.c.l.b16 %v52
  %v677 = vunpack.c.l.b16 %v53
  %v678 = vunpack.c.l.b16 %v54
  %v679 = vunpack.c.l.b16 %v55
  %v680 = vunpack.c.l.b16 %v56
  %v681 = vunpack.c.l.b16 %v57
  %v682 = vunpack.c.l.b16 %v58
  %v683 = vunpack.c.l.b16 %v59
  %v684 = vunpack.c.l.b16 %v60
  %v685 = vunpack.c.l.b16 %v61
  %v686 = vunpack.c.l.b16 %v62
  %v687 = vunpack.c.l.b16 %v63
  %v688 = vunpack.c.l.b16 %v64
  %v689 = vunpack.c.l.b16 %v65
  %v690 = vunpack.c.l.b16 %v66
  %v691 = vunpack.c.l.b16 %v67
  %v692 = vunpack.c.l.b16 %v68
  %v693 = vunpack.c.l.b16 %v69
  %v694 = vunpack.c.l.b16 %v70
  %v695 = vunpack.c.l.b16 %v71
  %v696 = vunpack.c.l.b16 %v72
  %v697 = vunpack.c.l.b16 %v73
  %v698 = vunpack.c.l.b16 %v74
  %v699 = vunpack.c.l.b16 %v75
  %v700 = vunpack.c.l.b16 %v76
  %v701 = vunpack.c.l.b16 %v77
  %v702 = vunpack.c.l.b16 %v78
  %v703 = vunpack.c.l.b16 %v79
  %v704 = vunpack.c.l.b16 %v80
  %v705 = vunpack.c.l.b16 %v81
  %v706 = vunpack.c.l.b16 %v82
  %v707 = vunpack.c.l.b16 %v83
  %v708 = vunpack.c.l.b16 %v84
  %v709 = vpack.c.b16 %v646, %v645
  %v710 = vpack.c.b16 %v648, %v647
  %v711 = vpack.c.b16 %v650, %v649
  %v712 = vpack.c.b16 %v652, %v651
  %v713 = vpack.c.b16 %v654, %v653
  %v714 = vpack.c.b16 %v656, %v655
  %v715 = vpack.c.b16 %v658, %v657
  %v716 = vpack.c.b16 %v660, %v659
  %v717 = vpack.c.b16 %v662, %v661
  %v718 = vpack.c.b16 %v664, %v663
  %v719 = vpack.c.b16 %v666, %v665
  %v720 = vpack.c.b16 %v668, %v667
  %v721 = vpack.c.b16 %v670, %v669
  %v722 = vpack.c.b16 %v672, %v671
  %v723 = vpack.c.b16 %v674, %v673
  %v724 = vpack.c.b16 %v676, %v675
  %v725 = vpack.c.b16 %v678, %v677
  %v726 = vpack.c.b16 %v680, %v679
  %v727 = vpack.c.b16 %v682, %v681
  %v728 = vpack.c.b16 %v684, %v683
  %v729 = vpack.c.b16 %v686, %v685
  %v730 = vpack.c.b16 %v688, %v687
  %v731 = vpack.c.b16 %v690, %v689
  %v732 = vpack.c.b16 %v692, %v691
  %v733 = vpack.c.b16 %v694, %v693
  %v734 = vpack.c.b16 %v696, %v695
  %v735 = vpack.c.b16 %v698, %v697
  %v736 = vpack.c.b16 %v700, %v699
  %v737 = vpack.c.b16 %v702, %v701
  %v738 = vpack.c.b16 %v704, %v703
  %v739 = vpack.c.b16 %v706, %v705
  %v740 = vpack.c.b16 %v708, %v707
  %v742 = vsel %vm311, %v709, 0
  %v745 = vsel %vm311, %v710, 0
  %v748 = vsel %vm311, %v711, 0
  %v751 = vsel %vm311, %v712, 0
  %v754 = vsel %vm311, %v713, 0
  %v757 = vsel %vm311, %v714, 0
  %v760 = vsel %vm311, %v715, 0
  %v763 = vsel %vm311, %v716, 0
  %v766 = vsel %vm311, %v717, 0
  %v769 = vsel %vm311, %v718, 0
  %v772 = vsel %vm311, %v719, 0
  %v775 = vsel %vm311, %v720, 0
  %v778 = vsel %vm311, %v721, 0
  %v781 = vsel %vm311, %v722, 0
  %v784 = vsel %vm311, %v723, 0
  %v787 = vsel %vm311, %v724, 0
  %v790 = vsel %vm311, %v725, 0
  %v793 = vsel %vm311, %v726, 0
  %v796 = vsel %vm311, %v727, 0
  %v799 = vsel %vm311, %v728, 0
  %v802 = vsel %vm311, %v729, 0
  %v805 = vsel %vm311, %v730, 0
  %v808 = vsel %vm311, %v731, 0
  %v811 = vsel %vm311, %v732, 0
  %v814 = vsel %vm311, %v733, 0
  %v817 = vsel %vm311, %v734, 0
  %v820 = vsel %vm311, %v735, 0
  %v823 = vsel %vm311, %v736, 0
  %v826 = vsel %vm311, %v737, 0
  %v829 = vsel %vm311, %v738, 0
  %v832 = vsel %vm311, %v739, 0
  %v835 = vsel %vm311, %v740, 0
  %v838 = vsel %vm408, %v85, 0
  %840 = vmatpush.bf16.msra.mxu0 0
  %841 = vmatpush.bf16.msra.mxu0 0
  %842 = vmatpush.bf16.msra.mxu0 0
  %843 = vmatpush.bf16.msra.mxu0 0
  %844 = vmatpush.bf16.msra.mxu0 0
  %845 = vmatpush.bf16.msra.mxu0 0
  %846 = vmatpush.bf16.msra.mxu0 0
  %847 = vmatpush.bf16.msra.mxu0 %v838
  %848 = vmatmul.bf16.gmra.mxu0 %v742
  %v849 = vpop.f32.mrf.mxu0
  %v850 = vadd.f32 %v422, %v849
  %v851 = vpop.f32.mrf.mxu0
  %v852 = vadd.f32 %v424, %v851
  %853 = vmatmul.bf16.gmra.mxu0 %v745
  %v854 = vpop.f32.mrf.mxu0
  %v855 = vadd.f32 %v427, %v854
  %v856 = vpop.f32.mrf.mxu0
  %v857 = vadd.f32 %v429, %v856
  %858 = vmatmul.bf16.gmra.mxu0 %v748
  %v859 = vpop.f32.mrf.mxu0
  %v860 = vadd.f32 %v432, %v859
  %v861 = vpop.f32.mrf.mxu0
  %v862 = vadd.f32 %v434, %v861
  %863 = vmatmul.bf16.gmra.mxu0 %v751
  %v864 = vpop.f32.mrf.mxu0
  %v865 = vadd.f32 %v437, %v864
  %v866 = vpop.f32.mrf.mxu0
  %v867 = vadd.f32 %v439, %v866
  %868 = vmatmul.bf16.gmra.mxu0 %v754
  %v869 = vpop.f32.mrf.mxu0
  %v870 = vadd.f32 %v442, %v869
  %v871 = vpop.f32.mrf.mxu0
  %v872 = vadd.f32 %v444, %v871
  %873 = vmatmul.bf16.gmra.mxu0 %v757
  %v874 = vpop.f32.mrf.mxu0
  %v875 = vadd.f32 %v447, %v874
  %v876 = vpop.f32.mrf.mxu0
  %v877 = vadd.f32 %v449, %v876
  %878 = vmatmul.bf16.gmra.mxu0 %v760
  %v879 = vpop.f32.mrf.mxu0
  %v880 = vadd.f32 %v452, %v879
  %v881 = vpop.f32.mrf.mxu0
  %v882 = vadd.f32 %v454, %v881
  %883 = vmatmul.bf16.gmra.mxu0 %v763
  %v884 = vpop.f32.mrf.mxu0
  %v885 = vadd.f32 %v457, %v884
  %v886 = vpop.f32.mrf.mxu0
  %v887 = vadd.f32 %v459, %v886
  %888 = vmatmul.bf16.gmra.mxu0 %v766
  %v889 = vpop.f32.mrf.mxu0
  %v890 = vadd.f32 %v462, %v889
  %v891 = vpop.f32.mrf.mxu0
  %v892 = vadd.f32 %v464, %v891
  %893 = vmatmul.bf16.gmra.mxu0 %v769
  %v894 = vpop.f32.mrf.mxu0
  %v895 = vadd.f32 %v467, %v894
  %v896 = vpop.f32.mrf.mxu0
  %v897 = vadd.f32 %v469, %v896
  %898 = vmatmul.bf16.gmra.mxu0 %v772
  %v899 = vpop.f32.mrf.mxu0
  %v900 = vadd.f32 %v472, %v899
  %v901 = vpop.f32.mrf.mxu0
  %v902 = vadd.f32 %v474, %v901
  %903 = vmatmul.bf16.gmra.mxu0 %v775
  %v904 = vpop.f32.mrf.mxu0
  %v905 = vadd.f32 %v477, %v904
  %v906 = vpop.f32.mrf.mxu0
  %v907 = vadd.f32 %v479, %v906
  %908 = vmatmul.bf16.gmra.mxu0 %v778
  %v909 = vpop.f32.mrf.mxu0
  %v910 = vadd.f32 %v482, %v909
  %v911 = vpop.f32.mrf.mxu0
  %v912 = vadd.f32 %v484, %v911
  %913 = vmatmul.bf16.gmra.mxu0 %v781
  %v914 = vpop.f32.mrf.mxu0
  %v915 = vadd.f32 %v487, %v914
  %v916 = vpop.f32.mrf.mxu0
  %v917 = vadd.f32 %v489, %v916
  %918 = vmatmul.bf16.gmra.mxu0 %v784
  %v919 = vpop.f32.mrf.mxu0
  %v920 = vadd.f32 %v492, %v919
  %v921 = vpop.f32.mrf.mxu0
  %v922 = vadd.f32 %v494, %v921
  %923 = vmatmul.bf16.gmra.mxu0 %v787
  %v924 = vpop.f32.mrf.mxu0
  %v925 = vadd.f32 %v497, %v924
  %v926 = vpop.f32.mrf.mxu0
  %v927 = vadd.f32 %v499, %v926
  %928 = vmatmul.bf16.gmra.mxu0 %v790
  %v929 = vpop.f32.mrf.mxu0
  %v930 = vadd.f32 %v502, %v929
  %v931 = vpop.f32.mrf.mxu0
  %v932 = vadd.f32 %v504, %v931
  %933 = vmatmul.bf16.gmra.mxu0 %v793
  %v934 = vpop.f32.mrf.mxu0
  %v935 = vadd.f32 %v507, %v934
  %v936 = vpop.f32.mrf.mxu0
  %v937 = vadd.f32 %v509, %v936
  %938 = vmatmul.bf16.gmra.mxu0 %v796
  %v939 = vpop.f32.mrf.mxu0
  %v940 = vadd.f32 %v512, %v939
  %v941 = vpop.f32.mrf.mxu0
  %v942 = vadd.f32 %v514, %v941
  %943 = vmatmul.bf16.gmra.mxu0 %v799
  %v944 = vpop.f32.mrf.mxu0
  %v945 = vadd.f32 %v517, %v944
  %v946 = vpop.f32.mrf.mxu0
  %v947 = vadd.f32 %v519, %v946
  %948 = vmatmul.bf16.gmra.mxu0 %v802
  %v949 = vpop.f32.mrf.mxu0
  %v950 = vadd.f32 %v522, %v949
  %v951 = vpop.f32.mrf.mxu0
  %v952 = vadd.f32 %v524, %v951
  %953 = vmatmul.bf16.gmra.mxu0 %v805
  %v954 = vpop.f32.mrf.mxu0
  %v955 = vadd.f32 %v527, %v954
  %v956 = vpop.f32.mrf.mxu0
  %v957 = vadd.f32 %v529, %v956
  %958 = vmatmul.bf16.gmra.mxu0 %v808
  %v959 = vpop.f32.mrf.mxu0
  %v960 = vadd.f32 %v532, %v959
  %v961 = vpop.f32.mrf.mxu0
  %v962 = vadd.f32 %v534, %v961
  %963 = vmatmul.bf16.gmra.mxu0 %v811
  %v964 = vpop.f32.mrf.mxu0
  %v965 = vadd.f32 %v537, %v964
  %v966 = vpop.f32.mrf.mxu0
  %v967 = vadd.f32 %v539, %v966
  %968 = vmatmul.bf16.gmra.mxu0 %v814
  %v969 = vpop.f32.mrf.mxu0
  %v970 = vadd.f32 %v542, %v969
  %v971 = vpop.f32.mrf.mxu0
  %v972 = vadd.f32 %v544, %v971
  %973 = vmatmul.bf16.gmra.mxu0 %v817
  %v974 = vpop.f32.mrf.mxu0
  %v975 = vadd.f32 %v547, %v974
  %v976 = vpop.f32.mrf.mxu0
  %v977 = vadd.f32 %v549, %v976
  %978 = vmatmul.bf16.gmra.mxu0 %v820
  %v979 = vpop.f32.mrf.mxu0
  %v980 = vadd.f32 %v552, %v979
  %v981 = vpop.f32.mrf.mxu0
  %v982 = vadd.f32 %v554, %v981
  %983 = vmatmul.bf16.gmra.mxu0 %v823
  %v984 = vpop.f32.mrf.mxu0
  %v985 = vadd.f32 %v557, %v984
  %v986 = vpop.f32.mrf.mxu0
  %v987 = vadd.f32 %v559, %v986
  %988 = vmatmul.bf16.gmra.mxu0 %v826
  %v989 = vpop.f32.mrf.mxu0
  %v990 = vadd.f32 %v562, %v989
  %v991 = vpop.f32.mrf.mxu0
  %v992 = vadd.f32 %v564, %v991
  %993 = vmatmul.bf16.gmra.mxu0 %v829
  %v994 = vpop.f32.mrf.mxu0
  %v995 = vadd.f32 %v567, %v994
  %v996 = vpop.f32.mrf.mxu0
  %v997 = vadd.f32 %v569, %v996
  %998 = vmatmul.bf16.gmra.mxu0 %v832
  %v999 = vpop.f32.mrf.mxu0
  %v1000 = vadd.f32 %v572, %v999
  %v1001 = vpop.f32.mrf.mxu0
  %v1002 = vadd.f32 %v574, %v1001
  %1003 = vmatmul.bf16.gmra.mxu0 %v835
  %v1004 = vpop.f32.mrf.mxu0
  %v1005 = vadd.f32 %v577, %v1004
  %v1006 = vpop.f32.mrf.mxu0
  %v1007 = vadd.f32 %v579, %v1006
  %1008 = vdwg.mxu0
  %v1009 = vld [vmem:[%s4] sm:$0x1]
  %v1011 = vperm.slane %v1009, 0
  %v1013 = vadd.f32 %v850, %v1011
  %v1014 = vadd.f32 %v852, %v1011
  %v1015 = vadd.f32 %v855, %v1011
  %v1016 = vadd.f32 %v857, %v1011
  %v1017 = vadd.f32 %v860, %v1011
  %v1018 = vadd.f32 %v862, %v1011
  %v1019 = vadd.f32 %v865, %v1011
  %v1020 = vadd.f32 %v867, %v1011
  %v1021 = vadd.f32 %v870, %v1011
  %v1022 = vadd.f32 %v872, %v1011
  %v1023 = vadd.f32 %v875, %v1011
  %v1024 = vadd.f32 %v877, %v1011
  %v1025 = vadd.f32 %v880, %v1011
  %v1026 = vadd.f32 %v882, %v1011
  %v1027 = vadd.f32 %v885, %v1011
  %v1028 = vadd.f32 %v887, %v1011
  %v1029 = vadd.f32 %v890, %v1011
  %v1030 = vadd.f32 %v892, %v1011
  %v1031 = vadd.f32 %v895, %v1011
  %v1032 = vadd.f32 %v897, %v1011
  %v1033 = vadd.f32 %v900, %v1011
  %v1034 = vadd.f32 %v902, %v1011
  %v1035 = vadd.f32 %v905, %v1011
  %v1036 = vadd.f32 %v907, %v1011
  %v1037 = vadd.f32 %v910, %v1011
  %v1038 = vadd.f32 %v912, %v1011
  %v1039 = vadd.f32 %v915, %v1011
  %v1040 = vadd.f32 %v917, %v1011
  %v1041 = vadd.f32 %v920, %v1011
  %v1042 = vadd.f32 %v922, %v1011
  %v1043 = vadd.f32 %v925, %v1011
  %v1044 = vadd.f32 %v927, %v1011
  %v1045 = vadd.f32 %v930, %v1011
  %v1046 = vadd.f32 %v932, %v1011
  %v1047 = vadd.f32 %v935, %v1011
  %v1048 = vadd.f32 %v937, %v1011
  %v1049 = vadd.f32 %v940, %v1011
  %v1050 = vadd.f32 %v942, %v1011
  %v1051 = vadd.f32 %v945, %v1011
  %v1052 = vadd.f32 %v947, %v1011
  %v1053 = vadd.f32 %v950, %v1011
  %v1054 = vadd.f32 %v952, %v1011
  %v1055 = vadd.f32 %v955, %v1011
  %v1056 = vadd.f32 %v957, %v1011
  %v1057 = vadd.f32 %v960, %v1011
  %v1058 = vadd.f32 %v962, %v1011
  %v1059 = vadd.f32 %v965, %v1011
  %v1060 = vadd.f32 %v967, %v1011
  %v1061 = vadd.f32 %v970, %v1011
  %v1062 = vadd.f32 %v972, %v1011
  %v1063 = vadd.f32 %v975, %v1011
  %v1064 = vadd.f32 %v977, %v1011
  %v1065 = vadd.f32 %v980, %v1011
  %v1066 = vadd.f32 %v982, %v1011
  %v1067 = vadd.f32 %v985, %v1011
  %v1068 = vadd.f32 %v987, %v1011
  %v1069 = vadd.f32 %v990, %v1011
  %v1070 = vadd.f32 %v992, %v1011
  %v1071 = vadd.f32 %v995, %v1011
  %v1072 = vadd.f32 %v997, %v1011
  %v1073 = vadd.f32 %v1000, %v1011
  %v1074 = vadd.f32 %v1002, %v1011
  %v1075 = vadd.f32 %v1005, %v1011
  %v1076 = vadd.f32 %v1007, %v1011
  %v1077 = vmax.f32 %v1013, 0.0
  %v1078 = vmax.f32 %v1014, 0.0
  %v1079 = vmax.f32 %v1015, 0.0
  %v1080 = vmax.f32 %v1016, 0.0
  %v1081 = vmax.f32 %v1017, 0.0
  %v1082 = vmax.f32 %v1018, 0.0
  %v1083 = vmax.f32 %v1019, 0.0
  %v1084 = vmax.f32 %v1020, 0.0
  %v1085 = vmax.f32 %v1021, 0.0
  %v1086 = vmax.f32 %v1022, 0.0
  %v1087 = vmax.f32 %v1023, 0.0
  %v1088 = vmax.f32 %v1024, 0.0
  %v1089 = vmax.f32 %v1025, 0.0
  %v1090 = vmax.f32 %v1026, 0.0
  %v1091 = vmax.f32 %v1027, 0.0
  %v1092 = vmax.f32 %v1028, 0.0
  %v1093 = vmax.f32 %v1029, 0.0
  %v1094 = vmax.f32 %v1030, 0.0
  %v1095 = vmax.f32 %v1031, 0.0
  %v1096 = vmax.f32 %v1032, 0.0
  %v1097 = vmax.f32 %v1033, 0.0
  %v1098 = vmax.f32 %v1034, 0.0
  %v1099 = vmax.f32 %v1035, 0.0
  %v1100 = vmax.f32 %v1036, 0.0
  %v1101 = vmax.f32 %v1037, 0.0
  %v1102 = vmax.f32 %v1038, 0.0
  %v1103 = vmax.f32 %v1039, 0.0
  %v1104 = vmax.f32 %v1040, 0.0
  %v1105 = vmax.f32 %v1041, 0.0
  %v1106 = vmax.f32 %v1042, 0.0
  %v1107 = vmax.f32 %v1043, 0.0
  %v1108 = vmax.f32 %v1044, 0.0
  %v1109 = vmax.f32 %v1045, 0.0
  %v1110 = vmax.f32 %v1046, 0.0
  %v1111 = vmax.f32 %v1047, 0.0
  %v1112 = vmax.f32 %v1048, 0.0
  %v1113 = vmax.f32 %v1049, 0.0
  %v1114 = vmax.f32 %v1050, 0.0
  %v1115 = vmax.f32 %v1051, 0.0
  %v1116 = vmax.f32 %v1052, 0.0
  %v1117 = vmax.f32 %v1053, 0.0
  %v1118 = vmax.f32 %v1054, 0.0
  %v1119 = vmax.f32 %v1055, 0.0
  %v1120 = vmax.f32 %v1056, 0.0
  %v1121 = vmax.f32 %v1057, 0.0
  %v1122 = vmax.f32 %v1058, 0.0
  %v1123 = vmax.f32 %v1059, 0.0
  %v1124 = vmax.f32 %v1060, 0.0
  %v1125 = vmax.f32 %v1061, 0.0
  %v1126 = vmax.f32 %v1062, 0.0
  %v1127 = vmax.f32 %v1063, 0.0
  %v1128 = vmax.f32 %v1064, 0.0
  %v1129 = vmax.f32 %v1065, 0.0
  %v1130 = vmax.f32 %v1066, 0.0
  %v1131 = vmax.f32 %v1067, 0.0
  %v1132 = vmax.f32 %v1068, 0.0
  %v1133 = vmax.f32 %v1069, 0.0
  %v1134 = vmax.f32 %v1070, 0.0
  %v1135 = vmax.f32 %v1071, 0.0
  %v1136 = vmax.f32 %v1072, 0.0
  %v1137 = vmax.f32 %v1073, 0.0
  %v1138 = vmax.f32 %v1074, 0.0
  %v1139 = vmax.f32 %v1075, 0.0
  %v1140 = vmax.f32 %v1076, 0.0
  %vm1141 = vcmask 130048
  %1142 = vst.msk [vmem:[%s5] sm:$0xff] %vm1141, %v1077
  %1143 = vst.msk [vmem:[%s5 + $0x8] sm:$0xff] %vm1141, %v1078
  %1144 = vst.msk [vmem:[%s5 + $0x10] sm:$0xff] %vm1141, %v1079
  %1145 = vst.msk [vmem:[%s5 + $0x18] sm:$0xff] %vm1141, %v1080
  %1146 = vst.msk [vmem:[%s5 + $0x20] sm:$0xff] %vm1141, %v1081
  %1147 = vst.msk [vmem:[%s5 + $0x28] sm:$0xff] %vm1141, %v1082
  %1148 = vst.msk [vmem:[%s5 + $0x30] sm:$0xff] %vm1141, %v1083
  %1149 = vst.msk [vmem:[%s5 + $0x38] sm:$0xff] %vm1141, %v1084
  %1150 = vst.msk [vmem:[%s5 + $0x40] sm:$0xff] %vm1141, %v1085
  %1151 = vst.msk [vmem:[%s5 + $0x48] sm:$0xff] %vm1141, %v1086
  %1152 = vst.msk [vmem:[%s5 + $0x50] sm:$0xff] %vm1141, %v1087
  %1153 = vst.msk [vmem:[%s5 + $0x58] sm:$0xff] %vm1141, %v1088
  %1154 = vst.msk [vmem:[%s5 + $0x60] sm:$0xff] %vm1141, %v1089
  %1155 = vst.msk [vmem:[%s5 + $0x68] sm:$0xff] %vm1141, %v1090
  %1156 = vst.msk [vmem:[%s5 + $0x70] sm:$0xff] %vm1141, %v1091
  %1157 = vst.msk [vmem:[%s5 + $0x78] sm:$0xff] %vm1141, %v1092
  %1158 = vst.msk [vmem:[%s5 + $0x80] sm:$0xff] %vm1141, %v1093
  %1159 = vst.msk [vmem:[%s5 + $0x88] sm:$0xff] %vm1141, %v1094
  %1160 = vst.msk [vmem:[%s5 + $0x90] sm:$0xff] %vm1141, %v1095
  %1161 = vst.msk [vmem:[%s5 + $0x98] sm:$0xff] %vm1141, %v1096
  %1162 = vst.msk [vmem:[%s5 + $0xa0] sm:$0xff] %vm1141, %v1097
  %1163 = vst.msk [vmem:[%s5 + $0xa8] sm:$0xff] %vm1141, %v1098
  %1164 = vst.msk [vmem:[%s5 + $0xb0] sm:$0xff] %vm1141, %v1099
  %1165 = vst.msk [vmem:[%s5 + $0xb8] sm:$0xff] %vm1141, %v1100
  %1166 = vst.msk [vmem:[%s5 + $0xc0] sm:$0xff] %vm1141, %v1101
  %1167 = vst.msk [vmem:[%s5 + $0xc8] sm:$0xff] %vm1141, %v1102
  %1168 = vst.msk [vmem:[%s5 + $0xd0] sm:$0xff] %vm1141, %v1103
  %1169 = vst.msk [vmem:[%s5 + $0xd8] sm:$0xff] %vm1141, %v1104
  %1170 = vst.msk [vmem:[%s5 + $0xe0] sm:$0xff] %vm1141, %v1105
  %1171 = vst.msk [vmem:[%s5 + $0xe8] sm:$0xff] %vm1141, %v1106
  %1172 = vst.msk [vmem:[%s5 + $0xf0] sm:$0xff] %vm1141, %v1107
  %1173 = vst.msk [vmem:[%s5 + $0xf8] sm:$0xff] %vm1141, %v1108
  %1174 = vst.msk [vmem:[%s5 + $0x100] sm:$0xff] %vm1141, %v1109
  %1175 = vst.msk [vmem:[%s5 + $0x108] sm:$0xff] %vm1141, %v1110
  %1176 = vst.msk [vmem:[%s5 + $0x110] sm:$0xff] %vm1141, %v1111
  %1177 = vst.msk [vmem:[%s5 + $0x118] sm:$0xff] %vm1141, %v1112
  %1178 = vst.msk [vmem:[%s5 + $0x120] sm:$0xff] %vm1141, %v1113
  %1179 = vst.msk [vmem:[%s5 + $0x128] sm:$0xff] %vm1141, %v1114
  %1180 = vst.msk [vmem:[%s5 + $0x130] sm:$0xff] %vm1141, %v1115
  %1181 = vst.msk [vmem:[%s5 + $0x138] sm:$0xff] %vm1141, %v1116
  %1182 = vst.msk [vmem:[%s5 + $0x140] sm:$0xff] %vm1141, %v1117
  %1183 = vst.msk [vmem:[%s5 + $0x148] sm:$0xff] %vm1141, %v1118
  %1184 = vst.msk [vmem:[%s5 + $0x150] sm:$0xff] %vm1141, %v1119
  %1185 = vst.msk [vmem:[%s5 + $0x158] sm:$0xff] %vm1141, %v1120
  %1186 = vst.msk [vmem:[%s5 + $0x160] sm:$0xff] %vm1141, %v1121
  %1187 = vst.msk [vmem:[%s5 + $0x168] sm:$0xff] %vm1141, %v1122
  %1188 = vst.msk [vmem:[%s5 + $0x170] sm:$0xff] %vm1141, %v1123
  %1189 = vst.msk [vmem:[%s5 + $0x178] sm:$0xff] %vm1141, %v1124
  %1190 = vst.msk [vmem:[%s5 + $0x180] sm:$0xff] %vm1141, %v1125
  %1191 = vst.msk [vmem:[%s5 + $0x188] sm:$0xff] %vm1141, %v1126
  %1192 = vst.msk [vmem:[%s5 + $0x190] sm:$0xff] %vm1141, %v1127
  %1193 = vst.msk [vmem:[%s5 + $0x198] sm:$0xff] %vm1141, %v1128
  %1194 = vst.msk [vmem:[%s5 + $0x1a0] sm:$0xff] %vm1141, %v1129
  %1195 = vst.msk [vmem:[%s5 + $0x1a8] sm:$0xff] %vm1141, %v1130
  %1196 = vst.msk [vmem:[%s5 + $0x1b0] sm:$0xff] %vm1141, %v1131
  %1197 = vst.msk [vmem:[%s5 + $0x1b8] sm:$0xff] %vm1141, %v1132
  %1198 = vst.msk [vmem:[%s5 + $0x1c0] sm:$0xff] %vm1141, %v1133
  %1199 = vst.msk [vmem:[%s5 + $0x1c8] sm:$0xff] %vm1141, %v1134
  %1200 = vst.msk [vmem:[%s5 + $0x1d0] sm:$0xff] %vm1141, %v1135
  %1201 = vst.msk [vmem:[%s5 + $0x1d8] sm:$0xff] %vm1141, %v1136
  %1202 = vst.msk [vmem:[%s5 + $0x1e0] sm:$0xff] %vm1141, %v1137
  %1203 = vst.msk [vmem:[%s5 + $0x1e8] sm:$0xff] %vm1141, %v1138
  %1204 = vst.msk [vmem:[%s5 + $0x1f0] sm:$0xff] %vm1141, %v1139
  %1205 = vst.msk [vmem:[%s5 + $0x1f8] sm:$0xff] %vm1141, %v1140
  // Predicated region
  $region22: #{bottleneck_forward.5} parent=0 // pred_check
    _
  $region23: #{bottleneck_forward.5} parent=0 // pred_check_branch
    %1207 = sbr.rel (0) target = $region25
  $region24: #{bottleneck_forward.5} parent=0 // pred_region
    _
  $region25: #{bottleneck_forward.5} parent=0 // pred_fallthru
    _
  // Predicated region
  $region26: #{bottleneck_forward.5} parent=0 // pred_check
    _
  $region27: #{bottleneck_forward.5} parent=0 // pred_check_branch
    %1209 = sbr.rel (0) target = $region29
  $region28: #{bottleneck_forward.5} parent=0 // pred_region
    _
  $region29: #{bottleneck_forward.5} parent=0 // pred_fallthru
    _

// kernel: bottleneck_forward.4
$region0: #{bottleneck_forward.4}
  #allocation0 [shape = 'u32[]', space=smem, size = 0x4, offset = 0x4, fixed_abs, tag = 'smem constant byte address 0x4 - core index']
  #allocation1 [shape = 'u32[72,128]{1,0:T(1,128)}', space=vmem, size = 0x9000, scoped, tag = 'internal scratch']
  %s0 = inlined_call_operand.vmem [shape: bf16[2,18,18,4], index: 0, kind: input, shape index: {}]
  %s1 = inlined_call_operand.vmem [shape: bf16[3,3,4,4], index: 1, kind: input, shape index: {}]
  %s2 = inlined_call_operand.vmem [shape: f32[1,4], index: 2, kind: input, shape index: {}]
  %s3 = inlined_call_operand.vmem [shape: bf16[512,4], index: 3, kind: output, shape index: {}]
  %s4 = sld [smem:[#allocation0]]
  $region45: #{bottleneck_forward.4} parent=0
    _
  %s6 = ssub.s32 1, %s4
  %s7 = scalar_select 0, %s6, %s4
  loop: start=0, step=1, limit=4
  $region2: #{bottleneck_forward.4} parent=0 // loop_pre_header
    _
  $region3: #{bottleneck_forward.4} parent=0 // loop_header
    %s9 = sphi 0, %s13
    %p10 = scmp.ge.s32.totalorder %s9, 4
    %s16 = sphi 0, %s28
    %s17 = sphi 0, %s24
    %s18 = sphi 0, %s16
    %s19 = sphi 0, %s17
    %s20 = sphi 0, %s18
    %s21 = sphi 0, %s19
    %s31 = sphi 0, %s33
    %s34 = sphi 0, %s31
    %s35 = sphi 0, %s34
    %s51 = sphi 0, %s35
    %s55 = sphi 0, %s55
    %s57 = sphi 0, %s55
    %s58 = sphi 0, %s57
    %s72 = sphi 0, %s58
    %s76 = sphi 0, %s76
    %s78 = sphi 0, %s76
    %s79 = sphi 0, %s78
    %s93 = sphi 0, %s79
    %s101 = sphi 0, %s103
    %s104 = sphi 0, %s101
    %s105 = sphi 0, %s104
    %s121 = sphi 0, %s105
  $region4: #{bottleneck_forward.4} parent=0 // loop_header_branch
    %12 = sbr.rel (%p10) target = $region8
  $region5: #{bottleneck_forward.4} parent=0 // loop_body
    %s14 = ssub.s32 %s9, 1
    %s15 = ssub.s32 %s9, 2
    %s22 = sadd.s32 1, %s17
    %p23 = scmp.ge.s32.totalorder %s22, 1
    %s24 = scalar_select %p23, 0, %s22
    %s25 = sadd.s32 1, %s16
    %s26 = scalar_select %p23, %s25, %s16
    %p27 = scmp.ge.s32.totalorder %s26, 2
    %s28 = scalar_select %p27, 0, %s26
    %s29 = ssub.s32 %s16, %s28
    %p30 = scmp.eq.s32.totalorder %s29, 0
    %s32 = sadd.s32 %s31, 1
    %s33 = scalar_select %p30, %s31, %s32
    %p36 = pneg %p30
    %p37 = scmp.eq.s32.totalorder %s9, 1
    %p38 = por %p36, %p37
    %p39 = scmp.ne.s32.totalorder %s31, %s34
    %p40 = scmp.eq.s32.totalorder %s9, 0
    %p41 = por %p39, %p40
    %p42 = scmp.ne.s32.totalorder %s31, %s34
    %p43 = scmp.eq.s32.totalorder %s14, 1
    %p44 = por %p42, %p43
    %p45 = scmp.ne.s32.totalorder %s34, %s35
    %p46 = scmp.eq.s32.totalorder %s14, 0
    %p47 = por %p45, %p46
    %p48 = scmp.ne.s32.totalorder %s34, %s35
    %p49 = scmp.eq.s32.totalorder %s15, 1
    %p50 = por %p48, %p49
    %p52 = scmp.ne.s32.totalorder %s35, %s51
    %p53 = scmp.eq.s32.totalorder %s15, 0
    %p54 = por %p52, %p53
    %s56 = sadd.s32 %s55, 1
    %p59 = scmp.eq.s32.totalorder %s9, 1
    %p60 = scmp.ne.s32.totalorder %s55, %s57
    %p61 = scmp.eq.s32.totalorder %s9, 0
    %p62 = por %p60, %p61
    %p63 = scmp.ne.s32.totalorder %s55, %s57
    %p64 = scmp.eq.s32.totalorder %s14, 1
    %p65 = por %p63, %p64
    %p66 = scmp.ne.s32.totalorder %s57, %s58
    %p67 = scmp.eq.s32.totalorder %s14, 0
    %p68 = por %p66, %p67
    %p69 = scmp.ne.s32.totalorder %s57, %s58
    %p70 = scmp.eq.s32.totalorder %s15, 1
    %p71 = por %p69, %p70
    %p73 = scmp.ne.s32.totalorder %s58, %s72
    %p74 = scmp.eq.s32.totalorder %s15, 0
    %p75 = por %p73, %p74
    %s77 = sadd.s32 %s76, 1
    %p80 = scmp.eq.s32.totalorder %s9, 1
    %p81 = scmp.ne.s32.totalorder %s76, %s78
    %p82 = scmp.eq.s32.totalorder %s9, 0
    %p83 = por %p81, %p82
    %p84 = scmp.ne.s32.totalorder %s76, %s78
    %p85 = scmp.eq.s32.totalorder %s14, 1
    %p86 = por %p84, %p85
    %p87 = scmp.ne.s32.totalorder %s78, %s79
    %p88 = scmp.eq.s32.totalorder %s14, 0
    %p89 = por %p87, %p88
    %p90 = scmp.ne.s32.totalorder %s78, %s79
    %p91 = scmp.eq.s32.totalorder %s15, 1
    %p92 = por %p90, %p91
    %p94 = scmp.ne.s32.totalorder %s79, %s93
    %p95 = scmp.eq.s32.totalorder %s15, 0
    %p96 = por %p94, %p95
    %s97 = sadd.s32 %s16, %s17
    %s98 = sadd.s32 %s28, %s24
    %s99 = ssub.s32 %s97, %s98
    %p100 = scmp.eq.s32.totalorder %s99, 0
    %s102 = sadd.s32 %s101, 1
    %s103 = scalar_select %p100, %s101, %s102
    %p106 = pneg %p100
    %p107 = scmp.eq.s32.totalorder %s9, 1
    %p108 = por %p106, %p107
    %p109 = scmp.ne.s32.totalorder %s101, %s104
    %p110 = scmp.eq.s32.totalorder %s9, 0
    %p111 = por %p109, %p110
    %p112 = scmp.ne.s32.totalorder %s101, %s104
    %p113 = scmp.eq.s32.totalorder %s14, 1
    %p114 = por %p112, %p113
    %p115 = scmp.ne.s32.totalorder %s104, %s105
    %p116 = scmp.eq.s32.totalorder %s14, 0
    %p117 = por %p115, %p116
    %p118 = scmp.ne.s32.totalorder %s104, %s105
    %p119 = scmp.eq.s32.totalorder %s15, 1
    %p120 = por %p118, %p119
    %p122 = scmp.ne.s32.totalorder %s105, %s121
    %p123 = scmp.eq.s32.totalorder %s15, 0
    %p124 = por %p122, %p123
    %p125 = scmp.le.s32.totalorder 1, %s9
    %p126 = scmp.lt.s32.totalorder %s9, 3
    %p127 = pnand %p125, %p126
    %p128 = pneg %p127
    // Predicated region
    $region9: #{bottleneck_forward.4} parent=5 // pred_check
      _
    $region10: #{bottleneck_forward.4} parent=5 // pred_check_branch
      %130 = sbr.rel (%p127) target = $region12
    $region11: #{bottleneck_forward.4} parent=5 // pred_region
      %s131 = ssub.s32 %s9, 1
      // Predicated region
      $region13: #{bottleneck_forward.4} parent=11 // pred_check
        %p132 = pneg %p68
      $region14: #{bottleneck_forward.4} parent=11 // pred_check_branch
        %134 = sbr.rel (%p132) target = $region16
      $region15: #{bottleneck_forward.4} parent=11 // pred_region
        _
      $region16: #{bottleneck_forward.4} parent=11 // pred_fallthru
        _
      // Predicated region
      $region17: #{bottleneck_forward.4} parent=11 // pred_check
        %p135 = pneg %p89
      $region18: #{bottleneck_forward.4} parent=11 // pred_check_branch
        %137 = sbr.rel (%p135) target = $region20
      $region19: #{bottleneck_forward.4} parent=11 // pred_region
        _
      $region20: #{bottleneck_forward.4} parent=11 // pred_fallthru
        _
    $region12: #{bottleneck_forward.4} parent=5 // pred_fallthru
      _
    %p138 = scmp.lt.s32.totalorder %s9, 2
    // Predicated region
    $region21: #{bottleneck_forward.4} parent=5 // pred_check
      %p139 = pneg %p138
    $region22: #{bottleneck_forward.4} parent=5 // pred_check_branch
      %141 = sbr.rel (%p139) target = $region24
    $region23: #{bottleneck_forward.4} parent=5 // pred_region
      // Predicated region
      $region25: #{bottleneck_forward.4} parent=23 // pred_check
        %p142 = pneg %p41
      $region26: #{bottleneck_forward.4} parent=23 // pred_check_branch
        %144 = sbr.rel (%p142) target = $region28
      $region27: #{bottleneck_forward.4} parent=23 // pred_region
        %p145 = scmp.lt.s32.totalorder %s16, 1
        %s146 = scalar_select %p145, %s16, 1
        %s147 = smul.addr %s146, 54
        %s148 = smul.addr %s147, 4
        %s149 = scalar_lea.vmem %s0, %s148
      $region28: #{bottleneck_forward.4} parent=23 // pred_fallthru
        _
    $region24: #{bottleneck_forward.4} parent=5 // pred_fallthru
      _
    %p150 = scmp.le.s32.totalorder 1, %s9
    %p151 = scmp.lt.s32.totalorder %s9, 3
    %p152 = pnand %p150, %p151
    %p153 = pneg %p152
    // Predicated region
    $region29: #{bottleneck_forward.4} parent=5 // pred_check
      _
    $region30: #{bottleneck_forward.4} parent=5 // pred_check_branch
      %155 = sbr.rel (%p152) target = $region32
    $region31: #{bottleneck_forward.4} parent=5 // pred_region
      %s156 = ssub.s32 %s9, 1
      %p157 = scmp.lt.s32.totalorder %s18, 1
      %s158 = scalar_select %p157, %s18, 1
      %s159 = smul.addr %s158, 54
      %s160 = smul.addr %s159, 4
      %s161 = scalar_lea.vmem %s0, %s160
      %p162 = pneg %p47
      %p163 = pneg %p44
      %p164 = pneg %p68
      %p165 = pneg %p65
      %p166 = pneg %p89
      %p167 = pneg %p86
      %p168 = pneg %p117
      %p169 = pneg %p114
      %s170 = sadd.s32 %s18, %s19
      %s171 = smul.u32 32, %s170
      %p172 = scmp.lt.s32.totalorder %s171, 63
      %s173 = scalar_select %p172, %s171, 63
      %s174 = smul.addr %s173, 4
      %s175 = scalar_lea.vmem %s3, %s174
      %p176 = scmp.lt.s32.totalorder %s18, 1
      %s177 = scalar_select %p176, %s18, 1
      %s178 = smul.addr %s177, 54
      %s179 = smul.addr %s178, 4
      %s180 = scalar_lea.vmem %s0, %s179
      %s181 = sadd.s32 %s18, %s19
      %s182 = smul.u32 32, %s181
      %p183 = scmp.lt.s32.totalorder %s182, 63
      %s184 = scalar_select %p183, %s182, 63
      %s185 = smul.addr %s184, 4
      %s186 = scalar_lea.vmem %s3, %s185
      %s187 = sadd.s32 %s18, %s19
      %s188 = smul.u32 32, %s187
      %s190 = smul.u32 %s19, 16
      %s191 = smul.u32 %s190, 3
      %s192 = smul.addr %s191, 4
      %s193 = scalar_lea.vmem %s180, %s192
      %v194 = vld [vmem:[%s193] sm:$0xf]
      %v195 = vld [vmem:[%s193 + $0x4] sm:$0xf]
      %v196 = vld [vmem:[%s193 + $0xc] sm:$0xf]
      %v197 = vld [vmem:[%s193 + $0x10] sm:$0xf]
      %v198 = vld [vmem:[%s193 + $0x18] sm:$0xf]
      %v199 = vld [vmem:[%s193 + $0x1c] sm:$0xf]
      %v200 = vld [vmem:[%s193 + $0x24] sm:$0xf]
      %v201 = vld [vmem:[%s193 + $0x28] sm:$0xf]
      %v202 = vld [vmem:[%s193 + $0x30] sm:$0xf]
      %v203 = vld [vmem:[%s193 + $0x34] sm:$0xf]
      %v204 = vld [vmem:[%s193 + $0x3c] sm:$0xf]
      %v205 = vld [vmem:[%s193 + $0x40] sm:$0xf]
      %v206 = vld [vmem:[%s193 + $0x48] sm:$0xf]
      %v207 = vld [vmem:[%s193 + $0x4c] sm:$0xf]
      %v208 = vld [vmem:[%s193 + $0x54] sm:$0xf]
      %v209 = vld [vmem:[%s193 + $0x58] sm:$0xf]
      %v210 = vld [vmem:[%s193 + $0x60] sm:$0xf]
      %v211 = vld [vmem:[%s193 + $0x64] sm:$0xf]
      %v212 = vld [vmem:[%s193 + $0x6c] sm:$0xf]
      %v213 = vld [vmem:[%s193 + $0x70] sm:$0xf]
      %v214 = vld [vmem:[%s193 + $0x78] sm:$0xf]
      %v215 = vld [vmem:[%s193 + $0x7c] sm:$0xf]
      %v216 = vld [vmem:[%s193 + $0x84] sm:$0xf]
      %v217 = vld [vmem:[%s193 + $0x88] sm:$0xf]
      %v218 = vld [vmem:[%s193 + $0x90] sm:$0xf]
      %v219 = vld [vmem:[%s193 + $0x94] sm:$0xf]
      %v220 = vld [vmem:[%s193 + $0x9c] sm:$0xf]
      %v221 = vld [vmem:[%s193 + $0xa0] sm:$0xf]
      %v222 = vld [vmem:[%s193 + $0xa8] sm:$0xf]
      %v223 = vld [vmem:[%s193 + $0xac] sm:$0xf]
      %v224 = vld [vmem:[%s193 + $0xb4] sm:$0xf]
      %v225 = vld [vmem:[%s193 + $0xb8] sm:$0xf]
      %v226 = vld [vmem:[%s1] sm:$0x3]
      %v227 = vld [vmem:[%s193 + $0x8] sm:$0x1]
      %v228 = vld [vmem:[%s193 + $0x14] sm:$0x1]
      %v229 = vld [vmem:[%s193 + $0x20] sm:$0x1]
      %v230 = vld [vmem:[%s193 + $0x2c] sm:$0x1]
      %v231 = vld [vmem:[%s193 + $0x38] sm:$0x1]
      %v232 = vld [vmem:[%s193 + $0x44] sm:$0x1]
      %v233 = vld [vmem:[%s193 + $0x50] sm:$0x1]
      %v234 = vld [vmem:[%s193 + $0x5c] sm:$0x1]
      %v235 = vld [vmem:[%s193 + $0x68] sm:$0x1]
      %v236 = vld [vmem:[%s193 + $0x74] sm:$0x1]
      %v237 = vld [vmem:[%s193 + $0x80] sm:$0x1]
      %v238 = vld [vmem:[%s193 + $0x8c] sm:$0x1]
      %v239 = vld [vmem:[%s193 + $0x98] sm:$0x1]
      %v240 = vld [vmem:[%s193 + $0xa4] sm:$0x1]
      %v241 = vld [vmem:[%s193 + $0xb0] sm:$0x1]
      %v242 = vld [vmem:[%s193 + $0xbc] sm:$0x1]
      %vm243 = vsmask.f32 3328
      %vm244 = vsmask.f32 7440
      %vm245 = vmor %vm243, %vm244
      %v247 = vshrl.u32 %v194, 16
      %v249 = vrot.slane %v247, 4
      %v250 = vshll.u32 %v194, 16
      %v252 = vrot.slane %v250, 5
      %v253 = vor.u32 %v249, %v252
      %v254 = vrot.slane %v253, 4
      %v256 = vshll.u32 %v195, 16
      %v258 = vrot.slane %v256, 5
      %v259 = vsel %vm245, %v254, %v258
      %v260 = vshrl.u32 %v195, 16
      %v262 = vrot.slane %v260, 4
      %v263 = vor.u32 %v262, %v258
      %v264 = vrot.slane %v263, 4
      %v266 = vshll.u32 %v227, 16
      %v268 = vrot.slane %v266, 5
      %v269 = vsel %vm245, %v264, %v268
      %v271 = vshrl.u32 %v196, 16
      %v273 = vrot.slane %v271, 4
      %v274 = vshll.u32 %v196, 16
      %v276 = vrot.slane %v274, 5
      %v277 = vor.u32 %v273, %v276
      %v278 = vrot.slane %v277, 4
      %v280 = vshll.u32 %v197, 16
      %v282 = vrot.slane %v280, 5
      %v283 = vsel %vm245, %v278, %v282
      %v284 = vshrl.u32 %v197, 16
      %v286 = vrot.slane %v284, 4
      %v287 = vor.u32 %v286, %v282
      %v288 = vrot.slane %v287, 4
      %v290 = vshll.u32 %v228, 16
      %v292 = vrot.slane %v290, 5
      %v293 = vsel %vm245, %v288, %v292
      %v295 = vshrl.u32 %v198, 16
      %v297 = vrot.slane %v295, 4
      %v298 = vshll.u32 %v198, 16
      %v300 = vrot.slane %v298, 5
      %v301 = vor.u32 %v297, %v300
      %v302 = vrot.slane %v301, 4
      %v304 = vshll.u32 %v199, 16
      %v306 = vrot.slane %v304, 5
      %v307 = vsel %vm245, %v302, %v306
      %v308 = vshrl.u32 %v199, 16
      %v310 = vrot.slane %v308, 4
      %v311 = vor.u32 %v310, %v306
      %v312 = vrot.slane %v311, 4
      %v314 = vshll.u32 %v229, 16
      %v316 = vrot.slane %v314, 5
      %v317 = vsel %vm245, %v312, %v316
      %v319 = vshrl.u32 %v200, 16
      %v321 = vrot.slane %v319, 4
      %v322 = vshll.u32 %v200, 16
      %v324 = vrot.slane %v322, 5
      %v325 = vor.u32 %v321, %v324
      %v326 = vrot.slane %v325, 4
      %v328 = vshll.u32 %v201, 16
      %v330 = vrot.slane %v328, 5
      %v331 = vsel %vm245, %v326, %v330
      %v332 = vshrl.u32 %v201, 16
      %v334 = vrot.slane %v332, 4
      %v335 = vor.u32 %v334, %v330
      %v336 = vrot.slane %v335, 4
      %v338 = vshll.u32 %v230, 16
      %v340 = vrot.slane %v338, 5
      %v341 = vsel %vm245, %v336, %v340
      %v343 = vshrl.u32 %v202, 16
      %v345 = vrot.slane %v343, 4
      %v346 = vshll.u32 %v202, 16
      %v348 = vrot.slane %v346, 5
      %v349 = vor.u32 %v345, %v348
      %v350 = vrot.slane %v349, 4
      %v352 = vshll.u32 %v203, 16
      %v354 = vrot.slane %v352, 5
      %v355 = vsel %vm245, %v350, %v354
      %v356 = vshrl.u32 %v203, 16
      %v358 = vrot.slane %v356, 4
      %v359 = vor.u32 %v358, %v354
      %v360 = vrot.slane %v359, 4
      %v362 = vshll.u32 %v231, 16
      %v364 = vrot.slane %v362, 5
      %v365 = vsel %vm245, %v360, %v364
      %v367 = vshrl.u32 %v204, 16
      %v369 = vrot.slane %v367, 4
      %v370 = vshll.u32 %v204, 16
      %v372 = vrot.slane %v370, 5
      %v373 = vor.u32 %v369, %v372
      %v374 = vrot.slane %v373, 4
      %v376 = vshll.u32 %v205, 16
      %v378 = vrot.slane %v376, 5
      %v379 = vsel %vm245, %v374, %v378
      %v380 = vshrl.u32 %v205, 16
      %v382 = vrot.slane %v380, 4
      %v383 = vor.u32 %v382, %v378
      %v384 = vrot.slane %v383, 4
      %v386 = vshll.u32 %v232, 16
      %v388 = vrot.slane %v386, 5
      %v389 = vsel %vm245, %v384, %v388
      %v391 = vshrl.u32 %v206, 16
      %v393 = vrot.slane %v391, 4
      %v394 = vshll.u32 %v206, 16
      %v396 = vrot.slane %v394, 5
      %v397 = vor.u32 %v393, %v396
      %v398 = vrot.slane %v397, 4
      %v400 = vshll.u32 %v207, 16
      %v402 = vrot.slane %v400, 5
      %v403 = vsel %vm245, %v398, %v402
      %v404 = vshrl.u32 %v207, 16
      %v406 = vrot.slane %v404, 4
      %v407 = vor.u32 %v406, %v402
      %v408 = vrot.slane %v407, 4
      %v410 = vshll.u32 %v233, 16
      %v412 = vrot.slane %v410, 5
      %v413 = vsel %vm245, %v408, %v412
      %v415 = vshrl.u32 %v208, 16
      %v417 = vrot.slane %v415, 4
      %v418 = vshll.u32 %v208, 16
      %v420 = vrot.slane %v418, 5
      %v421 = vor.u32 %v417, %v420
      %v422 = vrot.slane %v421, 4
      %v424 = vshll.u32 %v209, 16
      %v426 = vrot.slane %v424, 5
      %v427 = vsel %vm245, %v422, %v426
      %v428 = vshrl.u32 %v209, 16
      %v430 = vrot.slane %v428, 4
      %v431 = vor.u32 %v430, %v426
      %v432 = vrot.slane %v431, 4
      %v434 = vshll.u32 %v234, 16
      %v436 = vrot.slane %v434, 5
      %v437 = vsel %vm245, %v432, %v436
      %v439 = vshrl.u32 %v210, 16
      %v441 = vrot.slane %v439, 4
      %v442 = vshll.u32 %v210, 16
      %v444 = vrot.slane %v442, 5
      %v445 = vor.u32 %v441, %v444
      %v446 = vrot.slane %v445, 4
      %v448 = vshll.u32 %v211, 16
      %v450 = vrot.slane %v448, 5
      %v451 = vsel %vm245, %v446, %v450
      %v452 = vshrl.u32 %v211, 16
      %v454 = vrot.slane %v452, 4
      %v455 = vor.u32 %v454, %v450
      %v456 = vrot.slane %v455, 4
      %v458 = vshll.u32 %v235, 16
      %v460 = vrot.slane %v458, 5
      %v461 = vsel %vm245, %v456, %v460
      %v463 = vshrl.u32 %v212, 16
      %v465 = vrot.slane %v463, 4
      %v466 = vshll.u32 %v212, 16
      %v468 = vrot.slane %v466, 5
      %v469 = vor.u32 %v465, %v468
      %v470 = vrot.slane %v469, 4
      %v472 = vshll.u32 %v213, 16
      %v474 = vrot.slane %v472, 5
      %v475 = vsel %vm245, %v470, %v474
      %v476 = vshrl.u32 %v213, 16
      %v478 = vrot.slane %v476, 4
      %v479 = vor.u32 %v478, %v474
      %v480 = vrot.slane %v479, 4
      %v482 = vshll.u32 %v236, 16
      %v484 = vrot.slane %v482, 5
      %v485 = vsel %vm245, %v480, %v484
      %v487 = vshrl.u32 %v214, 16
      %v489 = vrot.slane %v487, 4
      %v490 = vshll.u32 %v214, 16
      %v492 = vrot.slane %v490, 5
      %v493 = vor.u32 %v489, %v492
      %v494 = vrot.slane %v493, 4
      %v496 = vshll.u32 %v215, 16
      %v498 = vrot.slane %v496, 5
      %v499 = vsel %vm245, %v494, %v498
      %v500 = vshrl.u32 %v215, 16
      %v502 = vrot.slane %v500, 4
      %v503 = vor.u32 %v502, %v498
      %v504 = vrot.slane %v503, 4
      %v506 = vshll.u32 %v237, 16
      %v508 = vrot.slane %v506, 5
      %v509 = vsel %vm245, %v504, %v508
      %v511 = vshrl.u32 %v216, 16
      %v513 = vrot.slane %v511, 4
      %v514 = vshll.u32 %v216, 16
      %v516 = vrot.slane %v514, 5
      %v517 = vor.u32 %v513, %v516
      %v518 = vrot.slane %v517, 4
      %v520 = vshll.u32 %v217, 16
      %v522 = vrot.slane %v520, 5
      %v523 = vsel %vm245, %v518, %v522
      %v524 = vshrl.u32 %v217, 16
      %v526 = vrot.slane %v524, 4
      %v527 = vor.u32 %v526, %v522
      %v528 = vrot.slane %v527, 4
      %v530 = vshll.u32 %v238, 16
      %v532 = vrot.slane %v530, 5
      %v533 = vsel %vm245, %v528, %v532
      %v535 = vshrl.u32 %v218, 16
      %v537 = vrot.slane %v535, 4
      %v538 = vshll.u32 %v218, 16
      %v540 = vrot.slane %v538, 5
      %v541 = vor.u32 %v537, %v540
      %v542 = vrot.slane %v541, 4
      %v544 = vshll.u32 %v219, 16
      %v546 = vrot.slane %v544, 5
      %v547 = vsel %vm245, %v542, %v546
      %v548 = vshrl.u32 %v219, 16
      %v550 = vrot.slane %v548, 4
      %v551 = vor.u32 %v550, %v546
      %v552 = vrot.slane %v551, 4
      %v554 = vshll.u32 %v239, 16
      %v556 = vrot.slane %v554, 5
      %v557 = vsel %vm245, %v552, %v556
      %v559 = vshrl.u32 %v220, 16
      %v561 = vrot.slane %v559, 4
      %v562 = vshll.u32 %v220, 16
      %v564 = vrot.slane %v562, 5
      %v565 = vor.u32 %v561, %v564
      %v566 = vrot.slane %v565, 4
      %v568 = vshll.u32 %v221, 16
      %v570 = vrot.slane %v568, 5
      %v571 = vsel %vm245, %v566, %v570
      %v572 = vshrl.u32 %v221, 16
      %v574 = vrot.slane %v572, 4
      %v575 = vor.u32 %v574, %v570
      %v576 = vrot.slane %v575, 4
      %v578 = vshll.u32 %v240, 16
      %v580 = vrot.slane %v578, 5
      %v581 = vsel %vm245, %v576, %v580
      %v583 = vshrl.u32 %v222, 16
      %v585 = vrot.slane %v583, 4
      %v586 = vshll.u32 %v222, 16
      %v588 = vrot.slane %v586, 5
      %v589 = vor.u32 %v585, %v588
      %v590 = vrot.slane %v589, 4
      %v592 = vshll.u32 %v223, 16
      %v594 = vrot.slane %v592, 5
      %v595 = vsel %vm245, %v590, %v594
      %v596 = vshrl.u32 %v223, 16
      %v598 = vrot.slane %v596, 4
      %v599 = vor.u32 %v598, %v594
      %v600 = vrot.slane %v599, 4
      %v602 = vshll.u32 %v241, 16
      %v604 = vrot.slane %v602, 5
      %v605 = vsel %vm245, %v600, %v604
      %v607 = vshrl.u32 %v224, 16
      %v609 = vrot.slane %v607, 4
      %v610 = vshll.u32 %v224, 16
      %v612 = vrot.slane %v610, 5
      %v613 = vor.u32 %v609, %v612
      %v614 = vrot.slane %v613, 4
      %v616 = vshll.u32 %v225, 16
      %v618 = vrot.slane %v616, 5
      %v619 = vsel %vm245, %v614, %v618
      %v620 = vshrl.u32 %v225, 16
      %v622 = vrot.slane %v620, 4
      %v623 = vor.u32 %v622, %v618
      %v624 = vrot.slane %v623, 4
      %v626 = vshll.u32 %v242, 16
      %v628 = vrot.slane %v626, 5
      %v629 = vsel %vm245, %v624, %v628
      %s630 = scalar_lea.vmem %s1, 2
      %v631 = vld [vmem:[%s630] sm:$0x3]
      %v632 = vunpack.c.l.b16 %v259
      %v633 = vunpack.c.l.b16 %v269
      %v634 = vunpack.c.l.b16 %v283
      %v635 = vunpack.c.l.b16 %v293
      %v636 = vunpack.c.l.b16 %v307
      %v637 = vunpack.c.l.b16 %v317
      %v638 = vunpack.c.l.b16 %v331
      %v639 = vunpack.c.l.b16 %v341
      %v640 = vunpack.c.l.b16 %v355
      %v641 = vunpack.c.l.b16 %v365
      %v642 = vunpack.c.l.b16 %v379
      %v643 = vunpack.c.l.b16 %v389
      %v644 = vunpack.c.l.b16 %v403
      %v645 = vunpack.c.l.b16 %v413
      %v646 = vunpack.c.l.b16 %v427
      %v647 = vunpack.c.l.b16 %v437
      %v648 = vunpack.c.l.b16 %v451
      %v649 = vunpack.c.l.b16 %v461
      %v650 = vunpack.c.l.b16 %v475
      %v651 = vunpack.c.l.b16 %v485
      %v652 = vunpack.c.l.b16 %v499
      %v653 = vunpack.c.l.b16 %v509
      %v654 = vunpack.c.l.b16 %v523
      %v655 = vunpack.c.l.b16 %v533
      %v656 = vunpack.c.l.b16 %v547
      %v657 = vunpack.c.l.b16 %v557
      %v658 = vunpack.c.l.b16 %v571
      %v659 = vunpack.c.l.b16 %v581
      %v660 = vunpack.c.l.b16 %v595
      %v661 = vunpack.c.l.b16 %v605
      %v662 = vunpack.c.l.b16 %v619
      %v663 = vunpack.c.l.b16 %v629
      %v664 = vpack.c.b16 %v633, %v632
      %v665 = vpack.c.b16 %v635, %v634
      %v666 = vpack.c.b16 %v637, %v636
      %v667 = vpack.c.b16 %v639, %v638
      %v668 = vpack.c.b16 %v641, %v640
      %v669 = vpack.c.b16 %v643, %v642
      %v670 = vpack.c.b16 %v645, %v644
      %v671 = vpack.c.b16 %v647, %v646
      %v672 = vpack.c.b16 %v649, %v648
      %v673 = vpack.c.b16 %v651, %v650
      %v674 = vpack.c.b16 %v653, %v652
      %v675 = vpack.c.b16 %v655, %v654
      %v676 = vpack.c.b16 %v657, %v656
      %v677 = vpack.c.b16 %v659, %v658
      %v678 = vpack.c.b16 %v661, %v660
      %v679 = vpack.c.b16 %v663, %v662
      %vm680 = vcmask 31744
      %v682 = vsel %vm680, %v664, 0
      %v685 = vsel %vm680, %v665, 0
      %v688 = vsel %vm680, %v666, 0
      %v691 = vsel %vm680, %v667, 0
      %v694 = vsel %vm680, %v668, 0
      %v697 = vsel %vm680, %v669, 0
      %v700 = vsel %vm680, %v670, 0
      %v703 = vsel %vm680, %v671, 0
      %v706 = vsel %vm680, %v672, 0
      %v709 = vsel %vm680, %v673, 0
      %v712 = vsel %vm680, %v674, 0
      %v715 = vsel %vm680, %v675, 0
      %v718 = vsel %vm680, %v676, 0
      %v721 = vsel %vm680, %v677, 0
      %v724 = vsel %vm680, %v678, 0
      %v727 = vsel %vm680, %v679, 0
      %vm729 = vcmask 1041408
      %v731 = vsel %vm729, %v631, 0
      %733 = vmatpush.bf16.msra.mxu0 0
      %734 = vmatpush.bf16.msra.mxu0 0
      %735 = vmatpush.bf16.msra.mxu0 0
      %736 = vmatpush.bf16.msra.mxu0 0
      %737 = vmatpush.bf16.msra.mxu0 0
      %738 = vmatpush.bf16.msra.mxu0 0
      %739 = vmatpush.bf16.msra.mxu0 0
      %740 = vmatpush.bf16.msra.mxu0 %v731
      %741 = vmatmul.bf16.gmra.mxu0 %v682
      %v742 = vpop.f32.mrf.mxu0
      %v743 = vadd.f32 0.0, %v742
      %v744 = vpop.f32.mrf.mxu0
      %v745 = vadd.f32 0.0, %v744
      %746 = vmatmul.bf16.gmra.mxu0 %v685
      %v747 = vpop.f32.mrf.mxu0
      %v748 = vadd.f32 0.0, %v747
      %v749 = vpop.f32.mrf.mxu0
      %v750 = vadd.f32 0.0, %v749
      %751 = vmatmul.bf16.gmra.mxu0 %v688
      %v752 = vpop.f32.mrf.mxu0
      %v753 = vadd.f32 0.0, %v752
      %v754 = vpop.f32.mrf.mxu0
      %v755 = vadd.f32 0.0, %v754
      %756 = vmatmul.bf16.gmra.mxu0 %v691
      %v757 = vpop.f32.mrf.mxu0
      %v758 = vadd.f32 0.0, %v757
      %v759 = vpop.f32.mrf.mxu0
      %v760 = vadd.f32 0.0, %v759
      %761 = vmatmul.bf16.gmra.mxu0 %v694
      %v762 = vpop.f32.mrf.mxu0
      %v763 = vadd.f32 0.0, %v762
      %v764 = vpop.f32.mrf.mxu0
      %v765 = vadd.f32 0.0, %v764
      %766 = vmatmul.bf16.gmra.mxu0 %v697
      %v767 = vpop.f32.mrf.mxu0
      %v768 = vadd.f32 0.0, %v767
      %v769 = vpop.f32.mrf.mxu0
      %v770 = vadd.f32 0.0, %v769
      %771 = vmatmul.bf16.gmra.mxu0 %v700
      %v772 = vpop.f32.mrf.mxu0
      %v773 = vadd.f32 0.0, %v772
      %v774 = vpop.f32.mrf.mxu0
      %v775 = vadd.f32 0.0, %v774
      %776 = vmatmul.bf16.gmra.mxu0 %v703
      %v777 = vpop.f32.mrf.mxu0
      %v778 = vadd.f32 0.0, %v777
      %v779 = vpop.f32.mrf.mxu0
      %v780 = vadd.f32 0.0, %v779
      %781 = vmatmul.bf16.gmra.mxu0 %v706
      %v782 = vpop.f32.mrf.mxu0
      %v783 = vadd.f32 0.0, %v782
      %v784 = vpop.f32.mrf.mxu0
      %v785 = vadd.f32 0.0, %v784
      %786 = vmatmul.bf16.gmra.mxu0 %v709
      %v787 = vpop.f32.mrf.mxu0
      %v788 = vadd.f32 0.0, %v787
      %v789 = vpop.f32.mrf.mxu0
      %v790 = vadd.f32 0.0, %v789
      %791 = vmatmul.bf16.gmra.mxu0 %v712
      %v792 = vpop.f32.mrf.mxu0
      %v793 = vadd.f32 0.0, %v792
      %v794 = vpop.f32.mrf.mxu0
      %v795 = vadd.f32 0.0, %v794
      %796 = vmatmul.bf16.gmra.mxu0 %v715
      %v797 = vpop.f32.mrf.mxu0
      %v798 = vadd.f32 0.0, %v797
      %v799 = vpop.f32.mrf.mxu0
      %v800 = vadd.f32 0.0, %v799
      %801 = vmatmul.bf16.gmra.mxu0 %v718
      %v802 = vpop.f32.mrf.mxu0
      %v803 = vadd.f32 0.0, %v802
      %v804 = vpop.f32.mrf.mxu0
      %v805 = vadd.f32 0.0, %v804
      %806 = vmatmul.bf16.gmra.mxu0 %v721
      %v807 = vpop.f32.mrf.mxu0
      %v808 = vadd.f32 0.0, %v807
      %v809 = vpop.f32.mrf.mxu0
      %v810 = vadd.f32 0.0, %v809
      %811 = vmatmul.bf16.gmra.mxu0 %v724
      %v812 = vpop.f32.mrf.mxu0
      %v813 = vadd.f32 0.0, %v812
      %v814 = vpop.f32.mrf.mxu0
      %v815 = vadd.f32 0.0, %v814
      %816 = vmatmul.bf16.gmra.mxu0 %v727
      %v817 = vpop.f32.mrf.mxu0
      %v818 = vadd.f32 0.0, %v817
      %v819 = vpop.f32.mrf.mxu0
      %v820 = vadd.f32 0.0, %v819
      %821 = vdwg.mxu0
      %v854 = vunpack.c.l.b16 %v194
      %v855 = vunpack.c.l.b16 %v195
      %v856 = vunpack.c.l.b16 %v196
      %v857 = vunpack.c.l.b16 %v197
      %v858 = vunpack.c.l.b16 %v198
      %v859 = vunpack.c.l.b16 %v199
      %v860 = vunpack.c.l.b16 %v200
      %v861 = vunpack.c.l.b16 %v201
      %v862 = vunpack.c.l.b16 %v202
      %v863 = vunpack.c.l.b16 %v203
      %v864 = vunpack.c.l.b16 %v204
      %v865 = vunpack.c.l.b16 %v205
      %v866 = vunpack.c.l.b16 %v206
      %v867 = vunpack.c.l.b16 %v207
      %v868 = vunpack.c.l.b16 %v208
      %v869 = vunpack.c.l.b16 %v209
      %v870 = vunpack.c.l.b16 %v210
      %v871 = vunpack.c.l.b16 %v211
      %v872 = vunpack.c.l.b16 %v212
      %v873 = vunpack.c.l.b16 %v213
      %v874 = vunpack.c.l.b16 %v214
      %v875 = vunpack.c.l.b16 %v215
      %v876 = vunpack.c.l.b16 %v216
      %v877 = vunpack.c.l.b16 %v217
      %v878 = vunpack.c.l.b16 %v218
      %v879 = vunpack.c.l.b16 %v219
      %v880 = vunpack.c.l.b16 %v220
      %v881 = vunpack.c.l.b16 %v221
      %v882 = vunpack.c.l.b16 %v222
      %v883 = vunpack.c.l.b16 %v223
      %v884 = vunpack.c.l.b16 %v224
      %v885 = vunpack.c.l.b16 %v225
      %v886 = vpack.c.b16 %v855, %v854
      %v887 = vpack.c.b16 %v857, %v856
      %v888 = vpack.c.b16 %v859, %v858
      %v889 = vpack.c.b16 %v861, %v860
      %v890 = vpack.c.b16 %v863, %v862
      %v891 = vpack.c.b16 %v865, %v864
      %v892 = vpack.c.b16 %v867, %v866
      %v893 = vpack.c.b16 %v869, %v868
      %v894 = vpack.c.b16 %v871, %v870
      %v895 = vpack.c.b16 %v873, %v872
      %v896 = vpack.c.b16 %v875, %v874
      %v897 = vpack.c.b16 %v877, %v876
      %v898 = vpack.c.b16 %v879, %v878
      %v899 = vpack.c.b16 %v881, %v880
      %v900 = vpack.c.b16 %v883, %v882
      %v901 = vpack.c.b16 %v885, %v884
      %v903 = vsel %vm680, %v886, 0
      %v906 = vsel %vm680, %v887, 0
      %v909 = vsel %vm680, %v888, 0
      %v912 = vsel %vm680, %v889, 0
      %v915 = vsel %vm680, %v890, 0
      %v918 = vsel %vm680, %v891, 0
      %v921 = vsel %vm680, %v892, 0
      %v924 = vsel %vm680, %v893, 0
      %v927 = vsel %vm680, %v894, 0
      %v930 = vsel %vm680, %v895, 0
      %v933 = vsel %vm680, %v896, 0
      %v936 = vsel %vm680, %v897, 0
      %v939 = vsel %vm680, %v898, 0
      %v942 = vsel %vm680, %v899, 0
      %v945 = vsel %vm680, %v900, 0
      %v948 = vsel %vm680, %v901, 0
      %v951 = vsel %vm729, %v226, 0
      %953 = vmatpush.bf16.msra.mxu0 0
      %954 = vmatpush.bf16.msra.mxu0 0
      %955 = vmatpush.bf16.msra.mxu0 0
      %956 = vmatpush.bf16.msra.mxu0 0
      %957 = vmatpush.bf16.msra.mxu0 0
      %958 = vmatpush.bf16.msra.mxu0 0
      %959 = vmatpush.bf16.msra.mxu0 0
      %960 = vmatpush.bf16.msra.mxu0 %v951
      %961 = vmatmul.bf16.gmra.mxu0 %v903
      %v962 = vpop.f32.mrf.mxu0
      %v963 = vadd.f32 %v743, %v962
      %v964 = vpop.f32.mrf.mxu0
      %v965 = vadd.f32 %v745, %v964
      %966 = vmatmul.bf16.gmra.mxu0 %v906
      %v967 = vpop.f32.mrf.mxu0
      %v968 = vadd.f32 %v748, %v967
      %v969 = vpop.f32.mrf.mxu0
      %v970 = vadd.f32 %v750, %v969
      %971 = vmatmul.bf16.gmra.mxu0 %v909
      %v972 = vpop.f32.mrf.mxu0
      %v973 = vadd.f32 %v753, %v972
      %v974 = vpop.f32.mrf.mxu0
      %v975 = vadd.f32 %v755, %v974
      %976 = vmatmul.bf16.gmra.mxu0 %v912
      %v977 = vpop.f32.mrf.mxu0
      %v978 = vadd.f32 %v758, %v977
      %v979 = vpop.f32.mrf.mxu0
      %v980 = vadd.f32 %v760, %v979
      %981 = vmatmul.bf16.gmra.mxu0 %v915
      %v982 = vpop.f32.mrf.mxu0
      %v983 = vadd.f32 %v763, %v982
      %v984 = vpop.f32.mrf.mxu0
      %v985 = vadd.f32 %v765, %v984
      %986 = vmatmul.bf16.gmra.mxu0 %v918
      %v987 = vpop.f32.mrf.mxu0
      %v988 = vadd.f32 %v768, %v987
      %v989 = vpop.f32.mrf.mxu0
      %v990 = vadd.f32 %v770, %v989
      %991 = vmatmul.bf16.gmra.mxu0 %v921
      %v992 = vpop.f32.mrf.mxu0
      %v993 = vadd.f32 %v773, %v992
      %v994 = vpop.f32.mrf.mxu0
      %v995 = vadd.f32 %v775, %v994
      %996 = vmatmul.bf16.gmra.mxu0 %v924
      %v997 = vpop.f32.mrf.mxu0
      %v998 = vadd.f32 %v778, %v997
      %v999 = vpop.f32.mrf.mxu0
      %v1000 = vadd.f32 %v780, %v999
      %1001 = vmatmul.bf16.gmra.mxu0 %v927
      %v1002 = vpop.f32.mrf.mxu0
      %v1003 = vadd.f32 %v783, %v1002
      %v1004 = vpop.f32.mrf.mxu0
      %v1005 = vadd.f32 %v785, %v1004
      %1006 = vmatmul.bf16.gmra.mxu0 %v930
      %v1007 = vpop.f32.mrf.mxu0
      %v1008 = vadd.f32 %v788, %v1007
      %v1009 = vpop.f32.mrf.mxu0
      %v1010 = vadd.f32 %v790, %v1009
      %1011 = vmatmul.bf16.gmra.mxu0 %v933
      %v1012 = vpop.f32.mrf.mxu0
      %v1013 = vadd.f32 %v793, %v1012
      %v1014 = vpop.f32.mrf.mxu0
      %v1015 = vadd.f32 %v795, %v1014
      %1016 = vmatmul.bf16.gmra.mxu0 %v936
      %v1017 = vpop.f32.mrf.mxu0
      %v1018 = vadd.f32 %v798, %v1017
      %v1019 = vpop.f32.mrf.mxu0
      %v1020 = vadd.f32 %v800, %v1019
      %1021 = vmatmul.bf16.gmra.mxu0 %v939
      %v1022 = vpop.f32.mrf.mxu0
      %v1023 = vadd.f32 %v803, %v1022
      %v1024 = vpop.f32.mrf.mxu0
      %v1025 = vadd.f32 %v805, %v1024
      %1026 = vmatmul.bf16.gmra.mxu0 %v942
      %v1027 = vpop.f32.mrf.mxu0
      %v1028 = vadd.f32 %v808, %v1027
      %v1029 = vpop.f32.mrf.mxu0
      %v1030 = vadd.f32 %v810, %v1029
      %1031 = vmatmul.bf16.gmra.mxu0 %v945
      %v1032 = vpop.f32.mrf.mxu0
      %v1033 = vadd.f32 %v813, %v1032
      %v1034 = vpop.f32.mrf.mxu0
      %v1035 = vadd.f32 %v815, %v1034
      %1036 = vmatmul.bf16.gmra.mxu0 %v948
      %v1037 = vpop.f32.mrf.mxu0
      %v1038 = vadd.f32 %v818, %v1037
      %v1039 = vpop.f32.mrf.mxu0
      %v1040 = vadd.f32 %v820, %v1039
      %1041 = vdwg.mxu0
      %v1042 = vld [vmem:[%s193] sm:$0xe]
      %v1043 = vld [vmem:[%s193 + $0xc] sm:$0xe]
      %v1044 = vld [vmem:[%s193 + $0x18] sm:$0xe]
      %v1045 = vld [vmem:[%s193 + $0x24] sm:$0xe]
      %v1046 = vld [vmem:[%s193 + $0x30] sm:$0xe]
      %v1047 = vld [vmem:[%s193 + $0x3c] sm:$0xe]
      %v1048 = vld [vmem:[%s193 + $0x48] sm:$0xe]
      %v1049 = vld [vmem:[%s193 + $0x54] sm:$0xe]
      %v1050 = vld [vmem:[%s193 + $0x60] sm:$0xe]
      %v1051 = vld [vmem:[%s193 + $0x6c] sm:$0xe]
      %v1052 = vld [vmem:[%s193 + $0x78] sm:$0xe]
      %v1053 = vld [vmem:[%s193 + $0x84] sm:$0xe]
      %v1054 = vld [vmem:[%s193 + $0x90] sm:$0xe]
      %v1055 = vld [vmem:[%s193 + $0x9c] sm:$0xe]
      %v1056 = vld [vmem:[%s193 + $0xa8] sm:$0xe]
      %v1057 = vld [vmem:[%s193 + $0xb4] sm:$0xe]
      %vm1090 = vcmask 1042432
      %vm1091 = vcmask 1046532
      %vm1092 = vmor %vm1090, %vm1091
      %v1093 = vrot.slane %v1042, 5
      %v1094 = vrot.slane %v1093, 4
      %v1095 = vrot.slane %v195, 5
      %v1096 = vsel %vm1092, %v1094, %v1095
      %v1097 = vrot.slane %v1095, 4
      %v1098 = vrot.slane %v227, 5
      %v1099 = vsel %vm1092, %v1097, %v1098
      %v1100 = vrot.slane %v1043, 5
      %v1101 = vrot.slane %v1100, 4
      %v1102 = vrot.slane %v197, 5
      %v1103 = vsel %vm1092, %v1101, %v1102
      %v1104 = vrot.slane %v1102, 4
      %v1105 = vrot.slane %v228, 5
      %v1106 = vsel %vm1092, %v1104, %v1105
      %v1107 = vrot.slane %v1044, 5
      %v1108 = vrot.slane %v1107, 4
      %v1109 = vrot.slane %v199, 5
      %v1110 = vsel %vm1092, %v1108, %v1109
      %v1111 = vrot.slane %v1109, 4
      %v1112 = vrot.slane %v229, 5
      %v1113 = vsel %vm1092, %v1111, %v1112
      %v1114 = vrot.slane %v1045, 5
      %v1115 = vrot.slane %v1114, 4
      %v1116 = vrot.slane %v201, 5
      %v1117 = vsel %vm1092, %v1115, %v1116
      %v1118 = vrot.slane %v1116, 4
      %v1119 = vrot.slane %v230, 5
      %v1120 = vsel %vm1092, %v1118, %v1119
      %v1121 = vrot.slane %v1046, 5
      %v1122 = vrot.slane %v1121, 4
      %v1123 = vrot.slane %v203, 5
      %v1124 = vsel %vm1092, %v1122, %v1123
      %v1125 = vrot.slane %v1123, 4
      %v1126 = vrot.slane %v231, 5
      %v1127 = vsel %vm1092, %v1125, %v1126
      %v1128 = vrot.slane %v1047, 5
      %v1129 = vrot.slane %v1128, 4
      %v1130 = vrot.slane %v205, 5
      %v1131 = vsel %vm1092, %v1129, %v1130
      %v1132 = vrot.slane %v1130, 4
      %v1133 = vrot.slane %v232, 5
      %v1134 = vsel %vm1092, %v1132, %v1133
      %v1135 = vrot.slane %v1048, 5
      %v1136 = vrot.slane %v1135, 4
      %v1137 = vrot.slane %v207, 5
      %v1138 = vsel %vm1092, %v1136, %v1137
      %v1139 = vrot.slane %v1137, 4
      %v1140 = vrot.slane %v233, 5
      %v1141 = vsel %vm1092, %v1139, %v1140
      %v1142 = vrot.slane %v1049, 5
      %v1143 = vrot.slane %v1142, 4
      %v1144 = vrot.slane %v209, 5
      %v1145 = vsel %vm1092, %v1143, %v1144
      %v1146 = vrot.slane %v1144, 4
      %v1147 = vrot.slane %v234, 5
      %v1148 = vsel %vm1092, %v1146, %v1147
      %v1149 = vrot.slane %v1050, 5
      %v1150 = vrot.slane %v1149, 4
      %v1151 = vrot.slane %v211, 5
      %v1152 = vsel %vm1092, %v1150, %v1151
      %v1153 = vrot.slane %v1151, 4
      %v1154 = vrot.slane %v235, 5
      %v1155 = vsel %vm1092, %v1153, %v1154
      %v1156 = vrot.slane %v1051, 5
      %v1157 = vrot.slane %v1156, 4
      %v1158 = vrot.slane %v213, 5
      %v1159 = vsel %vm1092, %v1157, %v1158
      %v1160 = vrot.slane %v1158, 4
      %v1161 = vrot.slane %v236, 5
      %v1162 = vsel %vm1092, %v1160, %v1161
      %v1163 = vrot.slane %v1052, 5
      %v1164 = vrot.slane %v1163, 4
      %v1165 = vrot.slane %v215, 5
      %v1166 = vsel %vm1092, %v1164, %v1165
      %v1167 = vrot.slane %v1165, 4
      %v1168 = vrot.slane %v237, 5
      %v1169 = vsel %vm1092, %v1167, %v1168
      %v1170 = vrot.slane %v1053, 5
      %v1171 = vrot.slane %v1170, 4
      %v1172 = vrot.slane %v217, 5
      %v1173 = vsel %vm1092, %v1171, %v1172
      %v1174 = vrot.slane %v1172, 4
      %v1175 = vrot.slane %v238, 5
      %v1176 = vsel %vm1092, %v1174, %v1175
      %v1177 = vrot.slane %v1054, 5
      %v1178 = vrot.slane %v1177, 4
      %v1179 = vrot.slane %v219, 5
      %v1180 = vsel %vm1092, %v1178, %v1179
      %v1181 = vrot.slane %v1179, 4
      %v1182 = vrot.slane %v239, 5
      %v1183 = vsel %vm1092, %v1181, %v1182
      %v1184 = vrot.slane %v1055, 5
      %v1185 = vrot.slane %v1184, 4
      %v1186 = vrot.slane %v221, 5
      %v1187 = vsel %vm1092, %v1185, %v1186
      %v1188 = vrot.slane %v1186, 4
      %v1189 = vrot.slane %v240, 5
      %v1190 = vsel %vm1092, %v1188, %v1189
      %v1191 = vrot.slane %v1056, 5
      %v1192 = vrot.slane %v1191, 4
      %v1193 = vrot.slane %v223, 5
      %v1194 = vsel %vm1092, %v1192, %v1193
      %v1195 = vrot.slane %v1193, 4
      %v1196 = vrot.slane %v241, 5
      %v1197 = vsel %vm1092, %v1195, %v1196
      %v1198 = vrot.slane %v1057, 5
      %v1199 = vrot.slane %v1198, 4
      %v1200 = vrot.slane %v225, 5
      %v1201 = vsel %vm1092, %v1199, %v1200
      %v1202 = vrot.slane %v1200, 4
      %v1203 = vrot.slane %v242, 5
      %v1204 = vsel %vm1092, %v1202, %v1203
      %s1205 = scalar_lea.vmem %s1, 4
      %v1206 = vld [vmem:[%s1205] sm:$0x3]
      %v1207 = vunpack.c.l.b16 %v1096
      %v1208 = vunpack.c.l.b16 %v1099
      %v1209 = vunpack.c.l.b16 %v1103
      %v1210 = vunpack.c.l.b16 %v1106
      %v1211 = vunpack.c.l.b16 %v1110
      %v1212 = vunpack.c.l.b16 %v1113
      %v1213 = vunpack.c.l.b16 %v1117
      %v1214 = vunpack.c.l.b16 %v1120
      %v1215 = vunpack.c.l.b16 %v1124
      %v1216 = vunpack.c.l.b16 %v1127
      %v1217 = vunpack.c.l.b16 %v1131
      %v1218 = vunpack.c.l.b16 %v1134
      %v1219 = vunpack.c.l.b16 %v1138
      %v1220 = vunpack.c.l.b16 %v1141
      %v1221 = vunpack.c.l.b16 %v1145
      %v1222 = vunpack.c.l.b16 %v1148
      %v1223 = vunpack.c.l.b16 %v1152
      %v1224 = vunpack.c.l.b16 %v1155
      %v1225 = vunpack.c.l.b16 %v1159
      %v1226 = vunpack.c.l.b16 %v1162
      %v1227 = vunpack.c.l.b16 %v1166
      %v1228 = vunpack.c.l.b16 %v1169
      %v1229 = vunpack.c.l.b16 %v1173
      %v1230 = vunpack.c.l.b16 %v1176
      %v1231 = vunpack.c.l.b16 %v1180
      %v1232 = vunpack.c.l.b16 %v1183
      %v1233 = vunpack.c.l.b16 %v1187
      %v1234 = vunpack.c.l.b16 %v1190
      %v1235 = vunpack.c.l.b16 %v1194
      %v1236 = vunpack.c.l.b16 %v1197
      %v1237 = vunpack.c.l.b16 %v1201
      %v1238 = vunpack.c.l.b16 %v1204
      %v1239 = vpack.c.b16 %v1208, %v1207
      %v1240 = vpack.c.b16 %v1210, %v1209
      %v1241 = vpack.c.b16 %v1212, %v1211
      %v1242 = vpack.c.b16 %v1214, %v1213
      %v1243 = vpack.c.b16 %v1216, %v1215
      %v1244 = vpack.c.b16 %v1218, %v1217
      %v1245 = vpack.c.b16 %v1220, %v1219
      %v1246 = vpack.c.b16 %v1222, %v1221
      %v1247 = vpack.c.b16 %v1224, %v1223
      %v1248 = vpack.c.b16 %v1226, %v1225
      %v1249 = vpack.c.b16 %v1228, %v1227
      %v1250 = vpack.c.b16 %v1230, %v1229
      %v1251 = vpack.c.b16 %v1232, %v1231
      %v1252 = vpack.c.b16 %v1234, %v1233
      %v1253 = vpack.c.b16 %v1236, %v1235
      %v1254 = vpack.c.b16 %v1238, %v1237
      %v1256 = vsel %vm680, %v1239, 0
      %v1259 = vsel %vm680, %v1240, 0
      %v1262 = vsel %vm680, %v1241, 0
      %v1265 = vsel %vm680, %v1242, 0
      %v1268 = vsel %vm680, %v1243, 0
      %v1271 = vsel %vm680, %v1244, 0
      %v1274 = vsel %vm680, %v1245, 0
      %v1277 = vsel %vm680, %v1246, 0
      %v1280 = vsel %vm680, %v1247, 0
      %v1283 = vsel %vm680, %v1248, 0
      %v1286 = vsel %vm680, %v1249, 0
      %v1289 = vsel %vm680, %v1250, 0
      %v1292 = vsel %vm680, %v1251, 0
      %v1295 = vsel %vm680, %v1252, 0
      %v1298 = vsel %vm680, %v1253, 0
      %v1301 = vsel %vm680, %v1254, 0
      %v1304 = vsel %vm729, %v1206, 0
      %1306 = vmatpush.bf16.msra.mxu0 0
      %1307 = vmatpush.bf16.msra.mxu0 0
      %1308 = vmatpush.bf16.msra.mxu0 0
      %1309 = vmatpush.bf16.msra.mxu0 0
      %1310 = vmatpush.bf16.msra.mxu0 0
      %1311 = vmatpush.bf16.msra.mxu0 0
      %1312 = vmatpush.bf16.msra.mxu0 0
      %1313 = vmatpush.bf16.msra.mxu0 %v1304
      %1314 = vmatmul.bf16.gmra.mxu0 %v1256
      %v1315 = vpop.f32.mrf.mxu0
      %v1316 = vadd.f32 0.0, %v1315
      %v1317 = vpop.f32.mrf.mxu0
      %v1318 = vadd.f32 0.0, %v1317
      %1319 = vmatmul.bf16.gmra.mxu0 %v1259
      %v1320 = vpop.f32.mrf.mxu0
      %v1321 = vadd.f32 0.0, %v1320
      %v1322 = vpop.f32.mrf.mxu0
      %v1323 = vadd.f32 0.0, %v1322
      %1324 = vmatmul.bf16.gmra.mxu0 %v1262
      %v1325 = vpop.f32.mrf.mxu0
      %v1326 = vadd.f32 0.0, %v1325
      %v1327 = vpop.f32.mrf.mxu0
      %v1328 = vadd.f32 0.0, %v1327
      %1329 = vmatmul.bf16.gmra.mxu0 %v1265
      %v1330 = vpop.f32.mrf.mxu0
      %v1331 = vadd.f32 0.0, %v1330
      %v1332 = vpop.f32.mrf.mxu0
      %v1333 = vadd.f32 0.0, %v1332
      %1334 = vmatmul.bf16.gmra.mxu0 %v1268
      %v1335 = vpop.f32.mrf.mxu0
      %v1336 = vadd.f32 0.0, %v1335
      %v1337 = vpop.f32.mrf.mxu0
      %v1338 = vadd.f32 0.0, %v1337
      %1339 = vmatmul.bf16.gmra.mxu0 %v1271
      %v1340 = vpop.f32.mrf.mxu0
      %v1341 = vadd.f32 0.0, %v1340
      %v1342 = vpop.f32.mrf.mxu0
      %v1343 = vadd.f32 0.0, %v1342
      %1344 = vmatmul.bf16.gmra.mxu0 %v1274
      %v1345 = vpop.f32.mrf.mxu0
      %v1346 = vadd.f32 0.0, %v1345
      %v1347 = vpop.f32.mrf.mxu0
      %v1348 = vadd.f32 0.0, %v1347
      %1349 = vmatmul.bf16.gmra.mxu0 %v1277
      %v1350 = vpop.f32.mrf.mxu0
      %v1351 = vadd.f32 0.0, %v1350
      %v1352 = vpop.f32.mrf.mxu0
      %v1353 = vadd.f32 0.0, %v1352
      %1354 = vmatmul.bf16.gmra.mxu0 %v1280
      %v1355 = vpop.f32.mrf.mxu0
      %v1356 = vadd.f32 0.0, %v1355
      %v1357 = vpop.f32.mrf.mxu0
      %v1358 = vadd.f32 0.0, %v1357
      %1359 = vmatmul.bf16.gmra.mxu0 %v1283
      %v1360 = vpop.f32.mrf.mxu0
      %v1361 = vadd.f32 0.0, %v1360
      %v1362 = vpop.f32.mrf.mxu0
      %v1363 = vadd.f32 0.0, %v1362
      %1364 = vmatmul.bf16.gmra.mxu0 %v1286
      %v1365 = vpop.f32.mrf.mxu0
      %v1366 = vadd.f32 0.0, %v1365
      %v1367 = vpop.f32.mrf.mxu0
      %v1368 = vadd.f32 0.0, %v1367
      %1369 = vmatmul.bf16.gmra.mxu0 %v1289
      %v1370 = vpop.f32.mrf.mxu0
      %v1371 = vadd.f32 0.0, %v1370
      %v1372 = vpop.f32.mrf.mxu0
      %v1373 = vadd.f32 0.0, %v1372
      %1374 = vmatmul.bf16.gmra.mxu0 %v1292
      %v1375 = vpop.f32.mrf.mxu0
      %v1376 = vadd.f32 0.0, %v1375
      %v1377 = vpop.f32.mrf.mxu0
      %v1378 = vadd.f32 0.0, %v1377
      %1379 = vmatmul.bf16.gmra.mxu0 %v1295
      %v1380 = vpop.f32.mrf.mxu0
      %v1381 = vadd.f32 0.0, %v1380
      %v1382 = vpop.f32.mrf.mxu0
      %v1383 = vadd.f32 0.0, %v1382
      %1384 = vmatmul.bf16.gmra.mxu0 %v1298
      %v1385 = vpop.f32.mrf.mxu0
      %v1386 = vadd.f32 0.0, %v1385
      %v1387 = vpop.f32.mrf.mxu0
      %v1388 = vadd.f32 0.0, %v1387
      %1389 = vmatmul.bf16.gmra.mxu0 %v1301
      %v1390 = vpop.f32.mrf.mxu0
      %v1391 = vadd.f32 0.0, %v1390
      %v1392 = vpop.f32.mrf.mxu0
      %v1393 = vadd.f32 0.0, %v1392
      %1394 = vdwg.mxu0
      %v1395 = vadd.f32 %v963, %v1316
      %v1396 = vadd.f32 %v965, %v1318
      %v1397 = vadd.f32 %v968, %v1321
      %v1398 = vadd.f32 %v970, %v1323
      %v1399 = vadd.f32 %v973, %v1326
      %v1400 = vadd.f32 %v975, %v1328
      %v1401 = vadd.f32 %v978, %v1331
      %v1402 = vadd.f32 %v980, %v1333
      %v1403 = vadd.f32 %v983, %v1336
      %v1404 = vadd.f32 %v985, %v1338
      %v1405 = vadd.f32 %v988, %v1341
      %v1406 = vadd.f32 %v990, %v1343
      %v1407 = vadd.f32 %v993, %v1346
      %v1408 = vadd.f32 %v995, %v1348
      %v1409 = vadd.f32 %v998, %v1351
      %v1410 = vadd.f32 %v1000, %v1353
      %v1411 = vadd.f32 %v1003, %v1356
      %v1412 = vadd.f32 %v1005, %v1358
      %v1413 = vadd.f32 %v1008, %v1361
      %v1414 = vadd.f32 %v1010, %v1363
      %v1415 = vadd.f32 %v1013, %v1366
      %v1416 = vadd.f32 %v1015, %v1368
      %v1417 = vadd.f32 %v1018, %v1371
      %v1418 = vadd.f32 %v1020, %v1373
      %v1419 = vadd.f32 %v1023, %v1376
      %v1420 = vadd.f32 %v1025, %v1378
      %v1421 = vadd.f32 %v1028, %v1381
      %v1422 = vadd.f32 %v1030, %v1383
      %v1423 = vadd.f32 %v1033, %v1386
      %v1424 = vadd.f32 %v1035, %v1388
      %v1425 = vadd.f32 %v1038, %v1391
      %v1426 = vadd.f32 %v1040, %v1393
      %s1427 = sadd.s32 %s190, 1
      %s1428 = smul.u32 %s1427, 3
      %s1429 = smul.addr %s1428, 4
      %s1430 = scalar_lea.vmem %s180, %s1429
      %v1431 = vld [vmem:[%s1430] sm:$0xf]
      %v1432 = vld [vmem:[%s1430 + $0x4] sm:$0xf]
      %v1433 = vld [vmem:[%s1430 + $0xc] sm:$0xf]
      %v1434 = vld [vmem:[%s1430 + $0x10] sm:$0xf]
      %v1435 = vld [vmem:[%s1430 + $0x18] sm:$0xf]
      %v1436 = vld [vmem:[%s1430 + $0x1c] sm:$0xf]
      %v1437 = vld [vmem:[%s1430 + $0x24] sm:$0xf]
      %v1438 = vld [vmem:[%s1430 + $0x28] sm:$0xf]
      %v1439 = vld [vmem:[%s1430 + $0x30] sm:$0xf]
      %v1440 = vld [vmem:[%s1430 + $0x34] sm:$0xf]
      %v1441 = vld [vmem:[%s1430 + $0x3c] sm:$0xf]
      %v1442 = vld [vmem:[%s1430 + $0x40] sm:$0xf]
      %v1443 = vld [vmem:[%s1430 + $0x48] sm:$0xf]
      %v1444 = vld [vmem:[%s1430 + $0x4c] sm:$0xf]
      %v1445 = vld [vmem:[%s1430 + $0x54] sm:$0xf]
      %v1446 = vld [vmem:[%s1430 + $0x58] sm:$0xf]
      %v1447 = vld [vmem:[%s1430 + $0x60] sm:$0xf]
      %v1448 = vld [vmem:[%s1430 + $0x64] sm:$0xf]
      %v1449 = vld [vmem:[%s1430 + $0x6c] sm:$0xf]
      %v1450 = vld [vmem:[%s1430 + $0x70] sm:$0xf]
      %v1451 = vld [vmem:[%s1430 + $0x78] sm:$0xf]
      %v1452 = vld [vmem:[%s1430 + $0x7c] sm:$0xf]
      %v1453 = vld [vmem:[%s1430 + $0x84] sm:$0xf]
      %v1454 = vld [vmem:[%s1430 + $0x88] sm:$0xf]
      %v1455 = vld [vmem:[%s1430 + $0x90] sm:$0xf]
      %v1456 = vld [vmem:[%s1430 + $0x94] sm:$0xf]
      %v1457 = vld [vmem:[%s1430 + $0x9c] sm:$0xf]
      %v1458 = vld [vmem:[%s1430 + $0xa0] sm:$0xf]
      %v1459 = vld [vmem:[%s1430 + $0xa8] sm:$0xf]
      %v1460 = vld [vmem:[%s1430 + $0xac] sm:$0xf]
      %v1461 = vld [vmem:[%s1430 + $0xb4] sm:$0xf]
      %v1462 = vld [vmem:[%s1430 + $0xb8] sm:$0xf]
      %s1463 = scalar_lea.vmem %s1, 6
      %v1464 = vld [vmem:[%s1463] sm:$0x3]
      %v1497 = vunpack.c.l.b16 %v1431
      %v1498 = vunpack.c.l.b16 %v1432
      %v1499 = vunpack.c.l.b16 %v1433
      %v1500 = vunpack.c.l.b16 %v1434
      %v1501 = vunpack.c.l.b16 %v1435
      %v1502 = vunpack.c.l.b16 %v1436
      %v1503 = vunpack.c.l.b16 %v1437
      %v1504 = vunpack.c.l.b16 %v1438
      %v1505 = vunpack.c.l.b16 %v1439
      %v1506 = vunpack.c.l.b16 %v1440
      %v1507 = vunpack.c.l.b16 %v1441
      %v1508 = vunpack.c.l.b16 %v1442
      %v1509 = vunpack.c.l.b16 %v1443
      %v1510 = vunpack.c.l.b16 %v1444
      %v1511 = vunpack.c.l.b16 %v1445
      %v1512 = vunpack.c.l.b16 %v1446
      %v1513 = vunpack.c.l.b16 %v1447
      %v1514 = vunpack.c.l.b16 %v1448
      %v1515 = vunpack.c.l.b16 %v1449
      %v1516 = vunpack.c.l.b16 %v1450
      %v1517 = vunpack.c.l.b16 %v1451
      %v1518 = vunpack.c.l.b16 %v1452
      %v1519 = vunpack.c.l.b16 %v1453
      %v1520 = vunpack.c.l.b16 %v1454
      %v1521 = vunpack.c.l.b16 %v1455
      %v1522 = vunpack.c.l.b16 %v1456
      %v1523 = vunpack.c.l.b16 %v1457
      %v1524 = vunpack.c.l.b16 %v1458
      %v1525 = vunpack.c.l.b16 %v1459
      %v1526 = vunpack.c.l.b16 %v1460
      %v1527 = vunpack.c.l.b16 %v1461
      %v1528 = vunpack.c.l.b16 %v1462
      %v1529 = vpack.c.b16 %v1498, %v1497
      %v1530 = vpack.c.b16 %v1500, %v1499
      %v1531 = vpack.c.b16 %v1502, %v1501
      %v1532 = vpack.c.b16 %v1504, %v1503
      %v1533 = vpack.c.b16 %v1506, %v1505
      %v1534 = vpack.c.b16 %v1508, %v1507
      %v1535 = vpack.c.b16 %v1510, %v1509
      %v1536 = vpack.c.b16 %v1512, %v1511
      %v1537 = vpack.c.b16 %v1514, %v1513
      %v1538 = vpack.c.b16 %v1516, %v1515
      %v1539 = vpack.c.b16 %v1518, %v1517
      %v1540 = vpack.c.b16 %v1520, %v1519
      %v1541 = vpack.c.b16 %v1522, %v1521
      %v1542 = vpack.c.b16 %v1524, %v1523
      %v1543 = vpack.c.b16 %v1526, %v1525
      %v1544 = vpack.c.b16 %v1528, %v1527
      %v1546 = vsel %vm680, %v1529, 0
      %v1549 = vsel %vm680, %v1530, 0
      %v1552 = vsel %vm680, %v1531, 0
      %v1555 = vsel %vm680, %v1532, 0
      %v1558 = vsel %vm680, %v1533, 0
      %v1561 = vsel %vm680, %v1534, 0
      %v1564 = vsel %vm680, %v1535, 0
      %v1567 = vsel %vm680, %v1536, 0
      %v1570 = vsel %vm680, %v1537, 0
      %v1573 = vsel %vm680, %v1538, 0
      %v1576 = vsel %vm680, %v1539, 0
      %v1579 = vsel %vm680, %v1540, 0
      %v1582 = vsel %vm680, %v1541, 0
      %v1585 = vsel %vm680, %v1542, 0
      %v1588 = vsel %vm680, %v1543, 0
      %v1591 = vsel %vm680, %v1544, 0
      %v1594 = vsel %vm729, %v1464, 0
      %1596 = vmatpush.bf16.msra.mxu0 0
      %1597 = vmatpush.bf16.msra.mxu0 0
      %1598 = vmatpush.bf16.msra.mxu0 0
      %1599 = vmatpush.bf16.msra.mxu0 0
      %1600 = vmatpush.bf16.msra.mxu0 0
      %1601 = vmatpush.bf16.msra.mxu0 0
      %1602 = vmatpush.bf16.msra.mxu0 0
      %1603 = vmatpush.bf16.msra.mxu0 %v1594
      %1604 = vmatmul.bf16.gmra.mxu0 %v1546
      %v1605 = vpop.f32.mrf.mxu0
      %v1606 = vadd.f32 0.0, %v1605
      %v1607 = vpop.f32.mrf.mxu0
      %v1608 = vadd.f32 0.0, %v1607
      %1609 = vmatmul.bf16.gmra.mxu0 %v1549
      %v1610 = vpop.f32.mrf.mxu0
      %v1611 = vadd.f32 0.0, %v1610
      %v1612 = vpop.f32.mrf.mxu0
      %v1613 = vadd.f32 0.0, %v1612
      %1614 = vmatmul.bf16.gmra.mxu0 %v1552
      %v1615 = vpop.f32.mrf.mxu0
      %v1616 = vadd.f32 0.0, %v1615
      %v1617 = vpop.f32.mrf.mxu0
      %v1618 = vadd.f32 0.0, %v1617
      %1619 = vmatmul.bf16.gmra.mxu0 %v1555
      %v1620 = vpop.f32.mrf.mxu0
      %v1621 = vadd.f32 0.0, %v1620
      %v1622 = vpop.f32.mrf.mxu0
      %v1623 = vadd.f32 0.0, %v1622
      %1624 = vmatmul.bf16.gmra.mxu0 %v1558
      %v1625 = vpop.f32.mrf.mxu0
      %v1626 = vadd.f32 0.0, %v1625
      %v1627 = vpop.f32.mrf.mxu0
      %v1628 = vadd.f32 0.0, %v1627
      %1629 = vmatmul.bf16.gmra.mxu0 %v1561
      %v1630 = vpop.f32.mrf.mxu0
      %v1631 = vadd.f32 0.0, %v1630
      %v1632 = vpop.f32.mrf.mxu0
      %v1633 = vadd.f32 0.0, %v1632
      %1634 = vmatmul.bf16.gmra.mxu0 %v1564
      %v1635 = vpop.f32.mrf.mxu0
      %v1636 = vadd.f32 0.0, %v1635
      %v1637 = vpop.f32.mrf.mxu0
      %v1638 = vadd.f32 0.0, %v1637
      %1639 = vmatmul.bf16.gmra.mxu0 %v1567
      %v1640 = vpop.f32.mrf.mxu0
      %v1641 = vadd.f32 0.0, %v1640
      %v1642 = vpop.f32.mrf.mxu0
      %v1643 = vadd.f32 0.0, %v1642
      %1644 = vmatmul.bf16.gmra.mxu0 %v1570
      %v1645 = vpop.f32.mrf.mxu0
      %v1646 = vadd.f32 0.0, %v1645
      %v1647 = vpop.f32.mrf.mxu0
      %v1648 = vadd.f32 0.0, %v1647
      %1649 = vmatmul.bf16.gmra.mxu0 %v1573
      %v1650 = vpop.f32.mrf.mxu0
      %v1651 = vadd.f32 0.0, %v1650
      %v1652 = vpop.f32.mrf.mxu0
      %v1653 = vadd.f32 0.0, %v1652
      %1654 = vmatmul.bf16.gmra.mxu0 %v1576
      %v1655 = vpop.f32.mrf.mxu0
      %v1656 = vadd.f32 0.0, %v1655
      %v1657 = vpop.f32.mrf.mxu0
      %v1658 = vadd.f32 0.0, %v1657
      %1659 = vmatmul.bf16.gmra.mxu0 %v1579
      %v1660 = vpop.f32.mrf.mxu0
      %v1661 = vadd.f32 0.0, %v1660
      %v1662 = vpop.f32.mrf.mxu0
      %v1663 = vadd.f32 0.0, %v1662
      %1664 = vmatmul.bf16.gmra.mxu0 %v1582
      %v1665 = vpop.f32.mrf.mxu0
      %v1666 = vadd.f32 0.0, %v1665
      %v1667 = vpop.f32.mrf.mxu0
      %v1668 = vadd.f32 0.0, %v1667
      %1669 = vmatmul.bf16.gmra.mxu0 %v1585
      %v1670 = vpop.f32.mrf.mxu0
      %v1671 = vadd.f32 0.0, %v1670
      %v1672 = vpop.f32.mrf.mxu0
      %v1673 = vadd.f32 0.0, %v1672
      %1674 = vmatmul.bf16.gmra.mxu0 %v1588
      %v1675 = vpop.f32.mrf.mxu0
      %v1676 = vadd.f32 0.0, %v1675
      %v1677 = vpop.f32.mrf.mxu0
      %v1678 = vadd.f32 0.0, %v1677
      %1679 = vmatmul.bf16.gmra.mxu0 %v1591
      %v1680 = vpop.f32.mrf.mxu0
      %v1681 = vadd.f32 0.0, %v1680
      %v1682 = vpop.f32.mrf.mxu0
      %v1683 = vadd.f32 0.0, %v1682
      %1684 = vdwg.mxu0
      %v1685 = vadd.f32 %v1395, %v1606
      %v1686 = vadd.f32 %v1396, %v1608
      %v1687 = vadd.f32 %v1397, %v1611
      %v1688 = vadd.f32 %v1398, %v1613
      %v1689 = vadd.f32 %v1399, %v1616
      %v1690 = vadd.f32 %v1400, %v1618
      %v1691 = vadd.f32 %v1401, %v1621
      %v1692 = vadd.f32 %v1402, %v1623
      %v1693 = vadd.f32 %v1403, %v1626
      %v1694 = vadd.f32 %v1404, %v1628
      %v1695 = vadd.f32 %v1405, %v1631
      %v1696 = vadd.f32 %v1406, %v1633
      %v1697 = vadd.f32 %v1407, %v1636
      %v1698 = vadd.f32 %v1408, %v1638
      %v1699 = vadd.f32 %v1409, %v1641
      %v1700 = vadd.f32 %v1410, %v1643
      %v1701 = vadd.f32 %v1411, %v1646
      %v1702 = vadd.f32 %v1412, %v1648
      %v1703 = vadd.f32 %v1413, %v1651
      %v1704 = vadd.f32 %v1414, %v1653
      %v1705 = vadd.f32 %v1415, %v1656
      %v1706 = vadd.f32 %v1416, %v1658
      %v1707 = vadd.f32 %v1417, %v1661
      %v1708 = vadd.f32 %v1418, %v1663
      %v1709 = vadd.f32 %v1419, %v1666
      %v1710 = vadd.f32 %v1420, %v1668
      %v1711 = vadd.f32 %v1421, %v1671
      %v1712 = vadd.f32 %v1422, %v1673
      %v1713 = vadd.f32 %v1423, %v1676
      %v1714 = vadd.f32 %v1424, %v1678
      %v1715 = vadd.f32 %v1425, %v1681
      %v1716 = vadd.f32 %v1426, %v1683
      %v1717 = vld [vmem:[%s1430] sm:$0xf]
      %v1718 = vld [vmem:[%s1430 + $0x4] sm:$0xf]
      %v1719 = vld [vmem:[%s1430 + $0x8] sm:$0x1]
      %v1720 = vld [vmem:[%s1430 + $0xc] sm:$0xf]
      %v1721 = vld [vmem:[%s1430 + $0x10] sm:$0xf]
      %v1722 = vld [vmem:[%s1430 + $0x14] sm:$0x1]
      %v1723 = vld [vmem:[%s1430 + $0x18] sm:$0xf]
      %v1724 = vld [vmem:[%s1430 + $0x1c] sm:$0xf]
      %v1725 = vld [vmem:[%s1430 + $0x20] sm:$0x1]
      %v1726 = vld [vmem:[%s1430 + $0x24] sm:$0xf]
      %v1727 = vld [vmem:[%s1430 + $0x28] sm:$0xf]
      %v1728 = vld [vmem:[%s1430 + $0x2c] sm:$0x1]
      %v1729 = vld [vmem:[%s1430 + $0x30] sm:$0xf]
      %v1730 = vld [vmem:[%s1430 + $0x34] sm:$0xf]
      %v1731 = vld [vmem:[%s1430 + $0x38] sm:$0x1]
      %v1732 = vld [vmem:[%s1430 + $0x3c] sm:$0xf]
      %v1733 = vld [vmem:[%s1430 + $0x40] sm:$0xf]
      %v1734 = vld [vmem:[%s1430 + $0x44] sm:$0x1]
      %v1735 = vld [vmem:[%s1430 + $0x48] sm:$0xf]
      %v1736 = vld [vmem:[%s1430 + $0x4c] sm:$0xf]
      %v1737 = vld [vmem:[%s1430 + $0x50] sm:$0x1]
      %v1738 = vld [vmem:[%s1430 + $0x54] sm:$0xf]
      %v1739 = vld [vmem:[%s1430 + $0x58] sm:$0xf]
      %v1740 = vld [vmem:[%s1430 + $0x5c] sm:$0x1]
      %v1741 = vld [vmem:[%s1430 + $0x60] sm:$0xf]
      %v1742 = vld [vmem:[%s1430 + $0x64] sm:$0xf]
      %v1743 = vld [vmem:[%s1430 + $0x68] sm:$0x1]
      %v1744 = vld [vmem:[%s1430 + $0x6c] sm:$0xf]
      %v1745 = vld [vmem:[%s1430 + $0x70] sm:$0xf]
      %v1746 = vld [vmem:[%s1430 + $0x74] sm:$0x1]
      %v1747 = vld [vmem:[%s1430 + $0x78] sm:$0xf]
      %v1748 = vld [vmem:[%s1430 + $0x7c] sm:$0xf]
      %v1749 = vld [vmem:[%s1430 + $0x80] sm:$0x1]
      %v1750 = vld [vmem:[%s1430 + $0x84] sm:$0xf]
      %v1751 = vld [vmem:[%s1430 + $0x88] sm:$0xf]
      %v1752 = vld [vmem:[%s1430 + $0x8c] sm:$0x1]
      %v1753 = vld [vmem:[%s1430 + $0x90] sm:$0xf]
      %v1754 = vld [vmem:[%s1430 + $0x94] sm:$0xf]
      %v1755 = vld [vmem:[%s1430 + $0x98] sm:$0x1]
      %v1756 = vld [vmem:[%s1430 + $0x9c] sm:$0xf]
      %v1757 = vld [vmem:[%s1430 + $0xa0] sm:$0xf]
      %v1758 = vld [vmem:[%s1430 + $0xa4] sm:$0x1]
      %v1759 = vld [vmem:[%s1430 + $0xa8] sm:$0xf]
      %v1760 = vld [vmem:[%s1430 + $0xac] sm:$0xf]
      %v1761 = vld [vmem:[%s1430 + $0xb0] sm:$0x1]
      %v1762 = vld [vmem:[%s1430 + $0xb4] sm:$0xf]
      %v1763 = vld [vmem:[%s1430 + $0xb8] sm:$0xf]
      %v1764 = vld [vmem:[%s1430 + $0xbc] sm:$0x1]
      %v1766 = vshrl.u32 %v1717, 16
      %v1768 = vrot.slane %v1766, 4
      %v1769 = vshll.u32 %v1717, 16
      %v1771 = vrot.slane %v1769, 5
      %v1772 = vor.u32 %v1768, %v1771
      %v1773 = vrot.slane %v1772, 4
      %v1775 = vshll.u32 %v1718, 16
      %v1777 = vrot.slane %v1775, 5
      %v1778 = vsel %vm245, %v1773, %v1777
      %v1779 = vshrl.u32 %v1718, 16
      %v1781 = vrot.slane %v1779, 4
      %v1782 = vor.u32 %v1781, %v1777
      %v1783 = vrot.slane %v1782, 4
      %v1785 = vshll.u32 %v1719, 16
      %v1787 = vrot.slane %v1785, 5
      %v1788 = vsel %vm245, %v1783, %v1787
      %v1790 = vshrl.u32 %v1720, 16
      %v1792 = vrot.slane %v1790, 4
      %v1793 = vshll.u32 %v1720, 16
      %v1795 = vrot.slane %v1793, 5
      %v1796 = vor.u32 %v1792, %v1795
      %v1797 = vrot.slane %v1796, 4
      %v1799 = vshll.u32 %v1721, 16
      %v1801 = vrot.slane %v1799, 5
      %v1802 = vsel %vm245, %v1797, %v1801
      %v1803 = vshrl.u32 %v1721, 16
      %v1805 = vrot.slane %v1803, 4
      %v1806 = vor.u32 %v1805, %v1801
      %v1807 = vrot.slane %v1806, 4
      %v1809 = vshll.u32 %v1722, 16
      %v1811 = vrot.slane %v1809, 5
      %v1812 = vsel %vm245, %v1807, %v1811
      %v1814 = vshrl.u32 %v1723, 16
      %v1816 = vrot.slane %v1814, 4
      %v1817 = vshll.u32 %v1723, 16
      %v1819 = vrot.slane %v1817, 5
      %v1820 = vor.u32 %v1816, %v1819
      %v1821 = vrot.slane %v1820, 4
      %v1823 = vshll.u32 %v1724, 16
      %v1825 = vrot.slane %v1823, 5
      %v1826 = vsel %vm245, %v1821, %v1825
      %v1827 = vshrl.u32 %v1724, 16
      %v1829 = vrot.slane %v1827, 4
      %v1830 = vor.u32 %v1829, %v1825
      %v1831 = vrot.slane %v1830, 4
      %v1833 = vshll.u32 %v1725, 16
      %v1835 = vrot.slane %v1833, 5
      %v1836 = vsel %vm245, %v1831, %v1835
      %v1838 = vshrl.u32 %v1726, 16
      %v1840 = vrot.slane %v1838, 4
      %v1841 = vshll.u32 %v1726, 16
      %v1843 = vrot.slane %v1841, 5
      %v1844 = vor.u32 %v1840, %v1843
      %v1845 = vrot.slane %v1844, 4
      %v1847 = vshll.u32 %v1727, 16
      %v1849 = vrot.slane %v1847, 5
      %v1850 = vsel %vm245, %v1845, %v1849
      %v1851 = vshrl.u32 %v1727, 16
      %v1853 = vrot.slane %v1851, 4
      %v1854 = vor.u32 %v1853, %v1849
      %v1855 = vrot.slane %v1854, 4
      %v1857 = vshll.u32 %v1728, 16
      %v1859 = vrot.slane %v1857, 5
      %v1860 = vsel %vm245, %v1855, %v1859
      %v1862 = vshrl.u32 %v1729, 16
      %v1864 = vrot.slane %v1862, 4
      %v1865 = vshll.u32 %v1729, 16
      %v1867 = vrot.slane %v1865, 5
      %v1868 = vor.u32 %v1864, %v1867
      %v1869 = vrot.slane %v1868, 4
      %v1871 = vshll.u32 %v1730, 16
      %v1873 = vrot.slane %v1871, 5
      %v1874 = vsel %vm245, %v1869, %v1873
      %v1875 = vshrl.u32 %v1730, 16
      %v1877 = vrot.slane %v1875, 4
      %v1878 = vor.u32 %v1877, %v1873
      %v1879 = vrot.slane %v1878, 4
      %v1881 = vshll.u32 %v1731, 16
      %v1883 = vrot.slane %v1881, 5
      %v1884 = vsel %vm245, %v1879, %v1883
      %v1886 = vshrl.u32 %v1732, 16
      %v1888 = vrot.slane %v1886, 4
      %v1889 = vshll.u32 %v1732, 16
      %v1891 = vrot.slane %v1889, 5
      %v1892 = vor.u32 %v1888, %v1891
      %v1893 = vrot.slane %v1892, 4
      %v1895 = vshll.u32 %v1733, 16
      %v1897 = vrot.slane %v1895, 5
      %v1898 = vsel %vm245, %v1893, %v1897
      %v1899 = vshrl.u32 %v1733, 16
      %v1901 = vrot.slane %v1899, 4
      %v1902 = vor.u32 %v1901, %v1897
      %v1903 = vrot.slane %v1902, 4
      %v1905 = vshll.u32 %v1734, 16
      %v1907 = vrot.slane %v1905, 5
      %v1908 = vsel %vm245, %v1903, %v1907
      %v1910 = vshrl.u32 %v1735, 16
      %v1912 = vrot.slane %v1910, 4
      %v1913 = vshll.u32 %v1735, 16
      %v1915 = vrot.slane %v1913, 5
      %v1916 = vor.u32 %v1912, %v1915
      %v1917 = vrot.slane %v1916, 4
      %v1919 = vshll.u32 %v1736, 16
      %v1921 = vrot.slane %v1919, 5
      %v1922 = vsel %vm245, %v1917, %v1921
      %v1923 = vshrl.u32 %v1736, 16
      %v1925 = vrot.slane %v1923, 4
      %v1926 = vor.u32 %v1925, %v1921
      %v1927 = vrot.slane %v1926, 4
      %v1929 = vshll.u32 %v1737, 16
      %v1931 = vrot.slane %v1929, 5
      %v1932 = vsel %vm245, %v1927, %v1931
      %v1934 = vshrl.u32 %v1738, 16
      %v1936 = vrot.slane %v1934, 4
      %v1937 = vshll.u32 %v1738, 16
      %v1939 = vrot.slane %v1937, 5
      %v1940 = vor.u32 %v1936, %v1939
      %v1941 = vrot.slane %v1940, 4
      %v1943 = vshll.u32 %v1739, 16
      %v1945 = vrot.slane %v1943, 5
      %v1946 = vsel %vm245, %v1941, %v1945
      %v1947 = vshrl.u32 %v1739, 16
      %v1949 = vrot.slane %v1947, 4
      %v1950 = vor.u32 %v1949, %v1945
      %v1951 = vrot.slane %v1950, 4
      %v1953 = vshll.u32 %v1740, 16
      %v1955 = vrot.slane %v1953, 5
      %v1956 = vsel %vm245, %v1951, %v1955
      %v1958 = vshrl.u32 %v1741, 16
      %v1960 = vrot.slane %v1958, 4
      %v1961 = vshll.u32 %v1741, 16
      %v1963 = vrot.slane %v1961, 5
      %v1964 = vor.u32 %v1960, %v1963
      %v1965 = vrot.slane %v1964, 4
      %v1967 = vshll.u32 %v1742, 16
      %v1969 = vrot.slane %v1967, 5
      %v1970 = vsel %vm245, %v1965, %v1969
      %v1971 = vshrl.u32 %v1742, 16
      %v1973 = vrot.slane %v1971, 4
      %v1974 = vor.u32 %v1973, %v1969
      %v1975 = vrot.slane %v1974, 4
      %v1977 = vshll.u32 %v1743, 16
      %v1979 = vrot.slane %v1977, 5
      %v1980 = vsel %vm245, %v1975, %v1979
      %v1982 = vshrl.u32 %v1744, 16
      %v1984 = vrot.slane %v1982, 4
      %v1985 = vshll.u32 %v1744, 16
      %v1987 = vrot.slane %v1985, 5
      %v1988 = vor.u32 %v1984, %v1987
      %v1989 = vrot.slane %v1988, 4
      %v1991 = vshll.u32 %v1745, 16
      %v1993 = vrot.slane %v1991, 5
      %v1994 = vsel %vm245, %v1989, %v1993
      %v1995 = vshrl.u32 %v1745, 16
      %v1997 = vrot.slane %v1995, 4
      %v1998 = vor.u32 %v1997, %v1993
      %v1999 = vrot.slane %v1998, 4
      %v2001 = vshll.u32 %v1746, 16
      %v2003 = vrot.slane %v2001, 5
      %v2004 = vsel %vm245, %v1999, %v2003
      %v2006 = vshrl.u32 %v1747, 16
      %v2008 = vrot.slane %v2006, 4
      %v2009 = vshll.u32 %v1747, 16
      %v2011 = vrot.slane %v2009, 5
      %v2012 = vor.u32 %v2008, %v2011
      %v2013 = vrot.slane %v2012, 4
      %v2015 = vshll.u32 %v1748, 16
      %v2017 = vrot.slane %v2015, 5
      %v2018 = vsel %vm245, %v2013, %v2017
      %v2019 = vshrl.u32 %v1748, 16
      %v2021 = vrot.slane %v2019, 4
      %v2022 = vor.u32 %v2021, %v2017
      %v2023 = vrot.slane %v2022, 4
      %v2025 = vshll.u32 %v1749, 16
      %v2027 = vrot.slane %v2025, 5
      %v2028 = vsel %vm245, %v2023, %v2027
      %v2030 = vshrl.u32 %v1750, 16
      %v2032 = vrot.slane %v2030, 4
      %v2033 = vshll.u32 %v1750, 16
      %v2035 = vrot.slane %v2033, 5
      %v2036 = vor.u32 %v2032, %v2035
      %v2037 = vrot.slane %v2036, 4
      %v2039 = vshll.u32 %v1751, 16
      %v2041 = vrot.slane %v2039, 5
      %v2042 = vsel %vm245, %v2037, %v2041
      %v2043 = vshrl.u32 %v1751, 16
      %v2045 = vrot.slane %v2043, 4
      %v2046 = vor.u32 %v2045, %v2041
      %v2047 = vrot.slane %v2046, 4
      %v2049 = vshll.u32 %v1752, 16
      %v2051 = vrot.slane %v2049, 5
      %v2052 = vsel %vm245, %v2047, %v2051
      %v2054 = vshrl.u32 %v1753, 16
      %v2056 = vrot.slane %v2054, 4
      %v2057 = vshll.u32 %v1753, 16
      %v2059 = vrot.slane %v2057, 5
      %v2060 = vor.u32 %v2056, %v2059
      %v2061 = vrot.slane %v2060, 4
      %v2063 = vshll.u32 %v1754, 16
      %v2065 = vrot.slane %v2063, 5
      %v2066 = vsel %vm245, %v2061, %v2065
      %v2067 = vshrl.u32 %v1754, 16
      %v2069 = vrot.slane %v2067, 4
      %v2070 = vor.u32 %v2069, %v2065
      %v2071 = vrot.slane %v2070, 4
      %v2073 = vshll.u32 %v1755, 16
      %v2075 = vrot.slane %v2073, 5
      %v2076 = vsel %vm245, %v2071, %v2075
      %v2078 = vshrl.u32 %v1756, 16
      %v2080 = vrot.slane %v2078, 4
      %v2081 = vshll.u32 %v1756, 16
      %v2083 = vrot.slane %v2081, 5
      %v2084 = vor.u32 %v2080, %v2083
      %v2085 = vrot.slane %v2084, 4
      %v2087 = vshll.u32 %v1757, 16
      %v2089 = vrot.slane %v2087, 5
      %v2090 = vsel %vm245, %v2085, %v2089
      %v2091 = vshrl.u32 %v1757, 16
      %v2093 = vrot.slane %v2091, 4
      %v2094 = vor.u32 %v2093, %v2089
      %v2095 = vrot.slane %v2094, 4
      %v2097 = vshll.u32 %v1758, 16
      %v2099 = vrot.slane %v2097, 5
      %v2100 = vsel %vm245, %v2095, %v2099
      %v2102 = vshrl.u32 %v1759, 16
      %v2104 = vrot.slane %v2102, 4
      %v2105 = vshll.u32 %v1759, 16
      %v2107 = vrot.slane %v2105, 5
      %v2108 = vor.u32 %v2104, %v2107
      %v2109 = vrot.slane %v2108, 4
      %v2111 = vshll.u32 %v1760, 16
      %v2113 = vrot.slane %v2111, 5
      %v2114 = vsel %vm245, %v2109, %v2113
      %v2115 = vshrl.u32 %v1760, 16
      %v2117 = vrot.slane %v2115, 4
      %v2118 = vor.u32 %v2117, %v2113
      %v2119 = vrot.slane %v2118, 4
      %v2121 = vshll.u32 %v1761, 16
      %v2123 = vrot.slane %v2121, 5
      %v2124 = vsel %vm245, %v2119, %v2123
      %v2126 = vshrl.u32 %v1762, 16
      %v2128 = vrot.slane %v2126, 4
      %v2129 = vshll.u32 %v1762, 16
      %v2131 = vrot.slane %v2129, 5
      %v2132 = vor.u32 %v2128, %v2131
      %v2133 = vrot.slane %v2132, 4
      %v2135 = vshll.u32 %v1763, 16
      %v2137 = vrot.slane %v2135, 5
      %v2138 = vsel %vm245, %v2133, %v2137
      %v2139 = vshrl.u32 %v1763, 16
      %v2141 = vrot.slane %v2139, 4
      %v2142 = vor.u32 %v2141, %v2137
      %v2143 = vrot.slane %v2142, 4
      %v2145 = vshll.u32 %v1764, 16
      %v2147 = vrot.slane %v2145, 5
      %v2148 = vsel %vm245, %v2143, %v2147
      %s2149 = scalar_lea.vmem %s1, 8
      %v2150 = vld [vmem:[%s2149] sm:$0x3]
      %v2151 = vunpack.c.l.b16 %v1778
      %v2152 = vunpack.c.l.b16 %v1788
      %v2153 = vunpack.c.l.b16 %v1802
      %v2154 = vunpack.c.l.b16 %v1812
      %v2155 = vunpack.c.l.b16 %v1826
      %v2156 = vunpack.c.l.b16 %v1836
      %v2157 = vunpack.c.l.b16 %v1850
      %v2158 = vunpack.c.l.b16 %v1860
      %v2159 = vunpack.c.l.b16 %v1874
      %v2160 = vunpack.c.l.b16 %v1884
      %v2161 = vunpack.c.l.b16 %v1898
      %v2162 = vunpack.c.l.b16 %v1908
      %v2163 = vunpack.c.l.b16 %v1922
      %v2164 = vunpack.c.l.b16 %v1932
      %v2165 = vunpack.c.l.b16 %v1946
      %v2166 = vunpack.c.l.b16 %v1956
      %v2167 = vunpack.c.l.b16 %v1970
      %v2168 = vunpack.c.l.b16 %v1980
      %v2169 = vunpack.c.l.b16 %v1994
      %v2170 = vunpack.c.l.b16 %v2004
      %v2171 = vunpack.c.l.b16 %v2018
      %v2172 = vunpack.c.l.b16 %v2028
      %v2173 = vunpack.c.l.b16 %v2042
      %v2174 = vunpack.c.l.b16 %v2052
      %v2175 = vunpack.c.l.b16 %v2066
      %v2176 = vunpack.c.l.b16 %v2076
      %v2177 = vunpack.c.l.b16 %v2090
      %v2178 = vunpack.c.l.b16 %v2100
      %v2179 = vunpack.c.l.b16 %v2114
      %v2180 = vunpack.c.l.b16 %v2124
      %v2181 = vunpack.c.l.b16 %v2138
      %v2182 = vunpack.c.l.b16 %v2148
      %v2183 = vpack.c.b16 %v2152, %v2151
      %v2184 = vpack.c.b16 %v2154, %v2153
      %v2185 = vpack.c.b16 %v2156, %v2155
      %v2186 = vpack.c.b16 %v2158, %v2157
      %v2187 = vpack.c.b16 %v2160, %v2159
      %v2188 = vpack.c.b16 %v2162, %v2161
      %v2189 = vpack.c.b16 %v2164, %v2163
      %v2190 = vpack.c.b16 %v2166, %v2165
      %v2191 = vpack.c.b16 %v2168, %v2167
      %v2192 = vpack.c.b16 %v2170, %v2169
      %v2193 = vpack.c.b16 %v2172, %v2171
      %v2194 = vpack.c.b16 %v2174, %v2173
      %v2195 = vpack.c.b16 %v2176, %v2175
      %v2196 = vpack.c.b16 %v2178, %v2177
      %v2197 = vpack.c.b16 %v2180, %v2179
      %v2198 = vpack.c.b16 %v2182, %v2181
      %v2200 = vsel %vm680, %v2183, 0
      %v2203 = vsel %vm680, %v2184, 0
      %v2206 = vsel %vm680, %v2185, 0
      %v2209 = vsel %vm680, %v2186, 0
      %v2212 = vsel %vm680, %v2187, 0
      %v2215 = vsel %vm680, %v2188, 0
      %v2218 = vsel %vm680, %v2189, 0
      %v2221 = vsel %vm680, %v2190, 0
      %v2224 = vsel %vm680, %v2191, 0
      %v2227 = vsel %vm680, %v2192, 0
      %v2230 = vsel %vm680, %v2193, 0
      %v2233 = vsel %vm680, %v2194, 0
      %v2236 = vsel %vm680, %v2195, 0
      %v2239 = vsel %vm680, %v2196, 0
      %v2242 = vsel %vm680, %v2197, 0
      %v2245 = vsel %vm680, %v2198, 0
      %v2248 = vsel %vm729, %v2150, 0
      %2250 = vmatpush.bf16.msra.mxu0 0
      %2251 = vmatpush.bf16.msra.mxu0 0
      %2252 = vmatpush.bf16.msra.mxu0 0
      %2253 = vmatpush.bf16.msra.mxu0 0
      %2254 = vmatpush.bf16.msra.mxu0 0
      %2255 = vmatpush.bf16.msra.mxu0 0
      %2256 = vmatpush.bf16.msra.mxu0 0
      %2257 = vmatpush.bf16.msra.mxu0 %v2248
      %2258 = vmatmul.bf16.gmra.mxu0 %v2200
      %v2259 = vpop.f32.mrf.mxu0
      %v2260 = vadd.f32 0.0, %v2259
      %v2261 = vpop.f32.mrf.mxu0
      %v2262 = vadd.f32 0.0, %v2261
      %2263 = vmatmul.bf16.gmra.mxu0 %v2203
      %v2264 = vpop.f32.mrf.mxu0
      %v2265 = vadd.f32 0.0, %v2264
      %v2266 = vpop.f32.mrf.mxu0
      %v2267 = vadd.f32 0.0, %v2266
      %2268 = vmatmul.bf16.gmra.mxu0 %v2206
      %v2269 = vpop.f32.mrf.mxu0
      %v2270 = vadd.f32 0.0, %v2269
      %v2271 = vpop.f32.mrf.mxu0
      %v2272 = vadd.f32 0.0, %v2271
      %2273 = vmatmul.bf16.gmra.mxu0 %v2209
      %v2274 = vpop.f32.mrf.mxu0
      %v2275 = vadd.f32 0.0, %v2274
      %v2276 = vpop.f32.mrf.mxu0
      %v2277 = vadd.f32 0.0, %v2276
      %2278 = vmatmul.bf16.gmra.mxu0 %v2212
      %v2279 = vpop.f32.mrf.mxu0
      %v2280 = vadd.f32 0.0, %v2279
      %v2281 = vpop.f32.mrf.mxu0
      %v2282 = vadd.f32 0.0, %v2281
      %2283 = vmatmul.bf16.gmra.mxu0 %v2215
      %v2284 = vpop.f32.mrf.mxu0
      %v2285 = vadd.f32 0.0, %v2284
      %v2286 = vpop.f32.mrf.mxu0
      %v2287 = vadd.f32 0.0, %v2286
      %2288 = vmatmul.bf16.gmra.mxu0 %v2218
      %v2289 = vpop.f32.mrf.mxu0
      %v2290 = vadd.f32 0.0, %v2289
      %v2291 = vpop.f32.mrf.mxu0
      %v2292 = vadd.f32 0.0, %v2291
      %2293 = vmatmul.bf16.gmra.mxu0 %v2221
      %v2294 = vpop.f32.mrf.mxu0
      %v2295 = vadd.f32 0.0, %v2294
      %v2296 = vpop.f32.mrf.mxu0
      %v2297 = vadd.f32 0.0, %v2296
      %2298 = vmatmul.bf16.gmra.mxu0 %v2224
      %v2299 = vpop.f32.mrf.mxu0
      %v2300 = vadd.f32 0.0, %v2299
      %v2301 = vpop.f32.mrf.mxu0
      %v2302 = vadd.f32 0.0, %v2301
      %2303 = vmatmul.bf16.gmra.mxu0 %v2227
      %v2304 = vpop.f32.mrf.mxu0
      %v2305 = vadd.f32 0.0, %v2304
      %v2306 = vpop.f32.mrf.mxu0
      %v2307 = vadd.f32 0.0, %v2306
      %2308 = vmatmul.bf16.gmra.mxu0 %v2230
      %v2309 = vpop.f32.mrf.mxu0
      %v2310 = vadd.f32 0.0, %v2309
      %v2311 = vpop.f32.mrf.mxu0
      %v2312 = vadd.f32 0.0, %v2311
      %2313 = vmatmul.bf16.gmra.mxu0 %v2233
      %v2314 = vpop.f32.mrf.mxu0
      %v2315 = vadd.f32 0.0, %v2314
      %v2316 = vpop.f32.mrf.mxu0
      %v2317 = vadd.f32 0.0, %v2316
      %2318 = vmatmul.bf16.gmra.mxu0 %v2236
      %v2319 = vpop.f32.mrf.mxu0
      %v2320 = vadd.f32 0.0, %v2319
      %v2321 = vpop.f32.mrf.mxu0
      %v2322 = vadd.f32 0.0, %v2321
      %2323 = vmatmul.bf16.gmra.mxu0 %v2239
      %v2324 = vpop.f32.mrf.mxu0
      %v2325 = vadd.f32 0.0, %v2324
      %v2326 = vpop.f32.mrf.mxu0
      %v2327 = vadd.f32 0.0, %v2326
      %2328 = vmatmul.bf16.gmra.mxu0 %v2242
      %v2329 = vpop.f32.mrf.mxu0
      %v2330 = vadd.f32 0.0, %v2329
      %v2331 = vpop.f32.mrf.mxu0
      %v2332 = vadd.f32 0.0, %v2331
      %2333 = vmatmul.bf16.gmra.mxu0 %v2245
      %v2334 = vpop.f32.mrf.mxu0
      %v2335 = vadd.f32 0.0, %v2334
      %v2336 = vpop.f32.mrf.mxu0
      %v2337 = vadd.f32 0.0, %v2336
      %2338 = vdwg.mxu0
      %v2339 = vadd.f32 %v1685, %v2260
      %v2340 = vadd.f32 %v1686, %v2262
      %v2341 = vadd.f32 %v1687, %v2265
      %v2342 = vadd.f32 %v1688, %v2267
      %v2343 = vadd.f32 %v1689, %v2270
      %v2344 = vadd.f32 %v1690, %v2272
      %v2345 = vadd.f32 %v1691, %v2275
      %v2346 = vadd.f32 %v1692, %v2277
      %v2347 = vadd.f32 %v1693, %v2280
      %v2348 = vadd.f32 %v1694, %v2282
      %v2349 = vadd.f32 %v1695, %v2285
      %v2350 = vadd.f32 %v1696, %v2287
      %v2351 = vadd.f32 %v1697, %v2290
      %v2352 = vadd.f32 %v1698, %v2292
      %v2353 = vadd.f32 %v1699, %v2295
      %v2354 = vadd.f32 %v1700, %v2297
      %v2355 = vadd.f32 %v1701, %v2300
      %v2356 = vadd.f32 %v1702, %v2302
      %v2357 = vadd.f32 %v1703, %v2305
      %v2358 = vadd.f32 %v1704, %v2307
      %v2359 = vadd.f32 %v1705, %v2310
      %v2360 = vadd.f32 %v1706, %v2312
      %v2361 = vadd.f32 %v1707, %v2315
      %v2362 = vadd.f32 %v1708, %v2317
      %v2363 = vadd.f32 %v1709, %v2320
      %v2364 = vadd.f32 %v1710, %v2322
      %v2365 = vadd.f32 %v1711, %v2325
      %v2366 = vadd.f32 %v1712, %v2327
      %v2367 = vadd.f32 %v1713, %v2330
      %v2368 = vadd.f32 %v1714, %v2332
      %v2369 = vadd.f32 %v1715, %v2335
      %v2370 = vadd.f32 %v1716, %v2337
      %v2371 = vld [vmem:[%s1430] sm:$0xe]
      %v2372 = vld [vmem:[%s1430 + $0xc] sm:$0xe]
      %v2373 = vld [vmem:[%s1430 + $0x18] sm:$0xe]
      %v2374 = vld [vmem:[%s1430 + $0x24] sm:$0xe]
      %v2375 = vld [vmem:[%s1430 + $0x30] sm:$0xe]
      %v2376 = vld [vmem:[%s1430 + $0x3c] sm:$0xe]
      %v2377 = vld [vmem:[%s1430 + $0x48] sm:$0xe]
      %v2378 = vld [vmem:[%s1430 + $0x54] sm:$0xe]
      %v2379 = vld [vmem:[%s1430 + $0x60] sm:$0xe]
      %v2380 = vld [vmem:[%s1430 + $0x6c] sm:$0xe]
      %v2381 = vld [vmem:[%s1430 + $0x78] sm:$0xe]
      %v2382 = vld [vmem:[%s1430 + $0x84] sm:$0xe]
      %v2383 = vld [vmem:[%s1430 + $0x90] sm:$0xe]
      %v2384 = vld [vmem:[%s1430 + $0x9c] sm:$0xe]
      %v2385 = vld [vmem:[%s1430 + $0xa8] sm:$0xe]
      %v2386 = vld [vmem:[%s1430 + $0xb4] sm:$0xe]
      %v2435 = vrot.slane %v2371, 5
      %v2436 = vrot.slane %v2435, 4
      %v2437 = vrot.slane %v1718, 5
      %v2438 = vsel %vm1092, %v2436, %v2437
      %v2439 = vrot.slane %v2437, 4
      %v2440 = vrot.slane %v1719, 5
      %v2441 = vsel %vm1092, %v2439, %v2440
      %v2442 = vrot.slane %v2372, 5
      %v2443 = vrot.slane %v2442, 4
      %v2444 = vrot.slane %v1721, 5
      %v2445 = vsel %vm1092, %v2443, %v2444
      %v2446 = vrot.slane %v2444, 4
      %v2447 = vrot.slane %v1722, 5
      %v2448 = vsel %vm1092, %v2446, %v2447
      %v2449 = vrot.slane %v2373, 5
      %v2450 = vrot.slane %v2449, 4
      %v2451 = vrot.slane %v1724, 5
      %v2452 = vsel %vm1092, %v2450, %v2451
      %v2453 = vrot.slane %v2451, 4
      %v2454 = vrot.slane %v1725, 5
      %v2455 = vsel %vm1092, %v2453, %v2454
      %v2456 = vrot.slane %v2374, 5
      %v2457 = vrot.slane %v2456, 4
      %v2458 = vrot.slane %v1727, 5
      %v2459 = vsel %vm1092, %v2457, %v2458
      %v2460 = vrot.slane %v2458, 4
      %v2461 = vrot.slane %v1728, 5
      %v2462 = vsel %vm1092, %v2460, %v2461
      %v2463 = vrot.slane %v2375, 5
      %v2464 = vrot.slane %v2463, 4
      %v2465 = vrot.slane %v1730, 5
      %v2466 = vsel %vm1092, %v2464, %v2465
      %v2467 = vrot.slane %v2465, 4
      %v2468 = vrot.slane %v1731, 5
      %v2469 = vsel %vm1092, %v2467, %v2468
      %v2470 = vrot.slane %v2376, 5
      %v2471 = vrot.slane %v2470, 4
      %v2472 = vrot.slane %v1733, 5
      %v2473 = vsel %vm1092, %v2471, %v2472
      %v2474 = vrot.slane %v2472, 4
      %v2475 = vrot.slane %v1734, 5
      %v2476 = vsel %vm1092, %v2474, %v2475
      %v2477 = vrot.slane %v2377, 5
      %v2478 = vrot.slane %v2477, 4
      %v2479 = vrot.slane %v1736, 5
      %v2480 = vsel %vm1092, %v2478, %v2479
      %v2481 = vrot.slane %v2479, 4
      %v2482 = vrot.slane %v1737, 5
      %v2483 = vsel %vm1092, %v2481, %v2482
      %v2484 = vrot.slane %v2378, 5
      %v2485 = vrot.slane %v2484, 4
      %v2486 = vrot.slane %v1739, 5
      %v2487 = vsel %vm1092, %v2485, %v2486
      %v2488 = vrot.slane %v2486, 4
      %v2489 = vrot.slane %v1740, 5
      %v2490 = vsel %vm1092, %v2488, %v2489
      %v2491 = vrot.slane %v2379, 5
      %v2492 = vrot.slane %v2491, 4
      %v2493 = vrot.slane %v1742, 5
      %v2494 = vsel %vm1092, %v2492, %v2493
      %v2495 = vrot.slane %v2493, 4
      %v2496 = vrot.slane %v1743, 5
      %v2497 = vsel %vm1092, %v2495, %v2496
      %v2498 = vrot.slane %v2380, 5
      %v2499 = vrot.slane %v2498, 4
      %v2500 = vrot.slane %v1745, 5
      %v2501 = vsel %vm1092, %v2499, %v2500
      %v2502 = vrot.slane %v2500, 4
      %v2503 = vrot.slane %v1746, 5
      %v2504 = vsel %vm1092, %v2502, %v2503
      %v2505 = vrot.slane %v2381, 5
      %v2506 = vrot.slane %v2505, 4
      %v2507 = vrot.slane %v1748, 5
      %v2508 = vsel %vm1092, %v2506, %v2507
      %v2509 = vrot.slane %v2507, 4
      %v2510 = vrot.slane %v1749, 5
      %v2511 = vsel %vm1092, %v2509, %v2510
      %v2512 = vrot.slane %v2382, 5
      %v2513 = vrot.slane %v2512, 4
      %v2514 = vrot.slane %v1751, 5
      %v2515 = vsel %vm1092, %v2513, %v2514
      %v2516 = vrot.slane %v2514, 4
      %v2517 = vrot.slane %v1752, 5
      %v2518 = vsel %vm1092, %v2516, %v2517
      %v2519 = vrot.slane %v2383, 5
      %v2520 = vrot.slane %v2519, 4
      %v2521 = vrot.slane %v1754, 5
      %v2522 = vsel %vm1092, %v2520, %v2521
      %v2523 = vrot.slane %v2521, 4
      %v2524 = vrot.slane %v1755, 5
      %v2525 = vsel %vm1092, %v2523, %v2524
      %v2526 = vrot.slane %v2384, 5
      %v2527 = vrot.slane %v2526, 4
      %v2528 = vrot.slane %v1757, 5
      %v2529 = vsel %vm1092, %v2527, %v2528
      %v2530 = vrot.slane %v2528, 4
      %v2531 = vrot.slane %v1758, 5
      %v2532 = vsel %vm1092, %v2530, %v2531
      %v2533 = vrot.slane %v2385, 5
      %v2534 = vrot.slane %v2533, 4
      %v2535 = vrot.slane %v1760, 5
      %v2536 = vsel %vm1092, %v2534, %v2535
      %v2537 = vrot.slane %v2535, 4
      %v2538 = vrot.slane %v1761, 5
      %v2539 = vsel %vm1092, %v2537, %v2538
      %v2540 = vrot.slane %v2386, 5
      %v2541 = vrot.slane %v2540, 4
      %v2542 = vrot.slane %v1763, 5
      %v2543 = vsel %vm1092, %v2541, %v2542
      %v2544 = vrot.slane %v2542, 4
      %v2545 = vrot.slane %v1764, 5
      %v2546 = vsel %vm1092, %v2544, %v2545
      %s2547 = scalar_lea.vmem %s1, 10
      %v2548 = vld [vmem:[%s2547] sm:$0x3]
      %v2549 = vunpack.c.l.b16 %v2438
      %v2550 = vunpack.c.l.b16 %v2441
      %v2551 = vunpack.c.l.b16 %v2445
      %v2552 = vunpack.c.l.b16 %v2448
      %v2553 = vunpack.c.l.b16 %v2452
      %v2554 = vunpack.c.l.b16 %v2455
      %v2555 = vunpack.c.l.b16 %v2459
      %v2556 = vunpack.c.l.b16 %v2462
      %v2557 = vunpack.c.l.b16 %v2466
      %v2558 = vunpack.c.l.b16 %v2469
      %v2559 = vunpack.c.l.b16 %v2473
      %v2560 = vunpack.c.l.b16 %v2476
      %v2561 = vunpack.c.l.b16 %v2480
      %v2562 = vunpack.c.l.b16 %v2483
      %v2563 = vunpack.c.l.b16 %v2487
      %v2564 = vunpack.c.l.b16 %v2490
      %v2565 = vunpack.c.l.b16 %v2494
      %v2566 = vunpack.c.l.b16 %v2497
      %v2567 = vunpack.c.l.b16 %v2501
      %v2568 = vunpack.c.l.b16 %v2504
      %v2569 = vunpack.c.l.b16 %v2508
      %v2570 = vunpack.c.l.b16 %v2511
      %v2571 = vunpack.c.l.b16 %v2515
      %v2572 = vunpack.c.l.b16 %v2518
      %v2573 = vunpack.c.l.b16 %v2522
      %v2574 = vunpack.c.l.b16 %v2525
      %v2575 = vunpack.c.l.b16 %v2529
      %v2576 = vunpack.c.l.b16 %v2532
      %v2577 = vunpack.c.l.b16 %v2536
      %v2578 = vunpack.c.l.b16 %v2539
      %v2579 = vunpack.c.l.b16 %v2543
      %v2580 = vunpack.c.l.b16 %v2546
      %v2581 = vpack.c.b16 %v2550, %v2549
      %v2582 = vpack.c.b16 %v2552, %v2551
      %v2583 = vpack.c.b16 %v2554, %v2553
      %v2584 = vpack.c.b16 %v2556, %v2555
      %v2585 = vpack.c.b16 %v2558, %v2557
      %v2586 = vpack.c.b16 %v2560, %v2559
      %v2587 = vpack.c.b16 %v2562, %v2561
      %v2588 = vpack.c.b16 %v2564, %v2563
      %v2589 = vpack.c.b16 %v2566, %v2565
      %v2590 = vpack.c.b16 %v2568, %v2567
      %v2591 = vpack.c.b16 %v2570, %v2569
      %v2592 = vpack.c.b16 %v2572, %v2571
      %v2593 = vpack.c.b16 %v2574, %v2573
      %v2594 = vpack.c.b16 %v2576, %v2575
      %v2595 = vpack.c.b16 %v2578, %v2577
      %v2596 = vpack.c.b16 %v2580, %v2579
      %v2598 = vsel %vm680, %v2581, 0
      %v2601 = vsel %vm680, %v2582, 0
      %v2604 = vsel %vm680, %v2583, 0
      %v2607 = vsel %vm680, %v2584, 0
      %v2610 = vsel %vm680, %v2585, 0
      %v2613 = vsel %vm680, %v2586, 0
      %v2616 = vsel %vm680, %v2587, 0
      %v2619 = vsel %vm680, %v2588, 0
      %v2622 = vsel %vm680, %v2589, 0
      %v2625 = vsel %vm680, %v2590, 0
      %v2628 = vsel %vm680, %v2591, 0
      %v2631 = vsel %vm680, %v2592, 0
      %v2634 = vsel %vm680, %v2593, 0
      %v2637 = vsel %vm680, %v2594, 0
      %v2640 = vsel %vm680, %v2595, 0
      %v2643 = vsel %vm680, %v2596, 0
      %v2646 = vsel %vm729, %v2548, 0
      %2648 = vmatpush.bf16.msra.mxu0 0
      %2649 = vmatpush.bf16.msra.mxu0 0
      %2650 = vmatpush.bf16.msra.mxu0 0
      %2651 = vmatpush.bf16.msra.mxu0 0
      %2652 = vmatpush.bf16.msra.mxu0 0
      %2653 = vmatpush.bf16.msra.mxu0 0
      %2654 = vmatpush.bf16.msra.mxu0 0
      %2655 = vmatpush.bf16.msra.mxu0 %v2646
      %2656 = vmatmul.bf16.gmra.mxu0 %v2598
      %v2657 = vpop.f32.mrf.mxu0
      %v2658 = vadd.f32 0.0, %v2657
      %v2659 = vpop.f32.mrf.mxu0
      %v2660 = vadd.f32 0.0, %v2659
      %2661 = vmatmul.bf16.gmra.mxu0 %v2601
      %v2662 = vpop.f32.mrf.mxu0
      %v2663 = vadd.f32 0.0, %v2662
      %v2664 = vpop.f32.mrf.mxu0
      %v2665 = vadd.f32 0.0, %v2664
      %2666 = vmatmul.bf16.gmra.mxu0 %v2604
      %v2667 = vpop.f32.mrf.mxu0
      %v2668 = vadd.f32 0.0, %v2667
      %v2669 = vpop.f32.mrf.mxu0
      %v2670 = vadd.f32 0.0, %v2669
      %2671 = vmatmul.bf16.gmra.mxu0 %v2607
      %v2672 = vpop.f32.mrf.mxu0
      %v2673 = vadd.f32 0.0, %v2672
      %v2674 = vpop.f32.mrf.mxu0
      %v2675 = vadd.f32 0.0, %v2674
      %2676 = vmatmul.bf16.gmra.mxu0 %v2610
      %v2677 = vpop.f32.mrf.mxu0
      %v2678 = vadd.f32 0.0, %v2677
      %v2679 = vpop.f32.mrf.mxu0
      %v2680 = vadd.f32 0.0, %v2679
      %2681 = vmatmul.bf16.gmra.mxu0 %v2613
      %v2682 = vpop.f32.mrf.mxu0
      %v2683 = vadd.f32 0.0, %v2682
      %v2684 = vpop.f32.mrf.mxu0
      %v2685 = vadd.f32 0.0, %v2684
      %2686 = vmatmul.bf16.gmra.mxu0 %v2616
      %v2687 = vpop.f32.mrf.mxu0
      %v2688 = vadd.f32 0.0, %v2687
      %v2689 = vpop.f32.mrf.mxu0
      %v2690 = vadd.f32 0.0, %v2689
      %2691 = vmatmul.bf16.gmra.mxu0 %v2619
      %v2692 = vpop.f32.mrf.mxu0
      %v2693 = vadd.f32 0.0, %v2692
      %v2694 = vpop.f32.mrf.mxu0
      %v2695 = vadd.f32 0.0, %v2694
      %2696 = vmatmul.bf16.gmra.mxu0 %v2622
      %v2697 = vpop.f32.mrf.mxu0
      %v2698 = vadd.f32 0.0, %v2697
      %v2699 = vpop.f32.mrf.mxu0
      %v2700 = vadd.f32 0.0, %v2699
      %2701 = vmatmul.bf16.gmra.mxu0 %v2625
      %v2702 = vpop.f32.mrf.mxu0
      %v2703 = vadd.f32 0.0, %v2702
      %v2704 = vpop.f32.mrf.mxu0
      %v2705 = vadd.f32 0.0, %v2704
      %2706 = vmatmul.bf16.gmra.mxu0 %v2628
      %v2707 = vpop.f32.mrf.mxu0
      %v2708 = vadd.f32 0.0, %v2707
      %v2709 = vpop.f32.mrf.mxu0
      %v2710 = vadd.f32 0.0, %v2709
      %2711 = vmatmul.bf16.gmra.mxu0 %v2631
      %v2712 = vpop.f32.mrf.mxu0
      %v2713 = vadd.f32 0.0, %v2712
      %v2714 = vpop.f32.mrf.mxu0
      %v2715 = vadd.f32 0.0, %v2714
      %2716 = vmatmul.bf16.gmra.mxu0 %v2634
      %v2717 = vpop.f32.mrf.mxu0
      %v2718 = vadd.f32 0.0, %v2717
      %v2719 = vpop.f32.mrf.mxu0
      %v2720 = vadd.f32 0.0, %v2719
      %2721 = vmatmul.bf16.gmra.mxu0 %v2637
      %v2722 = vpop.f32.mrf.mxu0
      %v2723 = vadd.f32 0.0, %v2722
      %v2724 = vpop.f32.mrf.mxu0
      %v2725 = vadd.f32 0.0, %v2724
      %2726 = vmatmul.bf16.gmra.mxu0 %v2640
      %v2727 = vpop.f32.mrf.mxu0
      %v2728 = vadd.f32 0.0, %v2727
      %v2729 = vpop.f32.mrf.mxu0
      %v2730 = vadd.f32 0.0, %v2729
      %2731 = vmatmul.bf16.gmra.mxu0 %v2643
      %v2732 = vpop.f32.mrf.mxu0
      %v2733 = vadd.f32 0.0, %v2732
      %v2734 = vpop.f32.mrf.mxu0
      %v2735 = vadd.f32 0.0, %v2734
      %2736 = vdwg.mxu0
      %v2737 = vadd.f32 %v2339, %v2658
      %v2738 = vadd.f32 %v2340, %v2660
      %v2739 = vadd.f32 %v2341, %v2663
      %v2740 = vadd.f32 %v2342, %v2665
      %v2741 = vadd.f32 %v2343, %v2668
      %v2742 = vadd.f32 %v2344, %v2670
      %v2743 = vadd.f32 %v2345, %v2673
      %v2744 = vadd.f32 %v2346, %v2675
      %v2745 = vadd.f32 %v2347, %v2678
      %v2746 = vadd.f32 %v2348, %v2680
      %v2747 = vadd.f32 %v2349, %v2683
      %v2748 = vadd.f32 %v2350, %v2685
      %v2749 = vadd.f32 %v2351, %v2688
      %v2750 = vadd.f32 %v2352, %v2690
      %v2751 = vadd.f32 %v2353, %v2693
      %v2752 = vadd.f32 %v2354, %v2695
      %v2753 = vadd.f32 %v2355, %v2698
      %v2754 = vadd.f32 %v2356, %v2700
      %v2755 = vadd.f32 %v2357, %v2703
      %v2756 = vadd.f32 %v2358, %v2705
      %v2757 = vadd.f32 %v2359, %v2708
      %v2758 = vadd.f32 %v2360, %v2710
      %v2759 = vadd.f32 %v2361, %v2713
      %v2760 = vadd.f32 %v2362, %v2715
      %v2761 = vadd.f32 %v2363, %v2718
      %v2762 = vadd.f32 %v2364, %v2720
      %v2763 = vadd.f32 %v2365, %v2723
      %v2764 = vadd.f32 %v2366, %v2725
      %v2765 = vadd.f32 %v2367, %v2728
      %v2766 = vadd.f32 %v2368, %v2730
      %v2767 = vadd.f32 %v2369, %v2733
      %v2768 = vadd.f32 %v2370, %v2735
      %s2769 = sadd.s32 %s190, 2
      %s2770 = smul.u32 %s2769, 3
      %s2771 = smul.addr %s2770, 4
      %s2772 = scalar_lea.vmem %s180, %s2771
      %v2773 = vld [vmem:[%s2772] sm:$0xf]
      %v2774 = vld [vmem:[%s2772 + $0x4] sm:$0xf]
      %v2775 = vld [vmem:[%s2772 + $0xc] sm:$0xf]
      %v2776 = vld [vmem:[%s2772 + $0x10] sm:$0xf]
      %v2777 = vld [vmem:[%s2772 + $0x18] sm:$0xf]
      %v2778 = vld [vmem:[%s2772 + $0x1c] sm:$0xf]
      %v2779 = vld [vmem:[%s2772 + $0x24] sm:$0xf]
      %v2780 = vld [vmem:[%s2772 + $0x28] sm:$0xf]
      %v2781 = vld [vmem:[%s2772 + $0x30] sm:$0xf]
      %v2782 = vld [vmem:[%s2772 + $0x34] sm:$0xf]
      %v2783 = vld [vmem:[%s2772 + $0x3c] sm:$0xf]
      %v2784 = vld [vmem:[%s2772 + $0x40] sm:$0xf]
      %v2785 = vld [vmem:[%s2772 + $0x48] sm:$0xf]
      %v2786 = vld [vmem:[%s2772 + $0x4c] sm:$0xf]
      %v2787 = vld [vmem:[%s2772 + $0x54] sm:$0xf]
      %v2788 = vld [vmem:[%s2772 + $0x58] sm:$0xf]
      %v2789 = vld [vmem:[%s2772 + $0x60] sm:$0xf]
      %v2790 = vld [vmem:[%s2772 + $0x64] sm:$0xf]
      %v2791 = vld [vmem:[%s2772 + $0x6c] sm:$0xf]
      %v2792 = vld [vmem:[%s2772 + $0x70] sm:$0xf]
      %v2793 = vld [vmem:[%s2772 + $0x78] sm:$0xf]
      %v2794 = vld [vmem:[%s2772 + $0x7c] sm:$0xf]
      %v2795 = vld [vmem:[%s2772 + $0x84] sm:$0xf]
      %v2796 = vld [vmem:[%s2772 + $0x88] sm:$0xf]
      %v2797 = vld [vmem:[%s2772 + $0x90] sm:$0xf]
      %v2798 = vld [vmem:[%s2772 + $0x94] sm:$0xf]
      %v2799 = vld [vmem:[%s2772 + $0x9c] sm:$0xf]
      %v2800 = vld [vmem:[%s2772 + $0xa0] sm:$0xf]
      %v2801 = vld [vmem:[%s2772 + $0xa8] sm:$0xf]
      %v2802 = vld [vmem:[%s2772 + $0xac] sm:$0xf]
      %v2803 = vld [vmem:[%s2772 + $0xb4] sm:$0xf]
      %v2804 = vld [vmem:[%s2772 + $0xb8] sm:$0xf]
      %s2805 = scalar_lea.vmem %s1, 12
      %v2806 = vld [vmem:[%s2805] sm:$0x3]
      %v2839 = vunpack.c.l.b16 %v2773
      %v2840 = vunpack.c.l.b16 %v2774
      %v2841 = vunpack.c.l.b16 %v2775
      %v2842 = vunpack.c.l.b16 %v2776
      %v2843 = vunpack.c.l.b16 %v2777
      %v2844 = vunpack.c.l.b16 %v2778
      %v2845 = vunpack.c.l.b16 %v2779
      %v2846 = vunpack.c.l.b16 %v2780
      %v2847 = vunpack.c.l.b16 %v2781
      %v2848 = vunpack.c.l.b16 %v2782
      %v2849 = vunpack.c.l.b16 %v2783
      %v2850 = vunpack.c.l.b16 %v2784
      %v2851 = vunpack.c.l.b16 %v2785
      %v2852 = vunpack.c.l.b16 %v2786
      %v2853 = vunpack.c.l.b16 %v2787
      %v2854 = vunpack.c.l.b16 %v2788
      %v2855 = vunpack.c.l.b16 %v2789
      %v2856 = vunpack.c.l.b16 %v2790
      %v2857 = vunpack.c.l.b16 %v2791
      %v2858 = vunpack.c.l.b16 %v2792
      %v2859 = vunpack.c.l.b16 %v2793
      %v2860 = vunpack.c.l.b16 %v2794
      %v2861 = vunpack.c.l.b16 %v2795
      %v2862 = vunpack.c.l.b16 %v2796
      %v2863 = vunpack.c.l.b16 %v2797
      %v2864 = vunpack.c.l.b16 %v2798
      %v2865 = vunpack.c.l.b16 %v2799
      %v2866 = vunpack.c.l.b16 %v2800
      %v2867 = vunpack.c.l.b16 %v2801
      %v2868 = vunpack.c.l.b16 %v2802
      %v2869 = vunpack.c.l.b16 %v2803
      %v2870 = vunpack.c.l.b16 %v2804
      %v2871 = vpack.c.b16 %v2840, %v2839
      %v2872 = vpack.c.b16 %v2842, %v2841
      %v2873 = vpack.c.b16 %v2844, %v2843
      %v2874 = vpack.c.b16 %v2846, %v2845
      %v2875 = vpack.c.b16 %v2848, %v2847
      %v2876 = vpack.c.b16 %v2850, %v2849
      %v2877 = vpack.c.b16 %v2852, %v2851
      %v2878 = vpack.c.b16 %v2854, %v2853
      %v2879 = vpack.c.b16 %v2856, %v2855
      %v2880 = vpack.c.b16 %v2858, %v2857
      %v2881 = vpack.c.b16 %v2860, %v2859
      %v2882 = vpack.c.b16 %v2862, %v2861
      %v2883 = vpack.c.b16 %v2864, %v2863
      %v2884 = vpack.c.b16 %v2866, %v2865
      %v2885 = vpack.c.b16 %v2868, %v2867
      %v2886 = vpack.c.b16 %v2870, %v2869
      %v2888 = vsel %vm680, %v2871, 0
      %v2891 = vsel %vm680, %v2872, 0
      %v2894 = vsel %vm680, %v2873, 0
      %v2897 = vsel %vm680, %v2874, 0
      %v2900 = vsel %vm680, %v2875, 0
      %v2903 = vsel %vm680, %v2876, 0
      %v2906 = vsel %vm680, %v2877, 0
      %v2909 = vsel %vm680, %v2878, 0
      %v2912 = vsel %vm680, %v2879, 0
      %v2915 = vsel %vm680, %v2880, 0
      %v2918 = vsel %vm680, %v2881, 0
      %v2921 = vsel %vm680, %v2882, 0
      %v2924 = vsel %vm680, %v2883, 0
      %v2927 = vsel %vm680, %v2884, 0
      %v2930 = vsel %vm680, %v2885, 0
      %v2933 = vsel %vm680, %v2886, 0
      %v2936 = vsel %vm729, %v2806, 0
      %2938 = vmatpush.bf16.msra.mxu0 0
      %2939 = vmatpush.bf16.msra.mxu0 0
      %2940 = vmatpush.bf16.msra.mxu0 0
      %2941 = vmatpush.bf16.msra.mxu0 0
      %2942 = vmatpush.bf16.msra.mxu0 0
      %2943 = vmatpush.bf16.msra.mxu0 0
      %2944 = vmatpush.bf16.msra.mxu0 0
      %2945 = vmatpush.bf16.msra.mxu0 %v2936
      %2946 = vmatmul.bf16.gmra.mxu0 %v2888
      %v2947 = vpop.f32.mrf.mxu0
      %v2948 = vadd.f32 0.0, %v2947
      %v2949 = vpop.f32.mrf.mxu0
      %v2950 = vadd.f32 0.0, %v2949
      %2951 = vmatmul.bf16.gmra.mxu0 %v2891
      %v2952 = vpop.f32.mrf.mxu0
      %v2953 = vadd.f32 0.0, %v2952
      %v2954 = vpop.f32.mrf.mxu0
      %v2955 = vadd.f32 0.0, %v2954
      %2956 = vmatmul.bf16.gmra.mxu0 %v2894
      %v2957 = vpop.f32.mrf.mxu0
      %v2958 = vadd.f32 0.0, %v2957
      %v2959 = vpop.f32.mrf.mxu0
      %v2960 = vadd.f32 0.0, %v2959
      %2961 = vmatmul.bf16.gmra.mxu0 %v2897
      %v2962 = vpop.f32.mrf.mxu0
      %v2963 = vadd.f32 0.0, %v2962
      %v2964 = vpop.f32.mrf.mxu0
      %v2965 = vadd.f32 0.0, %v2964
      %2966 = vmatmul.bf16.gmra.mxu0 %v2900
      %v2967 = vpop.f32.mrf.mxu0
      %v2968 = vadd.f32 0.0, %v2967
      %v2969 = vpop.f32.mrf.mxu0
      %v2970 = vadd.f32 0.0, %v2969
      %2971 = vmatmul.bf16.gmra.mxu0 %v2903
      %v2972 = vpop.f32.mrf.mxu0
      %v2973 = vadd.f32 0.0, %v2972
      %v2974 = vpop.f32.mrf.mxu0
      %v2975 = vadd.f32 0.0, %v2974
      %2976 = vmatmul.bf16.gmra.mxu0 %v2906
      %v2977 = vpop.f32.mrf.mxu0
      %v2978 = vadd.f32 0.0, %v2977
      %v2979 = vpop.f32.mrf.mxu0
      %v2980 = vadd.f32 0.0, %v2979
      %2981 = vmatmul.bf16.gmra.mxu0 %v2909
      %v2982 = vpop.f32.mrf.mxu0
      %v2983 = vadd.f32 0.0, %v2982
      %v2984 = vpop.f32.mrf.mxu0
      %v2985 = vadd.f32 0.0, %v2984
      %2986 = vmatmul.bf16.gmra.mxu0 %v2912
      %v2987 = vpop.f32.mrf.mxu0
      %v2988 = vadd.f32 0.0, %v2987
      %v2989 = vpop.f32.mrf.mxu0
      %v2990 = vadd.f32 0.0, %v2989
      %2991 = vmatmul.bf16.gmra.mxu0 %v2915
      %v2992 = vpop.f32.mrf.mxu0
      %v2993 = vadd.f32 0.0, %v2992
      %v2994 = vpop.f32.mrf.mxu0
      %v2995 = vadd.f32 0.0, %v2994
      %2996 = vmatmul.bf16.gmra.mxu0 %v2918
      %v2997 = vpop.f32.mrf.mxu0
      %v2998 = vadd.f32 0.0, %v2997
      %v2999 = vpop.f32.mrf.mxu0
      %v3000 = vadd.f32 0.0, %v2999
      %3001 = vmatmul.bf16.gmra.mxu0 %v2921
      %v3002 = vpop.f32.mrf.mxu0
      %v3003 = vadd.f32 0.0, %v3002
      %v3004 = vpop.f32.mrf.mxu0
      %v3005 = vadd.f32 0.0, %v3004
      %3006 = vmatmul.bf16.gmra.mxu0 %v2924
      %v3007 = vpop.f32.mrf.mxu0
      %v3008 = vadd.f32 0.0, %v3007
      %v3009 = vpop.f32.mrf.mxu0
      %v3010 = vadd.f32 0.0, %v3009
      %3011 = vmatmul.bf16.gmra.mxu0 %v2927
      %v3012 = vpop.f32.mrf.mxu0
      %v3013 = vadd.f32 0.0, %v3012
      %v3014 = vpop.f32.mrf.mxu0
      %v3015 = vadd.f32 0.0, %v3014
      %3016 = vmatmul.bf16.gmra.mxu0 %v2930
      %v3017 = vpop.f32.mrf.mxu0
      %v3018 = vadd.f32 0.0, %v3017
      %v3019 = vpop.f32.mrf.mxu0
      %v3020 = vadd.f32 0.0, %v3019
      %3021 = vmatmul.bf16.gmra.mxu0 %v2933
      %v3022 = vpop.f32.mrf.mxu0
      %v3023 = vadd.f32 0.0, %v3022
      %v3024 = vpop.f32.mrf.mxu0
      %v3025 = vadd.f32 0.0, %v3024
      %3026 = vdwg.mxu0
      %v3027 = vadd.f32 %v2737, %v2948
      %v3028 = vadd.f32 %v2738, %v2950
      %v3029 = vadd.f32 %v2739, %v2953
      %v3030 = vadd.f32 %v2740, %v2955
      %v3031 = vadd.f32 %v2741, %v2958
      %v3032 = vadd.f32 %v2742, %v2960
      %v3033 = vadd.f32 %v2743, %v2963
      %v3034 = vadd.f32 %v2744, %v2965
      %v3035 = vadd.f32 %v2745, %v2968
      %v3036 = vadd.f32 %v2746, %v2970
      %v3037 = vadd.f32 %v2747, %v2973
      %v3038 = vadd.f32 %v2748, %v2975
      %v3039 = vadd.f32 %v2749, %v2978
      %v3040 = vadd.f32 %v2750, %v2980
      %v3041 = vadd.f32 %v2751, %v2983
      %v3042 = vadd.f32 %v2752, %v2985
      %v3043 = vadd.f32 %v2753, %v2988
      %v3044 = vadd.f32 %v2754, %v2990
      %v3045 = vadd.f32 %v2755, %v2993
      %v3046 = vadd.f32 %v2756, %v2995
      %v3047 = vadd.f32 %v2757, %v2998
      %v3048 = vadd.f32 %v2758, %v3000
      %v3049 = vadd.f32 %v2759, %v3003
      %v3050 = vadd.f32 %v2760, %v3005
      %v3051 = vadd.f32 %v2761, %v3008
      %v3052 = vadd.f32 %v2762, %v3010
      %v3053 = vadd.f32 %v2763, %v3013
      %v3054 = vadd.f32 %v2764, %v3015
      %v3055 = vadd.f32 %v2765, %v3018
      %v3056 = vadd.f32 %v2766, %v3020
      %v3057 = vadd.f32 %v2767, %v3023
      %v3058 = vadd.f32 %v2768, %v3025
      %v3059 = vld [vmem:[%s2772] sm:$0xf]
      %v3060 = vld [vmem:[%s2772 + $0x4] sm:$0xf]
      %v3061 = vld [vmem:[%s2772 + $0x8] sm:$0x1]
      %v3062 = vld [vmem:[%s2772 + $0xc] sm:$0xf]
      %v3063 = vld [vmem:[%s2772 + $0x10] sm:$0xf]
      %v3064 = vld [vmem:[%s2772 + $0x14] sm:$0x1]
      %v3065 = vld [vmem:[%s2772 + $0x18] sm:$0xf]
      %v3066 = vld [vmem:[%s2772 + $0x1c] sm:$0xf]
      %v3067 = vld [vmem:[%s2772 + $0x20] sm:$0x1]
      %v3068 = vld [vmem:[%s2772 + $0x24] sm:$0xf]
      %v3069 = vld [vmem:[%s2772 + $0x28] sm:$0xf]
      %v3070 = vld [vmem:[%s2772 + $0x2c] sm:$0x1]
      %v3071 = vld [vmem:[%s2772 + $0x30] sm:$0xf]
      %v3072 = vld [vmem:[%s2772 + $0x34] sm:$0xf]
      %v3073 = vld [vmem:[%s2772 + $0x38] sm:$0x1]
      %v3074 = vld [vmem:[%s2772 + $0x3c] sm:$0xf]
      %v3075 = vld [vmem:[%s2772 + $0x40] sm:$0xf]
      %v3076 = vld [vmem:[%s2772 + $0x44] sm:$0x1]
      %v3077 = vld [vmem:[%s2772 + $0x48] sm:$0xf]
      %v3078 = vld [vmem:[%s2772 + $0x4c] sm:$0xf]
      %v3079 = vld [vmem:[%s2772 + $0x50] sm:$0x1]
      %v3080 = vld [vmem:[%s2772 + $0x54] sm:$0xf]
      %v3081 = vld [vmem:[%s2772 + $0x58] sm:$0xf]
      %v3082 = vld [vmem:[%s2772 + $0x5c] sm:$0x1]
      %v3083 = vld [vmem:[%s2772 + $0x60] sm:$0xf]
      %v3084 = vld [vmem:[%s2772 + $0x64] sm:$0xf]
      %v3085 = vld [vmem:[%s2772 + $0x68] sm:$0x1]
      %v3086 = vld [vmem:[%s2772 + $0x6c] sm:$0xf]
      %v3087 = vld [vmem:[%s2772 + $0x70] sm:$0xf]
      %v3088 = vld [vmem:[%s2772 + $0x74] sm:$0x1]
      %v3089 = vld [vmem:[%s2772 + $0x78] sm:$0xf]
      %v3090 = vld [vmem:[%s2772 + $0x7c] sm:$0xf]
      %v3091 = vld [vmem:[%s2772 + $0x80] sm:$0x1]
      %v3092 = vld [vmem:[%s2772 + $0x84] sm:$0xf]
      %v3093 = vld [vmem:[%s2772 + $0x88] sm:$0xf]
      %v3094 = vld [vmem:[%s2772 + $0x8c] sm:$0x1]
      %v3095 = vld [vmem:[%s2772 + $0x90] sm:$0xf]
      %v3096 = vld [vmem:[%s2772 + $0x94] sm:$0xf]
      %v3097 = vld [vmem:[%s2772 + $0x98] sm:$0x1]
      %v3098 = vld [vmem:[%s2772 + $0x9c] sm:$0xf]
      %v3099 = vld [vmem:[%s2772 + $0xa0] sm:$0xf]
      %v3100 = vld [vmem:[%s2772 + $0xa4] sm:$0x1]
      %v3101 = vld [vmem:[%s2772 + $0xa8] sm:$0xf]
      %v3102 = vld [vmem:[%s2772 + $0xac] sm:$0xf]
      %v3103 = vld [vmem:[%s2772 + $0xb0] sm:$0x1]
      %v3104 = vld [vmem:[%s2772 + $0xb4] sm:$0xf]
      %v3105 = vld [vmem:[%s2772 + $0xb8] sm:$0xf]
      %v3106 = vld [vmem:[%s2772 + $0xbc] sm:$0x1]
      %v3108 = vshrl.u32 %v3059, 16
      %v3110 = vrot.slane %v3108, 4
      %v3111 = vshll.u32 %v3059, 16
      %v3113 = vrot.slane %v3111, 5
      %v3114 = vor.u32 %v3110, %v3113
      %v3115 = vrot.slane %v3114, 4
      %v3117 = vshll.u32 %v3060, 16
      %v3119 = vrot.slane %v3117, 5
      %v3120 = vsel %vm245, %v3115, %v3119
      %v3121 = vshrl.u32 %v3060, 16
      %v3123 = vrot.slane %v3121, 4
      %v3124 = vor.u32 %v3123, %v3119
      %v3125 = vrot.slane %v3124, 4
      %v3127 = vshll.u32 %v3061, 16
      %v3129 = vrot.slane %v3127, 5
      %v3130 = vsel %vm245, %v3125, %v3129
      %v3132 = vshrl.u32 %v3062, 16
      %v3134 = vrot.slane %v3132, 4
      %v3135 = vshll.u32 %v3062, 16
      %v3137 = vrot.slane %v3135, 5
      %v3138 = vor.u32 %v3134, %v3137
      %v3139 = vrot.slane %v3138, 4
      %v3141 = vshll.u32 %v3063, 16
      %v3143 = vrot.slane %v3141, 5
      %v3144 = vsel %vm245, %v3139, %v3143
      %v3145 = vshrl.u32 %v3063, 16
      %v3147 = vrot.slane %v3145, 4
      %v3148 = vor.u32 %v3147, %v3143
      %v3149 = vrot.slane %v3148, 4
      %v3151 = vshll.u32 %v3064, 16
      %v3153 = vrot.slane %v3151, 5
      %v3154 = vsel %vm245, %v3149, %v3153
      %v3156 = vshrl.u32 %v3065, 16
      %v3158 = vrot.slane %v3156, 4
      %v3159 = vshll.u32 %v3065, 16
      %v3161 = vrot.slane %v3159, 5
      %v3162 = vor.u32 %v3158, %v3161
      %v3163 = vrot.slane %v3162, 4
      %v3165 = vshll.u32 %v3066, 16
      %v3167 = vrot.slane %v3165, 5
      %v3168 = vsel %vm245, %v3163, %v3167
      %v3169 = vshrl.u32 %v3066, 16
      %v3171 = vrot.slane %v3169, 4
      %v3172 = vor.u32 %v3171, %v3167
      %v3173 = vrot.slane %v3172, 4
      %v3175 = vshll.u32 %v3067, 16
      %v3177 = vrot.slane %v3175, 5
      %v3178 = vsel %vm245, %v3173, %v3177
      %v3180 = vshrl.u32 %v3068, 16
      %v3182 = vrot.slane %v3180, 4
      %v3183 = vshll.u32 %v3068, 16
      %v3185 = vrot.slane %v3183, 5
      %v3186 = vor.u32 %v3182, %v3185
      %v3187 = vrot.slane %v3186, 4
      %v3189 = vshll.u32 %v3069, 16
      %v3191 = vrot.slane %v3189, 5
      %v3192 = vsel %vm245, %v3187, %v3191
      %v3193 = vshrl.u32 %v3069, 16
      %v3195 = vrot.slane %v3193, 4
      %v3196 = vor.u32 %v3195, %v3191
      %v3197 = vrot.slane %v3196, 4
      %v3199 = vshll.u32 %v3070, 16
      %v3201 = vrot.slane %v3199, 5
      %v3202 = vsel %vm245, %v3197, %v3201
      %v3204 = vshrl.u32 %v3071, 16
      %v3206 = vrot.slane %v3204, 4
      %v3207 = vshll.u32 %v3071, 16
      %v3209 = vrot.slane %v3207, 5
      %v3210 = vor.u32 %v3206, %v3209
      %v3211 = vrot.slane %v3210, 4
      %v3213 = vshll.u32 %v3072, 16
      %v3215 = vrot.slane %v3213, 5
      %v3216 = vsel %vm245, %v3211, %v3215
      %v3217 = vshrl.u32 %v3072, 16
      %v3219 = vrot.slane %v3217, 4
      %v3220 = vor.u32 %v3219, %v3215
      %v3221 = vrot.slane %v3220, 4
      %v3223 = vshll.u32 %v3073, 16
      %v3225 = vrot.slane %v3223, 5
      %v3226 = vsel %vm245, %v3221, %v3225
      %v3228 = vshrl.u32 %v3074, 16
      %v3230 = vrot.slane %v3228, 4
      %v3231 = vshll.u32 %v3074, 16
      %v3233 = vrot.slane %v3231, 5
      %v3234 = vor.u32 %v3230, %v3233
      %v3235 = vrot.slane %v3234, 4
      %v3237 = vshll.u32 %v3075, 16
      %v3239 = vrot.slane %v3237, 5
      %v3240 = vsel %vm245, %v3235, %v3239
      %v3241 = vshrl.u32 %v3075, 16
      %v3243 = vrot.slane %v3241, 4
      %v3244 = vor.u32 %v3243, %v3239
      %v3245 = vrot.slane %v3244, 4
      %v3247 = vshll.u32 %v3076, 16
      %v3249 = vrot.slane %v3247, 5
      %v3250 = vsel %vm245, %v3245, %v3249
      %v3252 = vshrl.u32 %v3077, 16
      %v3254 = vrot.slane %v3252, 4
      %v3255 = vshll.u32 %v3077, 16
      %v3257 = vrot.slane %v3255, 5
      %v3258 = vor.u32 %v3254, %v3257
      %v3259 = vrot.slane %v3258, 4
      %v3261 = vshll.u32 %v3078, 16
      %v3263 = vrot.slane %v3261, 5
      %v3264 = vsel %vm245, %v3259, %v3263
      %v3265 = vshrl.u32 %v3078, 16
      %v3267 = vrot.slane %v3265, 4
      %v3268 = vor.u32 %v3267, %v3263
      %v3269 = vrot.slane %v3268, 4
      %v3271 = vshll.u32 %v3079, 16
      %v3273 = vrot.slane %v3271, 5
      %v3274 = vsel %vm245, %v3269, %v3273
      %v3276 = vshrl.u32 %v3080, 16
      %v3278 = vrot.slane %v3276, 4
      %v3279 = vshll.u32 %v3080, 16
      %v3281 = vrot.slane %v3279, 5
      %v3282 = vor.u32 %v3278, %v3281
      %v3283 = vrot.slane %v3282, 4
      %v3285 = vshll.u32 %v3081, 16
      %v3287 = vrot.slane %v3285, 5
      %v3288 = vsel %vm245, %v3283, %v3287
      %v3289 = vshrl.u32 %v3081, 16
      %v3291 = vrot.slane %v3289, 4
      %v3292 = vor.u32 %v3291, %v3287
      %v3293 = vrot.slane %v3292, 4
      %v3295 = vshll.u32 %v3082, 16
      %v3297 = vrot.slane %v3295, 5
      %v3298 = vsel %vm245, %v3293, %v3297
      %v3300 = vshrl.u32 %v3083, 16
      %v3302 = vrot.slane %v3300, 4
      %v3303 = vshll.u32 %v3083, 16
      %v3305 = vrot.slane %v3303, 5
      %v3306 = vor.u32 %v3302, %v3305
      %v3307 = vrot.slane %v3306, 4
      %v3309 = vshll.u32 %v3084, 16
      %v3311 = vrot.slane %v3309, 5
      %v3312 = vsel %vm245, %v3307, %v3311
      %v3313 = vshrl.u32 %v3084, 16
      %v3315 = vrot.slane %v3313, 4
      %v3316 = vor.u32 %v3315, %v3311
      %v3317 = vrot.slane %v3316, 4
      %v3319 = vshll.u32 %v3085, 16
      %v3321 = vrot.slane %v3319, 5
      %v3322 = vsel %vm245, %v3317, %v3321
      %v3324 = vshrl.u32 %v3086, 16
      %v3326 = vrot.slane %v3324, 4
      %v3327 = vshll.u32 %v3086, 16
      %v3329 = vrot.slane %v3327, 5
      %v3330 = vor.u32 %v3326, %v3329
      %v3331 = vrot.slane %v3330, 4
      %v3333 = vshll.u32 %v3087, 16
      %v3335 = vrot.slane %v3333, 5
      %v3336 = vsel %vm245, %v3331, %v3335
      %v3337 = vshrl.u32 %v3087, 16
      %v3339 = vrot.slane %v3337, 4
      %v3340 = vor.u32 %v3339, %v3335
      %v3341 = vrot.slane %v3340, 4
      %v3343 = vshll.u32 %v3088, 16
      %v3345 = vrot.slane %v3343, 5
      %v3346 = vsel %vm245, %v3341, %v3345
      %v3348 = vshrl.u32 %v3089, 16
      %v3350 = vrot.slane %v3348, 4
      %v3351 = vshll.u32 %v3089, 16
      %v3353 = vrot.slane %v3351, 5
      %v3354 = vor.u32 %v3350, %v3353
      %v3355 = vrot.slane %v3354, 4
      %v3357 = vshll.u32 %v3090, 16
      %v3359 = vrot.slane %v3357, 5
      %v3360 = vsel %vm245, %v3355, %v3359
      %v3361 = vshrl.u32 %v3090, 16
      %v3363 = vrot.slane %v3361, 4
      %v3364 = vor.u32 %v3363, %v3359
      %v3365 = vrot.slane %v3364, 4
      %v3367 = vshll.u32 %v3091, 16
      %v3369 = vrot.slane %v3367, 5
      %v3370 = vsel %vm245, %v3365, %v3369
      %v3372 = vshrl.u32 %v3092, 16
      %v3374 = vrot.slane %v3372, 4
      %v3375 = vshll.u32 %v3092, 16
      %v3377 = vrot.slane %v3375, 5
      %v3378 = vor.u32 %v3374, %v3377
      %v3379 = vrot.slane %v3378, 4
      %v3381 = vshll.u32 %v3093, 16
      %v3383 = vrot.slane %v3381, 5
      %v3384 = vsel %vm245, %v3379, %v3383
      %v3385 = vshrl.u32 %v3093, 16
      %v3387 = vrot.slane %v3385, 4
      %v3388 = vor.u32 %v3387, %v3383
      %v3389 = vrot.slane %v3388, 4
      %v3391 = vshll.u32 %v3094, 16
      %v3393 = vrot.slane %v3391, 5
      %v3394 = vsel %vm245, %v3389, %v3393
      %v3396 = vshrl.u32 %v3095, 16
      %v3398 = vrot.slane %v3396, 4
      %v3399 = vshll.u32 %v3095, 16
      %v3401 = vrot.slane %v3399, 5
      %v3402 = vor.u32 %v3398, %v3401
      %v3403 = vrot.slane %v3402, 4
      %v3405 = vshll.u32 %v3096, 16
      %v3407 = vrot.slane %v3405, 5
      %v3408 = vsel %vm245, %v3403, %v3407
      %v3409 = vshrl.u32 %v3096, 16
      %v3411 = vrot.slane %v3409, 4
      %v3412 = vor.u32 %v3411, %v3407
      %v3413 = vrot.slane %v3412, 4
      %v3415 = vshll.u32 %v3097, 16
      %v3417 = vrot.slane %v3415, 5
      %v3418 = vsel %vm245, %v3413, %v3417
      %v3420 = vshrl.u32 %v3098, 16
      %v3422 = vrot.slane %v3420, 4
      %v3423 = vshll.u32 %v3098, 16
      %v3425 = vrot.slane %v3423, 5
      %v3426 = vor.u32 %v3422, %v3425
      %v3427 = vrot.slane %v3426, 4
      %v3429 = vshll.u32 %v3099, 16
      %v3431 = vrot.slane %v3429, 5
      %v3432 = vsel %vm245, %v3427, %v3431
      %v3433 = vshrl.u32 %v3099, 16
      %v3435 = vrot.slane %v3433, 4
      %v3436 = vor.u32 %v3435, %v3431
      %v3437 = vrot.slane %v3436, 4
      %v3439 = vshll.u32 %v3100, 16
      %v3441 = vrot.slane %v3439, 5
      %v3442 = vsel %vm245, %v3437, %v3441
      %v3444 = vshrl.u32 %v3101, 16
      %v3446 = vrot.slane %v3444, 4
      %v3447 = vshll.u32 %v3101, 16
      %v3449 = vrot.slane %v3447, 5
      %v3450 = vor.u32 %v3446, %v3449
      %v3451 = vrot.slane %v3450, 4
      %v3453 = vshll.u32 %v3102, 16
      %v3455 = vrot.slane %v3453, 5
      %v3456 = vsel %vm245, %v3451, %v3455
      %v3457 = vshrl.u32 %v3102, 16
      %v3459 = vrot.slane %v3457, 4
      %v3460 = vor.u32 %v3459, %v3455
      %v3461 = vrot.slane %v3460, 4
      %v3463 = vshll.u32 %v3103, 16
      %v3465 = vrot.slane %v3463, 5
      %v3466 = vsel %vm245, %v3461, %v3465
      %v3468 = vshrl.u32 %v3104, 16
      %v3470 = vrot.slane %v3468, 4
      %v3471 = vshll.u32 %v3104, 16
      %v3473 = vrot.slane %v3471, 5
      %v3474 = vor.u32 %v3470, %v3473
      %v3475 = vrot.slane %v3474, 4
      %v3477 = vshll.u32 %v3105, 16
      %v3479 = vrot.slane %v3477, 5
      %v3480 = vsel %vm245, %v3475, %v3479
      %v3481 = vshrl.u32 %v3105, 16
      %v3483 = vrot.slane %v3481, 4
      %v3484 = vor.u32 %v3483, %v3479
      %v3485 = vrot.slane %v3484, 4
      %v3487 = vshll.u32 %v3106, 16
      %v3489 = vrot.slane %v3487, 5
      %v3490 = vsel %vm245, %v3485, %v3489
      %s3491 = scalar_lea.vmem %s1, 14
      %v3492 = vld [vmem:[%s3491] sm:$0x3]
      %v3493 = vunpack.c.l.b16 %v3120
      %v3494 = vunpack.c.l.b16 %v3130
      %v3495 = vunpack.c.l.b16 %v3144
      %v3496 = vunpack.c.l.b16 %v3154
      %v3497 = vunpack.c.l.b16 %v3168
      %v3498 = vunpack.c.l.b16 %v3178
      %v3499 = vunpack.c.l.b16 %v3192
      %v3500 = vunpack.c.l.b16 %v3202
      %v3501 = vunpack.c.l.b16 %v3216
      %v3502 = vunpack.c.l.b16 %v3226
      %v3503 = vunpack.c.l.b16 %v3240
      %v3504 = vunpack.c.l.b16 %v3250
      %v3505 = vunpack.c.l.b16 %v3264
      %v3506 = vunpack.c.l.b16 %v3274
      %v3507 = vunpack.c.l.b16 %v3288
      %v3508 = vunpack.c.l.b16 %v3298
      %v3509 = vunpack.c.l.b16 %v3312
      %v3510 = vunpack.c.l.b16 %v3322
      %v3511 = vunpack.c.l.b16 %v3336
      %v3512 = vunpack.c.l.b16 %v3346
      %v3513 = vunpack.c.l.b16 %v3360
      %v3514 = vunpack.c.l.b16 %v3370
      %v3515 = vunpack.c.l.b16 %v3384
      %v3516 = vunpack.c.l.b16 %v3394
      %v3517 = vunpack.c.l.b16 %v3408
      %v3518 = vunpack.c.l.b16 %v3418
      %v3519 = vunpack.c.l.b16 %v3432
      %v3520 = vunpack.c.l.b16 %v3442
      %v3521 = vunpack.c.l.b16 %v3456
      %v3522 = vunpack.c.l.b16 %v3466
      %v3523 = vunpack.c.l.b16 %v3480
      %v3524 = vunpack.c.l.b16 %v3490
      %v3525 = vpack.c.b16 %v3494, %v3493
      %v3526 = vpack.c.b16 %v3496, %v3495
      %v3527 = vpack.c.b16 %v3498, %v3497
      %v3528 = vpack.c.b16 %v3500, %v3499
      %v3529 = vpack.c.b16 %v3502, %v3501
      %v3530 = vpack.c.b16 %v3504, %v3503
      %v3531 = vpack.c.b16 %v3506, %v3505
      %v3532 = vpack.c.b16 %v3508, %v3507
      %v3533 = vpack.c.b16 %v3510, %v3509
      %v3534 = vpack.c.b16 %v3512, %v3511
      %v3535 = vpack.c.b16 %v3514, %v3513
      %v3536 = vpack.c.b16 %v3516, %v3515
      %v3537 = vpack.c.b16 %v3518, %v3517
      %v3538 = vpack.c.b16 %v3520, %v3519
      %v3539 = vpack.c.b16 %v3522, %v3521
      %v3540 = vpack.c.b16 %v3524, %v3523
      %v3542 = vsel %vm680, %v3525, 0
      %v3545 = vsel %vm680, %v3526, 0
      %v3548 = vsel %vm680, %v3527, 0
      %v3551 = vsel %vm680, %v3528, 0
      %v3554 = vsel %vm680, %v3529, 0
      %v3557 = vsel %vm680, %v3530, 0
      %v3560 = vsel %vm680, %v3531, 0
      %v3563 = vsel %vm680, %v3532, 0
      %v3566 = vsel %vm680, %v3533, 0
      %v3569 = vsel %vm680, %v3534, 0
      %v3572 = vsel %vm680, %v3535, 0
      %v3575 = vsel %vm680, %v3536, 0
      %v3578 = vsel %vm680, %v3537, 0
      %v3581 = vsel %vm680, %v3538, 0
      %v3584 = vsel %vm680, %v3539, 0
      %v3587 = vsel %vm680, %v3540, 0
      %v3590 = vsel %vm729, %v3492, 0
      %3592 = vmatpush.bf16.msra.mxu0 0
      %3593 = vmatpush.bf16.msra.mxu0 0
      %3594 = vmatpush.bf16.msra.mxu0 0
      %3595 = vmatpush.bf16.msra.mxu0 0
      %3596 = vmatpush.bf16.msra.mxu0 0
      %3597 = vmatpush.bf16.msra.mxu0 0
      %3598 = vmatpush.bf16.msra.mxu0 0
      %3599 = vmatpush.bf16.msra.mxu0 %v3590
      %3600 = vmatmul.bf16.gmra.mxu0 %v3542
      %v3601 = vpop.f32.mrf.mxu0
      %v3602 = vadd.f32 0.0, %v3601
      %v3603 = vpop.f32.mrf.mxu0
      %v3604 = vadd.f32 0.0, %v3603
      %3605 = vmatmul.bf16.gmra.mxu0 %v3545
      %v3606 = vpop.f32.mrf.mxu0
      %v3607 = vadd.f32 0.0, %v3606
      %v3608 = vpop.f32.mrf.mxu0
      %v3609 = vadd.f32 0.0, %v3608
      %3610 = vmatmul.bf16.gmra.mxu0 %v3548
      %v3611 = vpop.f32.mrf.mxu0
      %v3612 = vadd.f32 0.0, %v3611
      %v3613 = vpop.f32.mrf.mxu0
      %v3614 = vadd.f32 0.0, %v3613
      %3615 = vmatmul.bf16.gmra.mxu0 %v3551
      %v3616 = vpop.f32.mrf.mxu0
      %v3617 = vadd.f32 0.0, %v3616
      %v3618 = vpop.f32.mrf.mxu0
      %v3619 = vadd.f32 0.0, %v3618
      %3620 = vmatmul.bf16.gmra.mxu0 %v3554
      %v3621 = vpop.f32.mrf.mxu0
      %v3622 = vadd.f32 0.0, %v3621
      %v3623 = vpop.f32.mrf.mxu0
      %v3624 = vadd.f32 0.0, %v3623
      %3625 = vmatmul.bf16.gmra.mxu0 %v3557
      %v3626 = vpop.f32.mrf.mxu0
      %v3627 = vadd.f32 0.0, %v3626
      %v3628 = vpop.f32.mrf.mxu0
      %v3629 = vadd.f32 0.0, %v3628
      %3630 = vmatmul.bf16.gmra.mxu0 %v3560
      %v3631 = vpop.f32.mrf.mxu0
      %v3632 = vadd.f32 0.0, %v3631
      %v3633 = vpop.f32.mrf.mxu0
      %v3634 = vadd.f32 0.0, %v3633
      %3635 = vmatmul.bf16.gmra.mxu0 %v3563
      %v3636 = vpop.f32.mrf.mxu0
      %v3637 = vadd.f32 0.0, %v3636
      %v3638 = vpop.f32.mrf.mxu0
      %v3639 = vadd.f32 0.0, %v3638
      %3640 = vmatmul.bf16.gmra.mxu0 %v3566
      %v3641 = vpop.f32.mrf.mxu0
      %v3642 = vadd.f32 0.0, %v3641
      %v3643 = vpop.f32.mrf.mxu0
      %v3644 = vadd.f32 0.0, %v3643
      %3645 = vmatmul.bf16.gmra.mxu0 %v3569
      %v3646 = vpop.f32.mrf.mxu0
      %v3647 = vadd.f32 0.0, %v3646
      %v3648 = vpop.f32.mrf.mxu0
      %v3649 = vadd.f32 0.0, %v3648
      %3650 = vmatmul.bf16.gmra.mxu0 %v3572
      %v3651 = vpop.f32.mrf.mxu0
      %v3652 = vadd.f32 0.0, %v3651
      %v3653 = vpop.f32.mrf.mxu0
      %v3654 = vadd.f32 0.0, %v3653
      %3655 = vmatmul.bf16.gmra.mxu0 %v3575
      %v3656 = vpop.f32.mrf.mxu0
      %v3657 = vadd.f32 0.0, %v3656
      %v3658 = vpop.f32.mrf.mxu0
      %v3659 = vadd.f32 0.0, %v3658
      %3660 = vmatmul.bf16.gmra.mxu0 %v3578
      %v3661 = vpop.f32.mrf.mxu0
      %v3662 = vadd.f32 0.0, %v3661
      %v3663 = vpop.f32.mrf.mxu0
      %v3664 = vadd.f32 0.0, %v3663
      %3665 = vmatmul.bf16.gmra.mxu0 %v3581
      %v3666 = vpop.f32.mrf.mxu0
      %v3667 = vadd.f32 0.0, %v3666
      %v3668 = vpop.f32.mrf.mxu0
      %v3669 = vadd.f32 0.0, %v3668
      %3670 = vmatmul.bf16.gmra.mxu0 %v3584
      %v3671 = vpop.f32.mrf.mxu0
      %v3672 = vadd.f32 0.0, %v3671
      %v3673 = vpop.f32.mrf.mxu0
      %v3674 = vadd.f32 0.0, %v3673
      %3675 = vmatmul.bf16.gmra.mxu0 %v3587
      %v3676 = vpop.f32.mrf.mxu0
      %v3677 = vadd.f32 0.0, %v3676
      %v3678 = vpop.f32.mrf.mxu0
      %v3679 = vadd.f32 0.0, %v3678
      %3680 = vdwg.mxu0
      %v3681 = vadd.f32 %v3027, %v3602
      %v3682 = vadd.f32 %v3028, %v3604
      %v3683 = vadd.f32 %v3029, %v3607
      %v3684 = vadd.f32 %v3030, %v3609
      %v3685 = vadd.f32 %v3031, %v3612
      %v3686 = vadd.f32 %v3032, %v3614
      %v3687 = vadd.f32 %v3033, %v3617
      %v3688 = vadd.f32 %v3034, %v3619
      %v3689 = vadd.f32 %v3035, %v3622
      %v3690 = vadd.f32 %v3036, %v3624
      %v3691 = vadd.f32 %v3037, %v3627
      %v3692 = vadd.f32 %v3038, %v3629
      %v3693 = vadd.f32 %v3039, %v3632
      %v3694 = vadd.f32 %v3040, %v3634
      %v3695 = vadd.f32 %v3041, %v3637
      %v3696 = vadd.f32 %v3042, %v3639
      %v3697 = vadd.f32 %v3043, %v3642
      %v3698 = vadd.f32 %v3044, %v3644
      %v3699 = vadd.f32 %v3045, %v3647
      %v3700 = vadd.f32 %v3046, %v3649
      %v3701 = vadd.f32 %v3047, %v3652
      %v3702 = vadd.f32 %v3048, %v3654
      %v3703 = vadd.f32 %v3049, %v3657
      %v3704 = vadd.f32 %v3050, %v3659
      %v3705 = vadd.f32 %v3051, %v3662
      %v3706 = vadd.f32 %v3052, %v3664
      %v3707 = vadd.f32 %v3053, %v3667
      %v3708 = vadd.f32 %v3054, %v3669
      %v3709 = vadd.f32 %v3055, %v3672
      %v3710 = vadd.f32 %v3056, %v3674
      %v3711 = vadd.f32 %v3057, %v3677
      %v3712 = vadd.f32 %v3058, %v3679
      %v3713 = vld [vmem:[%s2772] sm:$0xe]
      %v3714 = vld [vmem:[%s2772 + $0xc] sm:$0xe]
      %v3715 = vld [vmem:[%s2772 + $0x18] sm:$0xe]
      %v3716 = vld [vmem:[%s2772 + $0x24] sm:$0xe]
      %v3717 = vld [vmem:[%s2772 + $0x30] sm:$0xe]
      %v3718 = vld [vmem:[%s2772 + $0x3c] sm:$0xe]
      %v3719 = vld [vmem:[%s2772 + $0x48] sm:$0xe]
      %v3720 = vld [vmem:[%s2772 + $0x54] sm:$0xe]
      %v3721 = vld [vmem:[%s2772 + $0x60] sm:$0xe]
      %v3722 = vld [vmem:[%s2772 + $0x6c] sm:$0xe]
      %v3723 = vld [vmem:[%s2772 + $0x78] sm:$0xe]
      %v3724 = vld [vmem:[%s2772 + $0x84] sm:$0xe]
      %v3725 = vld [vmem:[%s2772 + $0x90] sm:$0xe]
      %v3726 = vld [vmem:[%s2772 + $0x9c] sm:$0xe]
      %v3727 = vld [vmem:[%s2772 + $0xa8] sm:$0xe]
      %v3728 = vld [vmem:[%s2772 + $0xb4] sm:$0xe]
      %v3777 = vrot.slane %v3713, 5
      %v3778 = vrot.slane %v3777, 4
      %v3779 = vrot.slane %v3060, 5
      %v3780 = vsel %vm1092, %v3778, %v3779
      %v3781 = vrot.slane %v3779, 4
      %v3782 = vrot.slane %v3061, 5
      %v3783 = vsel %vm1092, %v3781, %v3782
      %v3784 = vrot.slane %v3714, 5
      %v3785 = vrot.slane %v3784, 4
      %v3786 = vrot.slane %v3063, 5
      %v3787 = vsel %vm1092, %v3785, %v3786
      %v3788 = vrot.slane %v3786, 4
      %v3789 = vrot.slane %v3064, 5
      %v3790 = vsel %vm1092, %v3788, %v3789
      %v3791 = vrot.slane %v3715, 5
      %v3792 = vrot.slane %v3791, 4
      %v3793 = vrot.slane %v3066, 5
      %v3794 = vsel %vm1092, %v3792, %v3793
      %v3795 = vrot.slane %v3793, 4
      %v3796 = vrot.slane %v3067, 5
      %v3797 = vsel %vm1092, %v3795, %v3796
      %v3798 = vrot.slane %v3716, 5
      %v3799 = vrot.slane %v3798, 4
      %v3800 = vrot.slane %v3069, 5
      %v3801 = vsel %vm1092, %v3799, %v3800
      %v3802 = vrot.slane %v3800, 4
      %v3803 = vrot.slane %v3070, 5
      %v3804 = vsel %vm1092, %v3802, %v3803
      %v3805 = vrot.slane %v3717, 5
      %v3806 = vrot.slane %v3805, 4
      %v3807 = vrot.slane %v3072, 5
      %v3808 = vsel %vm1092, %v3806, %v3807
      %v3809 = vrot.slane %v3807, 4
      %v3810 = vrot.slane %v3073, 5
      %v3811 = vsel %vm1092, %v3809, %v3810
      %v3812 = vrot.slane %v3718, 5
      %v3813 = vrot.slane %v3812, 4
      %v3814 = vrot.slane %v3075, 5
      %v3815 = vsel %vm1092, %v3813, %v3814
      %v3816 = vrot.slane %v3814, 4
      %v3817 = vrot.slane %v3076, 5
      %v3818 = vsel %vm1092, %v3816, %v3817
      %v3819 = vrot.slane %v3719, 5
      %v3820 = vrot.slane %v3819, 4
      %v3821 = vrot.slane %v3078, 5
      %v3822 = vsel %vm1092, %v3820, %v3821
      %v3823 = vrot.slane %v3821, 4
      %v3824 = vrot.slane %v3079, 5
      %v3825 = vsel %vm1092, %v3823, %v3824
      %v3826 = vrot.slane %v3720, 5
      %v3827 = vrot.slane %v3826, 4
      %v3828 = vrot.slane %v3081, 5
      %v3829 = vsel %vm1092, %v3827, %v3828
      %v3830 = vrot.slane %v3828, 4
      %v3831 = vrot.slane %v3082, 5
      %v3832 = vsel %vm1092, %v3830, %v3831
      %v3833 = vrot.slane %v3721, 5
      %v3834 = vrot.slane %v3833, 4
      %v3835 = vrot.slane %v3084, 5
      %v3836 = vsel %vm1092, %v3834, %v3835
      %v3837 = vrot.slane %v3835, 4
      %v3838 = vrot.slane %v3085, 5
      %v3839 = vsel %vm1092, %v3837, %v3838
      %v3840 = vrot.slane %v3722, 5
      %v3841 = vrot.slane %v3840, 4
      %v3842 = vrot.slane %v3087, 5
      %v3843 = vsel %vm1092, %v3841, %v3842
      %v3844 = vrot.slane %v3842, 4
      %v3845 = vrot.slane %v3088, 5
      %v3846 = vsel %vm1092, %v3844, %v3845
      %v3847 = vrot.slane %v3723, 5
      %v3848 = vrot.slane %v3847, 4
      %v3849 = vrot.slane %v3090, 5
      %v3850 = vsel %vm1092, %v3848, %v3849
      %v3851 = vrot.slane %v3849, 4
      %v3852 = vrot.slane %v3091, 5
      %v3853 = vsel %vm1092, %v3851, %v3852
      %v3854 = vrot.slane %v3724, 5
      %v3855 = vrot.slane %v3854, 4
      %v3856 = vrot.slane %v3093, 5
      %v3857 = vsel %vm1092, %v3855, %v3856
      %v3858 = vrot.slane %v3856, 4
      %v3859 = vrot.slane %v3094, 5
      %v3860 = vsel %vm1092, %v3858, %v3859
      %v3861 = vrot.slane %v3725, 5
      %v3862 = vrot.slane %v3861, 4
      %v3863 = vrot.slane %v3096, 5
      %v3864 = vsel %vm1092, %v3862, %v3863
      %v3865 = vrot.slane %v3863, 4
      %v3866 = vrot.slane %v3097, 5
      %v3867 = vsel %vm1092, %v3865, %v3866
      %v3868 = vrot.slane %v3726, 5
      %v3869 = vrot.slane %v3868, 4
      %v3870 = vrot.slane %v3099, 5
      %v3871 = vsel %vm1092, %v3869, %v3870
      %v3872 = vrot.slane %v3870, 4
      %v3873 = vrot.slane %v3100, 5
      %v3874 = vsel %vm1092, %v3872, %v3873
      %v3875 = vrot.slane %v3727, 5
      %v3876 = vrot.slane %v3875, 4
      %v3877 = vrot.slane %v3102, 5
      %v3878 = vsel %vm1092, %v3876, %v3877
      %v3879 = vrot.slane %v3877, 4
      %v3880 = vrot.slane %v3103, 5
      %v3881 = vsel %vm1092, %v3879, %v3880
      %v3882 = vrot.slane %v3728, 5
      %v3883 = vrot.slane %v3882, 4
      %v3884 = vrot.slane %v3105, 5
      %v3885 = vsel %vm1092, %v3883, %v3884
      %v3886 = vrot.slane %v3884, 4
      %v3887 = vrot.slane %v3106, 5
      %v3888 = vsel %vm1092, %v3886, %v3887
      %s3889 = scalar_lea.vmem %s1, 16
      %v3890 = vld [vmem:[%s3889] sm:$0x3]
      %v3891 = vunpack.c.l.b16 %v3780
      %v3892 = vunpack.c.l.b16 %v3783
      %v3893 = vunpack.c.l.b16 %v3787
      %v3894 = vunpack.c.l.b16 %v3790
      %v3895 = vunpack.c.l.b16 %v3794
      %v3896 = vunpack.c.l.b16 %v3797
      %v3897 = vunpack.c.l.b16 %v3801
      %v3898 = vunpack.c.l.b16 %v3804
      %v3899 = vunpack.c.l.b16 %v3808
      %v3900 = vunpack.c.l.b16 %v3811
      %v3901 = vunpack.c.l.b16 %v3815
      %v3902 = vunpack.c.l.b16 %v3818
      %v3903 = vunpack.c.l.b16 %v3822
      %v3904 = vunpack.c.l.b16 %v3825
      %v3905 = vunpack.c.l.b16 %v3829
      %v3906 = vunpack.c.l.b16 %v3832
      %v3907 = vunpack.c.l.b16 %v3836
      %v3908 = vunpack.c.l.b16 %v3839
      %v3909 = vunpack.c.l.b16 %v3843
      %v3910 = vunpack.c.l.b16 %v3846
      %v3911 = vunpack.c.l.b16 %v3850
      %v3912 = vunpack.c.l.b16 %v3853
      %v3913 = vunpack.c.l.b16 %v3857
      %v3914 = vunpack.c.l.b16 %v3860
      %v3915 = vunpack.c.l.b16 %v3864
      %v3916 = vunpack.c.l.b16 %v3867
      %v3917 = vunpack.c.l.b16 %v3871
      %v3918 = vunpack.c.l.b16 %v3874
      %v3919 = vunpack.c.l.b16 %v3878
      %v3920 = vunpack.c.l.b16 %v3881
      %v3921 = vunpack.c.l.b16 %v3885
      %v3922 = vunpack.c.l.b16 %v3888
      %v3923 = vpack.c.b16 %v3892, %v3891
      %v3924 = vpack.c.b16 %v3894, %v3893
      %v3925 = vpack.c.b16 %v3896, %v3895
      %v3926 = vpack.c.b16 %v3898, %v3897
      %v3927 = vpack.c.b16 %v3900, %v3899
      %v3928 = vpack.c.b16 %v3902, %v3901
      %v3929 = vpack.c.b16 %v3904, %v3903
      %v3930 = vpack.c.b16 %v3906, %v3905
      %v3931 = vpack.c.b16 %v3908, %v3907
      %v3932 = vpack.c.b16 %v3910, %v3909
      %v3933 = vpack.c.b16 %v3912, %v3911
      %v3934 = vpack.c.b16 %v3914, %v3913
      %v3935 = vpack.c.b16 %v3916, %v3915
      %v3936 = vpack.c.b16 %v3918, %v3917
      %v3937 = vpack.c.b16 %v3920, %v3919
      %v3938 = vpack.c.b16 %v3922, %v3921
      %v3940 = vsel %vm680, %v3923, 0
      %v3943 = vsel %vm680, %v3924, 0
      %v3946 = vsel %vm680, %v3925, 0
      %v3949 = vsel %vm680, %v3926, 0
      %v3952 = vsel %vm680, %v3927, 0
      %v3955 = vsel %vm680, %v3928, 0
      %v3958 = vsel %vm680, %v3929, 0
      %v3961 = vsel %vm680, %v3930, 0
      %v3964 = vsel %vm680, %v3931, 0
      %v3967 = vsel %vm680, %v3932, 0
      %v3970 = vsel %vm680, %v3933, 0
      %v3973 = vsel %vm680, %v3934, 0
      %v3976 = vsel %vm680, %v3935, 0
      %v3979 = vsel %vm680, %v3936, 0
      %v3982 = vsel %vm680, %v3937, 0
      %v3985 = vsel %vm680, %v3938, 0
      %v3988 = vsel %vm729, %v3890, 0
      %3990 = vmatpush.bf16.msra.mxu0 0
      %3991 = vmatpush.bf16.msra.mxu0 0
      %3992 = vmatpush.bf16.msra.mxu0 0
      %3993 = vmatpush.bf16.msra.mxu0 0
      %3994 = vmatpush.bf16.msra.mxu0 0
      %3995 = vmatpush.bf16.msra.mxu0 0
      %3996 = vmatpush.bf16.msra.mxu0 0
      %3997 = vmatpush.bf16.msra.mxu0 %v3988
      %3998 = vmatmul.bf16.gmra.mxu0 %v3940
      %v3999 = vpop.f32.mrf.mxu0
      %v4000 = vadd.f32 0.0, %v3999
      %v4001 = vpop.f32.mrf.mxu0
      %v4002 = vadd.f32 0.0, %v4001
      %4003 = vmatmul.bf16.gmra.mxu0 %v3943
      %v4004 = vpop.f32.mrf.mxu0
      %v4005 = vadd.f32 0.0, %v4004
      %v4006 = vpop.f32.mrf.mxu0
      %v4007 = vadd.f32 0.0, %v4006
      %4008 = vmatmul.bf16.gmra.mxu0 %v3946
      %v4009 = vpop.f32.mrf.mxu0
      %v4010 = vadd.f32 0.0, %v4009
      %v4011 = vpop.f32.mrf.mxu0
      %v4012 = vadd.f32 0.0, %v4011
      %4013 = vmatmul.bf16.gmra.mxu0 %v3949
      %v4014 = vpop.f32.mrf.mxu0
      %v4015 = vadd.f32 0.0, %v4014
      %v4016 = vpop.f32.mrf.mxu0
      %v4017 = vadd.f32 0.0, %v4016
      %4018 = vmatmul.bf16.gmra.mxu0 %v3952
      %v4019 = vpop.f32.mrf.mxu0
      %v4020 = vadd.f32 0.0, %v4019
      %v4021 = vpop.f32.mrf.mxu0
      %v4022 = vadd.f32 0.0, %v4021
      %4023 = vmatmul.bf16.gmra.mxu0 %v3955
      %v4024 = vpop.f32.mrf.mxu0
      %v4025 = vadd.f32 0.0, %v4024
      %v4026 = vpop.f32.mrf.mxu0
      %v4027 = vadd.f32 0.0, %v4026
      %4028 = vmatmul.bf16.gmra.mxu0 %v3958
      %v4029 = vpop.f32.mrf.mxu0
      %v4030 = vadd.f32 0.0, %v4029
      %v4031 = vpop.f32.mrf.mxu0
      %v4032 = vadd.f32 0.0, %v4031
      %4033 = vmatmul.bf16.gmra.mxu0 %v3961
      %v4034 = vpop.f32.mrf.mxu0
      %v4035 = vadd.f32 0.0, %v4034
      %v4036 = vpop.f32.mrf.mxu0
      %v4037 = vadd.f32 0.0, %v4036
      %4038 = vmatmul.bf16.gmra.mxu0 %v3964
      %v4039 = vpop.f32.mrf.mxu0
      %v4040 = vadd.f32 0.0, %v4039
      %v4041 = vpop.f32.mrf.mxu0
      %v4042 = vadd.f32 0.0, %v4041
      %4043 = vmatmul.bf16.gmra.mxu0 %v3967
      %v4044 = vpop.f32.mrf.mxu0
      %v4045 = vadd.f32 0.0, %v4044
      %v4046 = vpop.f32.mrf.mxu0
      %v4047 = vadd.f32 0.0, %v4046
      %4048 = vmatmul.bf16.gmra.mxu0 %v3970
      %v4049 = vpop.f32.mrf.mxu0
      %v4050 = vadd.f32 0.0, %v4049
      %v4051 = vpop.f32.mrf.mxu0
      %v4052 = vadd.f32 0.0, %v4051
      %4053 = vmatmul.bf16.gmra.mxu0 %v3973
      %v4054 = vpop.f32.mrf.mxu0
      %v4055 = vadd.f32 0.0, %v4054
      %v4056 = vpop.f32.mrf.mxu0
      %v4057 = vadd.f32 0.0, %v4056
      %4058 = vmatmul.bf16.gmra.mxu0 %v3976
      %v4059 = vpop.f32.mrf.mxu0
      %v4060 = vadd.f32 0.0, %v4059
      %v4061 = vpop.f32.mrf.mxu0
      %v4062 = vadd.f32 0.0, %v4061
      %4063 = vmatmul.bf16.gmra.mxu0 %v3979
      %v4064 = vpop.f32.mrf.mxu0
      %v4065 = vadd.f32 0.0, %v4064
      %v4066 = vpop.f32.mrf.mxu0
      %v4067 = vadd.f32 0.0, %v4066
      %4068 = vmatmul.bf16.gmra.mxu0 %v3982
      %v4069 = vpop.f32.mrf.mxu0
      %v4070 = vadd.f32 0.0, %v4069
      %v4071 = vpop.f32.mrf.mxu0
      %v4072 = vadd.f32 0.0, %v4071
      %4073 = vmatmul.bf16.gmra.mxu0 %v3985
      %v4074 = vpop.f32.mrf.mxu0
      %v4075 = vadd.f32 0.0, %v4074
      %v4076 = vpop.f32.mrf.mxu0
      %v4077 = vadd.f32 0.0, %v4076
      %4078 = vdwg.mxu0
      %v4079 = vadd.f32 %v3681, %v4000
      %v4080 = vadd.f32 %v3682, %v4002
      %v4081 = vadd.f32 %v3683, %v4005
      %v4082 = vadd.f32 %v3684, %v4007
      %v4083 = vadd.f32 %v3685, %v4010
      %v4084 = vadd.f32 %v3686, %v4012
      %v4085 = vadd.f32 %v3687, %v4015
      %v4086 = vadd.f32 %v3688, %v4017
      %v4087 = vadd.f32 %v3689, %v4020
      %v4088 = vadd.f32 %v3690, %v4022
      %v4089 = vadd.f32 %v3691, %v4025
      %v4090 = vadd.f32 %v3692, %v4027
      %v4091 = vadd.f32 %v3693, %v4030
      %v4092 = vadd.f32 %v3694, %v4032
      %v4093 = vadd.f32 %v3695, %v4035
      %v4094 = vadd.f32 %v3696, %v4037
      %v4095 = vadd.f32 %v3697, %v4040
      %v4096 = vadd.f32 %v3698, %v4042
      %v4097 = vadd.f32 %v3699, %v4045
      %v4098 = vadd.f32 %v3700, %v4047
      %v4099 = vadd.f32 %v3701, %v4050
      %v4100 = vadd.f32 %v3702, %v4052
      %v4101 = vadd.f32 %v3703, %v4055
      %v4102 = vadd.f32 %v3704, %v4057
      %v4103 = vadd.f32 %v3705, %v4060
      %v4104 = vadd.f32 %v3706, %v4062
      %v4105 = vadd.f32 %v3707, %v4065
      %v4106 = vadd.f32 %v3708, %v4067
      %v4107 = vadd.f32 %v3709, %v4070
      %v4108 = vadd.f32 %v3710, %v4072
      %v4109 = vadd.f32 %v3711, %v4075
      %v4110 = vadd.f32 %v3712, %v4077
      %v4111 = vld [vmem:[%s2] sm:$0x1]
      %v4113 = vperm.slane %v4111, 0
      %v4115 = vadd.f32 %v4079, %v4113
      %v4116 = vadd.f32 %v4080, %v4113
      %v4117 = vadd.f32 %v4081, %v4113
      %v4118 = vadd.f32 %v4082, %v4113
      %v4119 = vadd.f32 %v4083, %v4113
      %v4120 = vadd.f32 %v4084, %v4113
      %v4121 = vadd.f32 %v4085, %v4113
      %v4122 = vadd.f32 %v4086, %v4113
      %v4123 = vadd.f32 %v4087, %v4113
      %v4124 = vadd.f32 %v4088, %v4113
      %v4125 = vadd.f32 %v4089, %v4113
      %v4126 = vadd.f32 %v4090, %v4113
      %v4127 = vadd.f32 %v4091, %v4113
      %v4128 = vadd.f32 %v4092, %v4113
      %v4129 = vadd.f32 %v4093, %v4113
      %v4130 = vadd.f32 %v4094, %v4113
      %v4131 = vadd.f32 %v4095, %v4113
      %v4132 = vadd.f32 %v4096, %v4113
      %v4133 = vadd.f32 %v4097, %v4113
      %v4134 = vadd.f32 %v4098, %v4113
      %v4135 = vadd.f32 %v4099, %v4113
      %v4136 = vadd.f32 %v4100, %v4113
      %v4137 = vadd.f32 %v4101, %v4113
      %v4138 = vadd.f32 %v4102, %v4113
      %v4139 = vadd.f32 %v4103, %v4113
      %v4140 = vadd.f32 %v4104, %v4113
      %v4141 = vadd.f32 %v4105, %v4113
      %v4142 = vadd.f32 %v4106, %v4113
      %v4143 = vadd.f32 %v4107, %v4113
      %v4144 = vadd.f32 %v4108, %v4113
      %v4145 = vadd.f32 %v4109, %v4113
      %v4146 = vadd.f32 %v4110, %v4113
      %v4147 = vmax.f32 %v4115, 0.0
      %v4148 = vmax.f32 %v4116, 0.0
      %v4149 = vmax.f32 %v4117, 0.0
      %v4150 = vmax.f32 %v4118, 0.0
      %v4151 = vmax.f32 %v4119, 0.0
      %v4152 = vmax.f32 %v4120, 0.0
      %v4153 = vmax.f32 %v4121, 0.0
      %v4154 = vmax.f32 %v4122, 0.0
      %v4155 = vmax.f32 %v4123, 0.0
      %v4156 = vmax.f32 %v4124, 0.0
      %v4157 = vmax.f32 %v4125, 0.0
      %v4158 = vmax.f32 %v4126, 0.0
      %v4159 = vmax.f32 %v4127, 0.0
      %v4160 = vmax.f32 %v4128, 0.0
      %v4161 = vmax.f32 %v4129, 0.0
      %v4162 = vmax.f32 %v4130, 0.0
      %v4163 = vmax.f32 %v4131, 0.0
      %v4164 = vmax.f32 %v4132, 0.0
      %v4165 = vmax.f32 %v4133, 0.0
      %v4166 = vmax.f32 %v4134, 0.0
      %v4167 = vmax.f32 %v4135, 0.0
      %v4168 = vmax.f32 %v4136, 0.0
      %v4169 = vmax.f32 %v4137, 0.0
      %v4170 = vmax.f32 %v4138, 0.0
      %v4171 = vmax.f32 %v4139, 0.0
      %v4172 = vmax.f32 %v4140, 0.0
      %v4173 = vmax.f32 %v4141, 0.0
      %v4174 = vmax.f32 %v4142, 0.0
      %v4175 = vmax.f32 %v4143, 0.0
      %v4176 = vmax.f32 %v4144, 0.0
      %v4177 = vmax.f32 %v4145, 0.0
      %v4178 = vmax.f32 %v4146, 0.0
      %v4179 = vpack.c.bf16 %v4147, %v4147
      %v4180 = vpack.c.bf16 %v4148, %v4148
      %v4181 = vpack.c.bf16 %v4149, %v4149
      %v4182 = vpack.c.bf16 %v4150, %v4150
      %v4183 = vpack.c.bf16 %v4151, %v4151
      %v4184 = vpack.c.bf16 %v4152, %v4152
      %v4185 = vpack.c.bf16 %v4153, %v4153
      %v4186 = vpack.c.bf16 %v4154, %v4154
      %v4187 = vpack.c.bf16 %v4155, %v4155
      %v4188 = vpack.c.bf16 %v4156, %v4156
      %v4189 = vpack.c.bf16 %v4157, %v4157
      %v4190 = vpack.c.bf16 %v4158, %v4158
      %v4191 = vpack.c.bf16 %v4159, %v4159
      %v4192 = vpack.c.bf16 %v4160, %v4160
      %v4193 = vpack.c.bf16 %v4161, %v4161
      %v4194 = vpack.c.bf16 %v4162, %v4162
      %v4195 = vpack.c.bf16 %v4163, %v4163
      %v4196 = vpack.c.bf16 %v4164, %v4164
      %v4197 = vpack.c.bf16 %v4165, %v4165
      %v4198 = vpack.c.bf16 %v4166, %v4166
      %v4199 = vpack.c.bf16 %v4167, %v4167
      %v4200 = vpack.c.bf16 %v4168, %v4168
      %v4201 = vpack.c.bf16 %v4169, %v4169
      %v4202 = vpack.c.bf16 %v4170, %v4170
      %v4203 = vpack.c.bf16 %v4171, %v4171
      %v4204 = vpack.c.bf16 %v4172, %v4172
      %v4205 = vpack.c.bf16 %v4173, %v4173
      %v4206 = vpack.c.bf16 %v4174, %v4174
      %v4207 = vpack.c.bf16 %v4175, %v4175
      %v4208 = vpack.c.bf16 %v4176, %v4176
      %v4209 = vpack.c.bf16 %v4177, %v4177
      %v4210 = vpack.c.bf16 %v4178, %v4178
      %vm4211 = vcmask 27648
      %4212 = vst.msk [vmem:[%s186] sm:$0xf] %vm4211, %v4179
      %4213 = vst.msk [vmem:[%s186 + $0x4] sm:$0xf] %vm4211, %v4180
      %4214 = vst.msk [vmem:[%s186 + $0x8] sm:$0xf] %vm4211, %v4181
      %4215 = vst.msk [vmem:[%s186 + $0xc] sm:$0xf] %vm4211, %v4182
      %4216 = vst.msk [vmem:[%s186 + $0x10] sm:$0xf] %vm4211, %v4183
      %4217 = vst.msk [vmem:[%s186 + $0x14] sm:$0xf] %vm4211, %v4184
      %4218 = vst.msk [vmem:[%s186 + $0x18] sm:$0xf] %vm4211, %v4185
      %4219 = vst.msk [vmem:[%s186 + $0x1c] sm:$0xf] %vm4211, %v4186
      %4220 = vst.msk [vmem:[%s186 + $0x20] sm:$0xf] %vm4211, %v4187
      %4221 = vst.msk [vmem:[%s186 + $0x24] sm:$0xf] %vm4211, %v4188
      %4222 = vst.msk [vmem:[%s186 + $0x28] sm:$0xf] %vm4211, %v4189
      %4223 = vst.msk [vmem:[%s186 + $0x2c] sm:$0xf] %vm4211, %v4190
      %4224 = vst.msk [vmem:[%s186 + $0x30] sm:$0xf] %vm4211, %v4191
      %4225 = vst.msk [vmem:[%s186 + $0x34] sm:$0xf] %vm4211, %v4192
      %4226 = vst.msk [vmem:[%s186 + $0x38] sm:$0xf] %vm4211, %v4193
      %4227 = vst.msk [vmem:[%s186 + $0x3c] sm:$0xf] %vm4211, %v4194
      %4228 = vst.msk [vmem:[%s186 + $0x40] sm:$0xf] %vm4211, %v4195
      %4229 = vst.msk [vmem:[%s186 + $0x44] sm:$0xf] %vm4211, %v4196
      %4230 = vst.msk [vmem:[%s186 + $0x48] sm:$0xf] %vm4211, %v4197
      %4231 = vst.msk [vmem:[%s186 + $0x4c] sm:$0xf] %vm4211, %v4198
      %4232 = vst.msk [vmem:[%s186 + $0x50] sm:$0xf] %vm4211, %v4199
      %4233 = vst.msk [vmem:[%s186 + $0x54] sm:$0xf] %vm4211, %v4200
      %4234 = vst.msk [vmem:[%s186 + $0x58] sm:$0xf] %vm4211, %v4201
      %4235 = vst.msk [vmem:[%s186 + $0x5c] sm:$0xf] %vm4211, %v4202
      %4236 = vst.msk [vmem:[%s186 + $0x60] sm:$0xf] %vm4211, %v4203
      %4237 = vst.msk [vmem:[%s186 + $0x64] sm:$0xf] %vm4211, %v4204
      %4238 = vst.msk [vmem:[%s186 + $0x68] sm:$0xf] %vm4211, %v4205
      %4239 = vst.msk [vmem:[%s186 + $0x6c] sm:$0xf] %vm4211, %v4206
      %4240 = vst.msk [vmem:[%s186 + $0x70] sm:$0xf] %vm4211, %v4207
      %4241 = vst.msk [vmem:[%s186 + $0x74] sm:$0xf] %vm4211, %v4208
      %4242 = vst.msk [vmem:[%s186 + $0x78] sm:$0xf] %vm4211, %v4209
      %4243 = vst.msk [vmem:[%s186 + $0x7c] sm:$0xf] %vm4211, %v4210
      %s4244 = sadd.s32 %s18, %s19
      %s4245 = smul.u32 32, %s4244
      %p4246 = scmp.lt.s32.totalorder %s4245, 63
      %s4247 = scalar_select %p4246, %s4245, 63
      %s4248 = smul.addr %s4247, 4
      %s4249 = scalar_lea.vmem %s3, %s4248
      // Predicated region
      $region33: #{bottleneck_forward.4} parent=31 // pred_check
        %p4250 = pneg %p114
      $region34: #{bottleneck_forward.4} parent=31 // pred_check_branch
        %4252 = sbr.rel (%p4250) target = $region36
      $region35: #{bottleneck_forward.4} parent=31 // pred_region
        %s4253 = sadd.s32 %s18, %s19
        %s4254 = smul.u32 32, %s4253
      $region36: #{bottleneck_forward.4} parent=31 // pred_fallthru
        _
    $region32: #{bottleneck_forward.4} parent=5 // pred_fallthru
      _
    %p4255 = scmp.le.s32.totalorder 2, %s9
    // Predicated region
    $region37: #{bottleneck_forward.4} parent=5 // pred_check
      %p4256 = pneg %p4255
    $region38: #{bottleneck_forward.4} parent=5 // pred_check_branch
      %4258 = sbr.rel (%p4256) target = $region40
    $region39: #{bottleneck_forward.4} parent=5 // pred_region
      %s4259 = ssub.s32 %s9, 2
      // Predicated region
      $region41: #{bottleneck_forward.4} parent=39 // pred_check
        %p4260 = pneg %p120
      $region42: #{bottleneck_forward.4} parent=39 // pred_check_branch
        %4262 = sbr.rel (%p4260) target = $region44
      $region43: #{bottleneck_forward.4} parent=39 // pred_region
        %s4263 = sadd.s32 %s20, %s21
        %s4264 = smul.u32 32, %s4263
        %p4265 = scmp.lt.s32.totalorder %s4264, 63
        %s4266 = scalar_select %p4265, %s4264, 63
        %s4267 = smul.addr %s4266, 4
        %s4268 = scalar_lea.vmem %s3, %s4267
      $region44: #{bottleneck_forward.4} parent=39 // pred_fallthru
        _
    $region40: #{bottleneck_forward.4} parent=5 // pred_fallthru
      _
  $region6: #{bottleneck_forward.4} parent=0 // loop_footer
    %s13 = sadd.s32 1, %s9
  $region7: #{bottleneck_forward.4} parent=0 // loop_footer_branch
    %8 = sbr.rel target = $region3
  $region8: #{bottleneck_forward.4} parent=0 // loop_exit
    _

</llo_original>
